<compile_context>
chip_gen: v7x
topology: tpu7x:2x2x1
jax: 0.10.0
libtpu: 0.0.40
codegen_flags: <defaults>
</compile_context>

<pallas_src>
import functools

import numpy as np
import jax
import jax.numpy as jnp
from jax.experimental import pallas as pl
from jax.experimental.pallas import tpu as pltpu


# ----------------------- host-side precompute (once per model) -----------------------

def get_top_hankel_eigh(l: int, k: int):
    """Top-k eigenpairs of Z[i,j] = 2/((i+j)^3 - (i+j)), computed in float64 on host."""
    i = np.arange(1, l + 1, dtype=np.float64)
    s = i[:, None] + i[None, :]
    z = 2.0 / (s ** 3 - s)
    w, v = np.linalg.eigh(z)                                   # ascending
    return jnp.asarray(w[-k:], dtype=jnp.float32), v[:, -k:]   # (K,) f32, (L,K) f64


def build_causal_toeplitz_np(eig_vecs_np: np.ndarray) -> np.ndarray:
    """T[k,t,s] = eig_vecs[t-s,k] if t >= s else 0.  (K, L, L) float32 on host."""
    l = eig_vecs_np.shape[0]
    diff = np.arange(l)[:, None] - np.arange(l)[None, :]
    toe = np.where(diff[:, :, None] >= 0,
                   eig_vecs_np[np.clip(diff, 0, l - 1), :], 0.0)          # (L, L, K)
    return np.ascontiguousarray(np.transpose(toe, (2, 0, 1)).astype(np.float32))


def _round_up(a: int, m: int) -> int:
    return (a + m - 1) // m * m


def build_toeplitz_bank(toe_np: np.ndarray, row_tile: int = 128) -> jnp.ndarray:
    """Pre-stack the Toeplitz bank per row tile: (num_tiles, K*row_tile, Lp) bf16.

    Row tile ri holds [T_0[rows ri] ; T_1[rows ri] ; ... ; T_{K-1}[rows ri]] stacked along
    the M dimension so the causal conv is a single MXU dot per grid step."""
    assert row_tile % 128 == 0, "row_tile must be a multiple of 128 (lane-dense contraction)"
    k, l, _ = toe_np.shape
    lp = _round_up(l, row_tile)
    pad = lp - l
    t = np.pad(toe_np, ((0, 0), (0, pad), (0, pad)))
    nt = lp // row_tile
    bank = t.reshape(k, nt, row_tile, lp).transpose(1, 0, 2, 3).reshape(nt, k * row_tile, lp)
    return jnp.asarray(bank, dtype=jnp.bfloat16)


def build_scaled_mphi(m_phi: jnp.ndarray, eig_vals: jnp.ndarray, e: int) -> jnp.ndarray:
    """Fold eig_vals**0.25 into m_phi, pad E to a lane-dense Ep, stack per-k blocks along
    the contraction dim: (K*Ep, Ep) bf16.  Hoisted out of the per-forward path."""
    k = eig_vals.shape[0]
    ep = _round_up(e, 128)
    m_blocks = m_phi.reshape(k, e, e) * (eig_vals ** 0.25)[:, None, None]
    m_blocks = jnp.pad(m_blocks, ((0, 0), (0, ep - e), (0, ep - e)))
    return m_blocks.reshape(k * ep, ep).astype(jnp.bfloat16)


# ------------------------------------ helpers ------------------------------------

def _pad_last(x: jnp.ndarray, to: int) -> jnp.ndarray:
    pad = to - x.shape[-1]
    if pad == 0:
        return x
    cfg = [(0, 0)] * (x.ndim - 1) + [(0, pad)]
    return jnp.pad(x, cfg)


def layer_norm(x, gamma, beta, eps=1e-5):
    mu = jnp.mean(x, axis=-1, keepdims=True)
    xc = x - mu
    var = jnp.mean(xc * xc, axis=-1, keepdims=True)
    return xc * jax.lax.rsqrt(var + eps) * gamma + beta


def _gelu_tanh(x):
    # TODO(synk): PyTorch nn.GELU() default is the exact erf form; the tanh approximation
    # is used here (EUP-friendly, guaranteed to lower in Mosaic).
    return 0.5 * x * (1.0 + jnp.tanh(0.7978845608028654 * (x + 0.044715 * x * x * x)))


# --------------------------------- STU Pallas kernel ---------------------------------

def _stu_kernel(t_ref, u_ref, m_ref, xres_ref, o_ref, xs_ref, *,
                batch, ep, num_eigh, tl_r):
    # 1) Causal conv: ALL eigenvectors (stacked along M) and all batches (folded into N)
    #    in ONE bf16 MXU dot with f32 accumulation:
    #      (K*TL, Lp) bf16 @ (Lp, B*Ep) bf16 -> (K*TL, B*Ep) f32.
    x_all = jnp.dot(t_ref[0], u_ref[...],
                    preferred_element_type=jnp.float32).astype(jnp.bfloat16)
    m = m_ref[...]                                             # (K*Ep, Ep) bf16, resident

    for b in range(batch):
        # 2) Re-stack this batch's K per-eigenvector blocks along the contraction dim.
        #    Static, (8,128)-aligned copies into a small VMEM staging buffer.
        for k in range(num_eigh):
            xs_ref[:, k * ep:(k + 1) * ep] = x_all[k * tl_r:(k + 1) * tl_r,
                                                   b * ep:(b + 1) * ep]
        # 3) Projection: one deep (TL, K*Ep) @ (K*Ep, Ep) bf16 dot (contraction K*Ep).
        proj = jnp.dot(xs_ref[...], m, preferred_element_type=jnp.float32)
        # 4) Fused STU residual, written directly in natural (B, L, Ep) layout.
        o_ref[b] = xres_ref[b] + proj


def stu_forward(x, u_norm, t_bank, m_stacked):
    """x, u_norm: (B, L, E);  t_bank: (num_tiles, K*TL, Lp) bf16;  m_stacked: (K*Ep, Ep) bf16.
    Returns x + STU(u_norm), shape (B, L, E), f32."""
    b, l, e = x.shape
    nt, ktl, lp = t_bank.shape
    ep = m_stacked.shape[1]
    k_num = m_stacked.shape[0] // ep
    tl_r = ktl // k_num
    assert nt * tl_r == lp and ep >= e

    # LN output: pad (E->Ep, L->Lp), cast bf16, fold batch into the matmul N dimension.
    # This is the only wrapper-side layout op left (small, bf16, fuses with the LN).
    u_p = jnp.pad(_pad_last(u_norm, ep), ((0, 0), (0, lp - l), (0, 0))).astype(jnp.bfloat16)
    u_f = u_p.transpose(1, 0, 2).reshape(lp, b * ep)
    # Residual stays in natural (B, Lp, Ep) layout; read/written directly by the kernel.
    x_p = jnp.pad(_pad_last(x.astype(jnp.float32), ep), ((0, 0), (0, lp - l), (0, 0)))

    kernel = functools.partial(_stu_kernel, batch=b, ep=ep, num_eigh=k_num, tl_r=tl_r)

    out = pl.pallas_call(
        kernel,
        out_shape=jax.ShapeDtypeStruct((b, lp, ep), jnp.float32),
        grid_spec=pltpu.PrefetchScalarGridSpec(
            num_scalar_prefetch=0,
            grid=(nt,),                                   # >= 2 row tiles keeps both v7x TCs busy
            in_specs=[
                # Pre-stacked T row-tile: one DMA per grid step, used by a single big dot.
                pl.BlockSpec((1, ktl, lp), lambda ri: (ri, 0, 0)),
                # Folded LN output, constant block index -> resident in VMEM (single DMA).
                pl.BlockSpec((lp, b * ep), lambda ri: (0, 0)),
                # Scaled / stacked m_phi, resident.
                pl.BlockSpec((k_num * ep, ep), lambda ri: (0, 0)),
                # Residual rows in natural (B, L, Ep) layout.
                pl.BlockSpec((b, tl_r, ep), lambda ri: (0, ri, 0)),
            ],
            out_specs=pl.BlockSpec((b, tl_r, ep), lambda ri: (0, ri, 0)),
            scratch_shapes=[pltpu.VMEM((tl_r, k_num * ep), jnp.bfloat16)],  # lane-stacking buffer
        ),
        compiler_params=pltpu.CompilerParams(
            dimension_semantics=("parallel",),
            vmem_limit_bytes=48 * 1024 * 1024,            # safe on v7x (64 MiB physical)
        ),
    )(t_bank, u_f, m_stacked, x_p)

    return out[:, :l, :e]


# ----------------------------- fused LN + FFN + residual -----------------------------

def _ln_ffn_kernel(x_ref, g_ref, be_ref, w1_ref, b1_ref, w2_ref, b2_ref, o_ref):
    x = x_ref[...]                                        # (TR, E) f32
    mu = jnp.mean(x, axis=-1, keepdims=True)
    xc = x - mu
    var = jnp.mean(xc * xc, axis=-1, keepdims=True)
    xn = xc * jax.lax.rsqrt(var + 1e-5)
    h = (xn * g_ref[...] + be_ref[...]).astype(jnp.bfloat16)            # bf16 MXU operand
    a = jnp.dot(h, w1_ref[...], preferred_element_type=jnp.float32) + b1_ref[...]
    a = _gelu_tanh(a).astype(jnp.bfloat16)                              # bf16 MXU operand
    y = jnp.dot(a, w2_ref[...], preferred_element_type=jnp.float32) + b2_ref[...]
    # TODO(synk): nn.Dropout is identity at inference; train-mode dropout not implemented.
    o_ref[...] = x + y


def ln_ffn_forward(x, gamma, beta, w_fc_bf16, b_fc, w_proj_bf16, b_proj, *, row_tile=256):
    b, l, e = x.shape
    h = w_fc_bf16.shape[1]
    rows = b * l
    rows_p = _round_up(rows, row_tile)                    # pad instead of giant-block fallback
    xr = x.reshape(rows, e)
    if rows_p != rows:
        xr = jnp.pad(xr, ((0, rows_p - rows), (0, 0)))    # padded rows discarded below
    tr = row_tile

    out = pl.pallas_call(
        _ln_ffn_kernel,
        out_shape=jax.ShapeDtypeStruct((rows_p, e), jnp.float32),
        grid_spec=pltpu.PrefetchScalarGridSpec(
            num_scalar_prefetch=0,
            grid=(rows_p // tr,),
            in_specs=[
                pl.BlockSpec((tr, e), lambda i: (i, 0)),
                pl.BlockSpec((1, e), lambda i: (0, 0)),
                pl.BlockSpec((1, e), lambda i: (0, 0)),
                # Resident bf16 weights.  TODO(synk): add an H-tile grid axis at real sizes.
                pl.BlockSpec((e, h), lambda i: (0, 0)),
                pl.BlockSpec((1, h), lambda i: (0, 0)),
                pl.BlockSpec((h, e), lambda i: (0, 0)),
                pl.BlockSpec((1, e), lambda i: (0, 0)),
            ],
            out_specs=pl.BlockSpec((tr, e), lambda i: (i, 0)),
        ),
        compiler_params=pltpu.CompilerParams(
            dimension_semantics=("parallel",),
            vmem_limit_bytes=48 * 1024 * 1024,
        ),
    )(xr, gamma.reshape(1, e), beta.reshape(1, e),
      w_fc_bf16, b_fc.reshape(1, h), w_proj_bf16, b_proj.reshape(1, e))
    return out[:rows].reshape(b, l, e)


# ----------------------------------- full block -----------------------------------

def stu_block_forward(x, t_bank, m_stacked, w_fc_bf16, w_proj_bf16, params):
    # ln_1: cheap per-token glue op left to XLA (fuses with the bf16 cast / fold of u).
    u = layer_norm(x, params["ln1_g"], params["ln1_b"])
    y = stu_forward(x, u, t_bank, m_stacked)                            # x + STU(LN1(x))
    return ln_ffn_forward(y, params["ln2_g"], params["ln2_b"],
                          w_fc_bf16, params["b_fc"],
                          w_proj_bf16, params["b_proj"])                # y + FFN(LN2(y))


# ------------------------------- pure-JAX reference -------------------------------
# Mirrors the kernel's bf16 operand choices so the self-test isolates kernel correctness.

def stu_block_reference(x, toe_bf16, m_stacked, w_fc_bf16, w_proj_bf16, params):
    b, l, e = x.shape
    ep = m_stacked.shape[1]
    k = m_stacked.shape[0] // ep
    u = layer_norm(x, params["ln1_g"], params["ln1_b"]).astype(jnp.bfloat16)
    xt = jnp.einsum("kts,bsd->bktd", toe_bf16, u,
                    preferred_element_type=jnp.float32).astype(jnp.bfloat16)
    m_blocks = m_stacked.reshape(k, ep, ep)[:, :e, :e]
    delta = jnp.einsum("bktd,kde->bte", xt, m_blocks, preferred_element_type=jnp.float32)
    y = x + delta
    z = layer_norm(y, params["ln2_g"], params["ln2_b"]).astype(jnp.bfloat16)
    a = jnp.dot(z, w_fc_bf16, preferred_element_type=jnp.float32) + params["b_fc"]
    a = _gelu_tanh(a).astype(jnp.bfloat16)
    f = jnp.dot(a, w_proj_bf16, preferred_element_type=jnp.float32) + params["b_proj"]
    return y + f


# -------------------------------------- main --------------------------------------

if __name__ == "__main__":
    # Small config: n_embd=128 (lane-dense), input_len=256, num_eigh=8, batch=2, scale=2.
    B, L, E, K, SCALE = 2, 256, 128, 8, 2
    H = SCALE * E

    key = jax.random.PRNGKey(0)
    ks = jax.random.split(key, 10)
    x = jax.random.normal(ks[0], (B, L, E), dtype=jnp.float32)
    params = {
        "ln1_g": 1.0 + 0.1 * jax.random.normal(ks[1], (E,), jnp.float32),
        "ln1_b": 0.1 * jax.random.normal(ks[2], (E,), jnp.float32),
        "m_phi": 0.02 * jax.random.normal(ks[3], (E * K, E), jnp.float32),
        "ln2_g": 1.0 + 0.1 * jax.random.normal(ks[4], (E,), jnp.float32),
        "ln2_b": 0.1 * jax.random.normal(ks[5], (E,), jnp.float32),
        "w_fc": 0.02 * jax.random.normal(ks[6], (E, H), jnp.float32),
        "b_fc": 0.01 * jax.random.normal(ks[7], (H,), jnp.float32),
        "w_proj": 0.02 * jax.random.normal(ks[8], (H, E), jnp.float32),
        "b_proj": 0.01 * jax.random.normal(ks[9], (E,), jnp.float32),
    }

    # Per-model precompute (hoisted out of the forward path): Hankel eigh in f64 on host,
    # Toeplitz bank pre-stacked per row tile, eig_vals**0.25 folded into bf16 m_phi blocks,
    # bf16 FFN weights.
    eig_vals, eig_vecs_np = get_top_hankel_eigh(L, K)
    toe_np = build_causal_toeplitz_np(eig_vecs_np)                # (K, L, L) f32
    # row_tile=128 -> 2 row tiles (one per v7x TensorCore); on single-TC v5e/v6e the
    # row_tile may be raised to L for one grid step / full-height MXU.
    t_bank = build_toeplitz_bank(toe_np, row_tile=128)            # (2, K*128, 256) bf16
    m_stacked = build_scaled_mphi(params["m_phi"], eig_vals, E)   # (K*128, 128) bf16
    toe_bf16 = jnp.asarray(toe_np, jnp.bfloat16)                  # reference only
    w_fc_bf16 = params["w_fc"].astype(jnp.bfloat16)
    w_proj_bf16 = params["w_proj"].astype(jnp.bfloat16)

    fwd = jax.jit(stu_block_forward)
    out = jax.block_until_ready(fwd(x, t_bank, m_stacked, w_fc_bf16, w_proj_bf16, params))

    ref = stu_block_reference(x, toe_bf16, m_stacked, w_fc_bf16, w_proj_bf16, params)
    assert out.shape == (B, L, E)
    max_err = float(jnp.max(jnp.abs(out - ref)))
    assert jnp.allclose(out, ref, atol=2e-3, rtol=2e-3), f"max abs err = {max_err}"
    print("KERNEL_OK")
</pallas_src>

<mosaic_0001>
module attributes {stable_mosaic.version = 11 : i64} {
  func.func @_stu_kernel(%arg0: i32, %arg1: memref<1x1024x256xbf16, #tpu.memory_space<vmem>>, %arg2: memref<256x256xbf16, #tpu.memory_space<vmem>>, %arg3: memref<1024x128xbf16, #tpu.memory_space<vmem>>, %arg4: memref<2x128x128xf32, #tpu.memory_space<vmem>>, %arg5: memref<2x128x128xf32, #tpu.memory_space<vmem>>, %arg6: memref<128x1024xbf16, #tpu.memory_space<vmem>>) attributes {dimension_semantics = [#tpu.dimension_semantics<parallel>], iteration_bounds = array<i64: 2>, scalar_prefetch = 0 : i64, scratch_operands = 1 : i64, tpu.core_type = #tpu.core_type<tc>, window_params = [{transform_indices = @transform_0, window_bounds = array<i64: 1, 1024, 256>}, {pipeline_mode = #tpu.pipeline_mode<synchronous>, transform_indices = @transform_1, window_bounds = array<i64: 256, 256>}, {pipeline_mode = #tpu.pipeline_mode<synchronous>, transform_indices = @transform_2, window_bounds = array<i64: 1024, 128>}, {transform_indices = @transform_3, window_bounds = array<i64: 2, 128, 128>}, {transform_indices = @transform_4, window_bounds = array<i64: 2, 128, 128>}]} {
    %c0 = arith.constant 0 : index
    %c0_0 = arith.constant 0 : index
    %c0_1 = arith.constant 0 : index
    %0 = vector.load %arg1[%c0, %c0_0, %c0_1] : memref<1x1024x256xbf16, #tpu.memory_space<vmem>>, vector<1x1024x256xbf16>
    %1 = vector.shape_cast %0 : vector<1x1024x256xbf16> to vector<1024x256xbf16>
    %c0_2 = arith.constant 0 : index
    %c0_3 = arith.constant 0 : index
    %2 = vector.load %arg2[%c0_2, %c0_3] : memref<256x256xbf16, #tpu.memory_space<vmem>>, vector<256x256xbf16>
    %cst = arith.constant dense<0.000000e+00> : vector<1024x256xf32>
    %3 = tpu.matmul %1, %2, %cst {dimension_numbers = #tpu.dot_dimension_numbers<[1], [0], [0], [1], [0, 0, 1, 1], [], []>} : vector<1024x256xbf16>, vector<256x256xbf16>, vector<1024x256xf32> -> vector<1024x256xf32>
    %4 = arith.truncf %3 : vector<1024x256xf32> to vector<1024x256xbf16>
    %c0_4 = arith.constant 0 : index
    %c0_5 = arith.constant 0 : index
    %5 = vector.load %arg3[%c0_4, %c0_5] : memref<1024x128xbf16, #tpu.memory_space<vmem>>, vector<1024x128xbf16>
    %6 = vector.extract_strided_slice %4 {offsets = [0, 0], sizes = [128, 128], strides = [1, 1]} : vector<1024x256xbf16> to vector<128x128xbf16>
    %c0_6 = arith.constant 0 : index
    %c0_7 = arith.constant 0 : index
    %7 = vector.load %arg6[%c0_6, %c0_7] : memref<128x1024xbf16, #tpu.memory_space<vmem>>, vector<128x128xbf16>
    tpu.vector_store %arg6[%c0_6, %c0_7], %6 {strides = array<i32>} : memref<128x1024xbf16, #tpu.memory_space<vmem>>, vector<128x128xbf16>,
    %8 = vector.extract_strided_slice %4 {offsets = [128, 0], sizes = [128, 128], strides = [1, 1]} : vector<1024x256xbf16> to vector<128x128xbf16>
    %c0_8 = arith.constant 0 : index
    %c128 = arith.constant 128 : index
    %9 = vector.load %arg6[%c0_8, %c128] : memref<128x1024xbf16, #tpu.memory_space<vmem>>, vector<128x128xbf16>
    tpu.vector_store %arg6[%c0_8, %c128], %8 {strides = array<i32>} : memref<128x1024xbf16, #tpu.memory_space<vmem>>, vector<128x128xbf16>,
    %10 = vector.extract_strided_slice %4 {offsets = [256, 0], sizes = [128, 128], strides = [1, 1]} : vector<1024x256xbf16> to vector<128x128xbf16>
    %c0_9 = arith.constant 0 : index
    %c256 = arith.constant 256 : index
    %11 = vector.load %arg6[%c0_9, %c256] : memref<128x1024xbf16, #tpu.memory_space<vmem>>, vector<128x128xbf16>
    tpu.vector_store %arg6[%c0_9, %c256], %10 {strides = array<i32>} : memref<128x1024xbf16, #tpu.memory_space<vmem>>, vector<128x128xbf16>,
    %12 = vector.extract_strided_slice %4 {offsets = [384, 0], sizes = [128, 128], strides = [1, 1]} : vector<1024x256xbf16> to vector<128x128xbf16>
    %c0_10 = arith.constant 0 : index
    %c384 = arith.constant 384 : index
    %13 = vector.load %arg6[%c0_10, %c384] : memref<128x1024xbf16, #tpu.memory_space<vmem>>, vector<128x128xbf16>
    tpu.vector_store %arg6[%c0_10, %c384], %12 {strides = array<i32>} : memref<128x1024xbf16, #tpu.memory_space<vmem>>, vector<128x128xbf16>,
    %14 = vector.extract_strided_slice %4 {offsets = [512, 0], sizes = [128, 128], strides = [1, 1]} : vector<1024x256xbf16> to vector<128x128xbf16>
    %c0_11 = arith.constant 0 : index
    %c512 = arith.constant 512 : index
    %15 = vector.load %arg6[%c0_11, %c512] : memref<128x1024xbf16, #tpu.memory_space<vmem>>, vector<128x128xbf16>
    tpu.vector_store %arg6[%c0_11, %c512], %14 {strides = array<i32>} : memref<128x1024xbf16, #tpu.memory_space<vmem>>, vector<128x128xbf16>,
    %16 = vector.extract_strided_slice %4 {offsets = [640, 0], sizes = [128, 128], strides = [1, 1]} : vector<1024x256xbf16> to vector<128x128xbf16>
    %c0_12 = arith.constant 0 : index
    %c640 = arith.constant 640 : index
    %17 = vector.load %arg6[%c0_12, %c640] : memref<128x1024xbf16, #tpu.memory_space<vmem>>, vector<128x128xbf16>
    tpu.vector_store %arg6[%c0_12, %c640], %16 {strides = array<i32>} : memref<128x1024xbf16, #tpu.memory_space<vmem>>, vector<128x128xbf16>,
    %18 = vector.extract_strided_slice %4 {offsets = [768, 0], sizes = [128, 128], strides = [1, 1]} : vector<1024x256xbf16> to vector<128x128xbf16>
    %c0_13 = arith.constant 0 : index
    %c768 = arith.constant 768 : index
    %19 = vector.load %arg6[%c0_13, %c768] : memref<128x1024xbf16, #tpu.memory_space<vmem>>, vector<128x128xbf16>
    tpu.vector_store %arg6[%c0_13, %c768], %18 {strides = array<i32>} : memref<128x1024xbf16, #tpu.memory_space<vmem>>, vector<128x128xbf16>,
    %20 = vector.extract_strided_slice %4 {offsets = [896, 0], sizes = [128, 128], strides = [1, 1]} : vector<1024x256xbf16> to vector<128x128xbf16>
    %c0_14 = arith.constant 0 : index
    %c896 = arith.constant 896 : index
    %21 = vector.load %arg6[%c0_14, %c896] : memref<128x1024xbf16, #tpu.memory_space<vmem>>, vector<128x128xbf16>
    tpu.vector_store %arg6[%c0_14, %c896], %20 {strides = array<i32>} : memref<128x1024xbf16, #tpu.memory_space<vmem>>, vector<128x128xbf16>,
    %c0_15 = arith.constant 0 : index
    %c0_16 = arith.constant 0 : index
    %22 = vector.load %arg6[%c0_15, %c0_16] : memref<128x1024xbf16, #tpu.memory_space<vmem>>, vector<128x1024xbf16>
    %cst_17 = arith.constant dense<0.000000e+00> : vector<128x128xf32>
    %23 = tpu.matmul %22, %5, %cst_17 {dimension_numbers = #tpu.dot_dimension_numbers<[1], [0], [0], [1], [0, 0, 1, 1], [], []>} : vector<128x1024xbf16>, vector<1024x128xbf16>, vector<128x128xf32> -> vector<128x128xf32>
    %c0_18 = arith.constant 0 : index
    %c0_19 = arith.constant 0 : index
    %c0_20 = arith.constant 0 : index
    %24 = vector.load %arg4[%c0_18, %c0_19, %c0_20] : memref<2x128x128xf32, #tpu.memory_space<vmem>>, vector<1x128x128xf32>
    %25 = vector.shape_cast %24 : vector<1x128x128xf32> to vector<128x128xf32>
    %26 = arith.addf %25, %23 : vector<128x128xf32>
    %c0_21 = arith.constant 0 : index
    %c0_22 = arith.constant 0 : index
    %c0_23 = arith.constant 0 : index
    %27 = vector.load %arg5[%c0_21, %c0_22, %c0_23] : memref<2x128x128xf32, #tpu.memory_space<vmem>>, vector<1x128x128xf32>
    %28 = vector.shape_cast %27 : vector<1x128x128xf32> to vector<128x128xf32>
    %29 = vector.shape_cast %26 : vector<128x128xf32> to vector<1x128x128xf32>
    tpu.vector_store %arg5[%c0_21, %c0_22, %c0_23], %29 {strides = array<i32>} : memref<2x128x128xf32, #tpu.memory_space<vmem>>, vector<1x128x128xf32>,
    %30 = vector.extract_strided_slice %4 {offsets = [0, 128], sizes = [128, 128], strides = [1, 1]} : vector<1024x256xbf16> to vector<128x128xbf16>
    %c0_24 = arith.constant 0 : index
    %c0_25 = arith.constant 0 : index
    %31 = vector.load %arg6[%c0_24, %c0_25] : memref<128x1024xbf16, #tpu.memory_space<vmem>>, vector<128x128xbf16>
    tpu.vector_store %arg6[%c0_24, %c0_25], %30 {strides = array<i32>} : memref<128x1024xbf16, #tpu.memory_space<vmem>>, vector<128x128xbf16>,
    %32 = vector.extract_strided_slice %4 {offsets = [128, 128], sizes = [128, 128], strides = [1, 1]} : vector<1024x256xbf16> to vector<128x128xbf16>
    %c0_26 = arith.constant 0 : index
    %c128_27 = arith.constant 128 : index
    %33 = vector.load %arg6[%c0_26, %c128_27] : memref<128x1024xbf16, #tpu.memory_space<vmem>>, vector<128x128xbf16>
    tpu.vector_store %arg6[%c0_26, %c128_27], %32 {strides = array<i32>} : memref<128x1024xbf16, #tpu.memory_space<vmem>>, vector<128x128xbf16>,
    %34 = vector.extract_strided_slice %4 {offsets = [256, 128], sizes = [128, 128], strides = [1, 1]} : vector<1024x256xbf16> to vector<128x128xbf16>
    %c0_28 = arith.constant 0 : index
    %c256_29 = arith.constant 256 : index
    %35 = vector.load %arg6[%c0_28, %c256_29] : memref<128x1024xbf16, #tpu.memory_space<vmem>>, vector<128x128xbf16>
    tpu.vector_store %arg6[%c0_28, %c256_29], %34 {strides = array<i32>} : memref<128x1024xbf16, #tpu.memory_space<vmem>>, vector<128x128xbf16>,
    %36 = vector.extract_strided_slice %4 {offsets = [384, 128], sizes = [128, 128], strides = [1, 1]} : vector<1024x256xbf16> to vector<128x128xbf16>
    %c0_30 = arith.constant 0 : index
    %c384_31 = arith.constant 384 : index
    %37 = vector.load %arg6[%c0_30, %c384_31] : memref<128x1024xbf16, #tpu.memory_space<vmem>>, vector<128x128xbf16>
    tpu.vector_store %arg6[%c0_30, %c384_31], %36 {strides = array<i32>} : memref<128x1024xbf16, #tpu.memory_space<vmem>>, vector<128x128xbf16>,
    %38 = vector.extract_strided_slice %4 {offsets = [512, 128], sizes = [128, 128], strides = [1, 1]} : vector<1024x256xbf16> to vector<128x128xbf16>
    %c0_32 = arith.constant 0 : index
    %c512_33 = arith.constant 512 : index
    %39 = vector.load %arg6[%c0_32, %c512_33] : memref<128x1024xbf16, #tpu.memory_space<vmem>>, vector<128x128xbf16>
    tpu.vector_store %arg6[%c0_32, %c512_33], %38 {strides = array<i32>} : memref<128x1024xbf16, #tpu.memory_space<vmem>>, vector<128x128xbf16>,
    %40 = vector.extract_strided_slice %4 {offsets = [640, 128], sizes = [128, 128], strides = [1, 1]} : vector<1024x256xbf16> to vector<128x128xbf16>
    %c0_34 = arith.constant 0 : index
    %c640_35 = arith.constant 640 : index
    %41 = vector.load %arg6[%c0_34, %c640_35] : memref<128x1024xbf16, #tpu.memory_space<vmem>>, vector<128x128xbf16>
    tpu.vector_store %arg6[%c0_34, %c640_35], %40 {strides = array<i32>} : memref<128x1024xbf16, #tpu.memory_space<vmem>>, vector<128x128xbf16>,
    %42 = vector.extract_strided_slice %4 {offsets = [768, 128], sizes = [128, 128], strides = [1, 1]} : vector<1024x256xbf16> to vector<128x128xbf16>
    %c0_36 = arith.constant 0 : index
    %c768_37 = arith.constant 768 : index
    %43 = vector.load %arg6[%c0_36, %c768_37] : memref<128x1024xbf16, #tpu.memory_space<vmem>>, vector<128x128xbf16>
    tpu.vector_store %arg6[%c0_36, %c768_37], %42 {strides = array<i32>} : memref<128x1024xbf16, #tpu.memory_space<vmem>>, vector<128x128xbf16>,
    %44 = vector.extract_strided_slice %4 {offsets = [896, 128], sizes = [128, 128], strides = [1, 1]} : vector<1024x256xbf16> to vector<128x128xbf16>
    %c0_38 = arith.constant 0 : index
    %c896_39 = arith.constant 896 : index
    %45 = vector.load %arg6[%c0_38, %c896_39] : memref<128x1024xbf16, #tpu.memory_space<vmem>>, vector<128x128xbf16>
    tpu.vector_store %arg6[%c0_38, %c896_39], %44 {strides = array<i32>} : memref<128x1024xbf16, #tpu.memory_space<vmem>>, vector<128x128xbf16>,
    %c0_40 = arith.constant 0 : index
    %c0_41 = arith.constant 0 : index
    %46 = vector.load %arg6[%c0_40, %c0_41] : memref<128x1024xbf16, #tpu.memory_space<vmem>>, vector<128x1024xbf16>
    %cst_42 = arith.constant dense<0.000000e+00> : vector<128x128xf32>
    %47 = tpu.matmul %46, %5, %cst_42 {dimension_numbers = #tpu.dot_dimension_numbers<[1], [0], [0], [1], [0, 0, 1, 1], [], []>} : vector<128x1024xbf16>, vector<1024x128xbf16>, vector<128x128xf32> -> vector<128x128xf32>
    %c1 = arith.constant 1 : index
    %c0_43 = arith.constant 0 : index
    %c0_44 = arith.constant 0 : index
    %48 = vector.load %arg4[%c1, %c0_43, %c0_44] : memref<2x128x128xf32, #tpu.memory_space<vmem>>, vector<1x128x128xf32>
    %49 = vector.shape_cast %48 : vector<1x128x128xf32> to vector<128x128xf32>
    %50 = arith.addf %49, %47 : vector<128x128xf32>
    %c1_45 = arith.constant 1 : index
    %c0_46 = arith.constant 0 : index
    %c0_47 = arith.constant 0 : index
    %51 = vector.load %arg5[%c1_45, %c0_46, %c0_47] : memref<2x128x128xf32, #tpu.memory_space<vmem>>, vector<1x128x128xf32>
    %52 = vector.shape_cast %51 : vector<1x128x128xf32> to vector<128x128xf32>
    %53 = vector.shape_cast %50 : vector<128x128xf32> to vector<1x128x128xf32>
    tpu.vector_store %arg5[%c1_45, %c0_46, %c0_47], %53 {strides = array<i32>} : memref<2x128x128xf32, #tpu.memory_space<vmem>>, vector<1x128x128xf32>,
    return
  }
  func.func @transform_0(%arg0: i32) -> (i32, i32, i32) {
    %c0_i32 = arith.constant 0 : i32
    %c0_i32_0 = arith.constant 0 : i32
    %c0_i32_1 = arith.constant 0 : i32
    return %arg0, %c0_i32, %c0_i32_0 : i32, i32, i32
  }
  func.func @transform_1(%arg0: i32) -> (i32, i32) {
    %c0_i32 = arith.constant 0 : i32
    %c0_i32_0 = arith.constant 0 : i32
    %c0_i32_1 = arith.constant 0 : i32
    return %c0_i32, %c0_i32_0 : i32, i32
  }
  func.func @transform_2(%arg0: i32) -> (i32, i32) {
    %c0_i32 = arith.constant 0 : i32
    %c0_i32_0 = arith.constant 0 : i32
    %c0_i32_1 = arith.constant 0 : i32
    return %c0_i32, %c0_i32_0 : i32, i32
  }
  func.func @transform_3(%arg0: i32) -> (i32, i32, i32) {
    %c0_i32 = arith.constant 0 : i32
    %c0_i32_0 = arith.constant 0 : i32
    %c0_i32_1 = arith.constant 0 : i32
    return %c0_i32, %arg0, %c0_i32_0 : i32, i32, i32
  }
  func.func @transform_4(%arg0: i32) -> (i32, i32, i32) {
    %c0_i32 = arith.constant 0 : i32
    %c0_i32_0 = arith.constant 0 : i32
    %c0_i32_1 = arith.constant 0 : i32
    return %c0_i32, %arg0, %c0_i32_0 : i32, i32, i32
  }
}

module attributes {stable_mosaic.version = 11 : i64} {
  func.func @_ln_ffn_kernel(%arg0: i32, %arg1: memref<256x128xf32, #tpu.memory_space<vmem>>, %arg2: memref<1x128xf32, #tpu.memory_space<vmem>>, %arg3: memref<1x128xf32, #tpu.memory_space<vmem>>, %arg4: memref<128x256xbf16, #tpu.memory_space<vmem>>, %arg5: memref<1x256xf32, #tpu.memory_space<vmem>>, %arg6: memref<256x128xbf16, #tpu.memory_space<vmem>>, %arg7: memref<1x128xf32, #tpu.memory_space<vmem>>, %arg8: memref<256x128xf32, #tpu.memory_space<vmem>>) attributes {dimension_semantics = [#tpu.dimension_semantics<parallel>], iteration_bounds = array<i64: 2>, scalar_prefetch = 0 : i64, scratch_operands = 0 : i64, tpu.core_type = #tpu.core_type<tc>, window_params = [{transform_indices = @transform_0, window_bounds = array<i64: 256, 128>}, {pipeline_mode = #tpu.pipeline_mode<synchronous>, transform_indices = @transform_1, window_bounds = array<i64: 1, 128>}, {pipeline_mode = #tpu.pipeline_mode<synchronous>, transform_indices = @transform_2, window_bounds = array<i64: 1, 128>}, {pipeline_mode = #tpu.pipeline_mode<synchronous>, transform_indices = @transform_3, window_bounds = array<i64: 128, 256>}, {pipeline_mode = #tpu.pipeline_mode<synchronous>, transform_indices = @transform_4, window_bounds = array<i64: 1, 256>}, {pipeline_mode = #tpu.pipeline_mode<synchronous>, transform_indices = @transform_5, window_bounds = array<i64: 256, 128>}, {pipeline_mode = #tpu.pipeline_mode<synchronous>, transform_indices = @transform_6, window_bounds = array<i64: 1, 128>}, {transform_indices = @transform_7, window_bounds = array<i64: 256, 128>}]} {
    %c0 = arith.constant 0 : index
    %c0_0 = arith.constant 0 : index
    %0 = vector.load %arg1[%c0, %c0_0] : memref<256x128xf32, #tpu.memory_space<vmem>>, vector<256x128xf32>
    %cst = arith.constant dense<0.000000e+00> : vector<256xf32>
    %1 = vector.multi_reduction <add>, %0, %cst [1] : vector<256x128xf32> to vector<256xf32>
    %2 = vector.shape_cast %1 : vector<256xf32> to vector<256x1xf32>
    %cst_1 = arith.constant 1.280000e+02 : f32
    %3 = vector.broadcast %cst_1 : f32 to vector<256x1xf32>
    %4 = arith.divf %2, %3 : vector<256x1xf32>
    %5 = vector.broadcast %4 : vector<256x1xf32> to vector<256x128xf32>
    %6 = arith.subf %0, %5 : vector<256x128xf32>
    %7 = arith.mulf %6, %6 : vector<256x128xf32>
    %cst_2 = arith.constant dense<0.000000e+00> : vector<256xf32>
    %8 = vector.multi_reduction <add>, %7, %cst_2 [1] : vector<256x128xf32> to vector<256xf32>
    %9 = vector.shape_cast %8 : vector<256xf32> to vector<256x1xf32>
    %cst_3 = arith.constant 1.280000e+02 : f32
    %10 = vector.broadcast %cst_3 : f32 to vector<256x1xf32>
    %11 = arith.divf %9, %10 : vector<256x1xf32>
    %cst_4 = arith.constant 9.99999974E-6 : f32
    %12 = vector.broadcast %cst_4 : f32 to vector<256x1xf32>
    %13 = arith.addf %11, %12 : vector<256x1xf32>
    %14 = math.rsqrt %13 : vector<256x1xf32>
    %15 = vector.broadcast %14 : vector<256x1xf32> to vector<256x128xf32>
    %16 = arith.mulf %6, %15 : vector<256x128xf32>
    %c0_5 = arith.constant 0 : index
    %c0_6 = arith.constant 0 : index
    %17 = vector.load %arg2[%c0_5, %c0_6] : memref<1x128xf32, #tpu.memory_space<vmem>>, vector<1x128xf32>
    %18 = vector.broadcast %17 : vector<1x128xf32> to vector<256x128xf32>
    %19 = arith.mulf %16, %18 : vector<256x128xf32>
    %c0_7 = arith.constant 0 : index
    %c0_8 = arith.constant 0 : index
    %20 = vector.load %arg3[%c0_7, %c0_8] : memref<1x128xf32, #tpu.memory_space<vmem>>, vector<1x128xf32>
    %21 = vector.broadcast %20 : vector<1x128xf32> to vector<256x128xf32>
    %22 = arith.addf %19, %21 : vector<256x128xf32>
    %23 = arith.truncf %22 : vector<256x128xf32> to vector<256x128xbf16>
    %c0_9 = arith.constant 0 : index
    %c0_10 = arith.constant 0 : index
    %24 = vector.load %arg4[%c0_9, %c0_10] : memref<128x256xbf16, #tpu.memory_space<vmem>>, vector<128x256xbf16>
    %cst_11 = arith.constant dense<0.000000e+00> : vector<256x256xf32>
    %25 = tpu.matmul %23, %24, %cst_11 {dimension_numbers = #tpu.dot_dimension_numbers<[1], [0], [0], [1], [0, 0, 1, 1], [], []>} : vector<256x128xbf16>, vector<128x256xbf16>, vector<256x256xf32> -> vector<256x256xf32>
    %c0_12 = arith.constant 0 : index
    %c0_13 = arith.constant 0 : index
    %26 = vector.load %arg5[%c0_12, %c0_13] : memref<1x256xf32, #tpu.memory_space<vmem>>, vector<1x256xf32>
    %27 = vector.broadcast %26 : vector<1x256xf32> to vector<256x256xf32>
    %28 = arith.addf %25, %27 : vector<256x256xf32>
    %cst_14 = arith.constant 5.000000e-01 : f32
    %29 = vector.broadcast %cst_14 : f32 to vector<256x256xf32>
    %30 = arith.mulf %29, %28 : vector<256x256xf32>
    %cst_15 = arith.constant 4.471500e-02 : f32
    %31 = vector.broadcast %cst_15 : f32 to vector<256x256xf32>
    %32 = arith.mulf %31, %28 : vector<256x256xf32>
    %33 = arith.mulf %32, %28 : vector<256x256xf32>
    %34 = arith.mulf %33, %28 : vector<256x256xf32>
    %35 = arith.addf %28, %34 : vector<256x256xf32>
    %cst_16 = arith.constant 0.797884583 : f32
    %36 = vector.broadcast %cst_16 : f32 to vector<256x256xf32>
    %37 = arith.mulf %36, %35 : vector<256x256xf32>
    %38 = math.tanh %37 : vector<256x256xf32>
    %cst_17 = arith.constant 1.000000e+00 : f32
    %39 = vector.broadcast %cst_17 : f32 to vector<256x256xf32>
    %40 = arith.addf %39, %38 : vector<256x256xf32>
    %41 = arith.mulf %30, %40 : vector<256x256xf32>
    %42 = arith.truncf %41 : vector<256x256xf32> to vector<256x256xbf16>
    %c0_18 = arith.constant 0 : index
    %c0_19 = arith.constant 0 : index
    %43 = vector.load %arg6[%c0_18, %c0_19] : memref<256x128xbf16, #tpu.memory_space<vmem>>, vector<256x128xbf16>
    %cst_20 = arith.constant dense<0.000000e+00> : vector<256x128xf32>
    %44 = tpu.matmul %42, %43, %cst_20 {dimension_numbers = #tpu.dot_dimension_numbers<[1], [0], [0], [1], [0, 0, 1, 1], [], []>} : vector<256x256xbf16>, vector<256x128xbf16>, vector<256x128xf32> -> vector<256x128xf32>
    %c0_21 = arith.constant 0 : index
    %c0_22 = arith.constant 0 : index
    %45 = vector.load %arg7[%c0_21, %c0_22] : memref<1x128xf32, #tpu.memory_space<vmem>>, vector<1x128xf32>
    %46 = vector.broadcast %45 : vector<1x128xf32> to vector<256x128xf32>
    %47 = arith.addf %44, %46 : vector<256x128xf32>
    %48 = arith.addf %0, %47 : vector<256x128xf32>
    %c0_23 = arith.constant 0 : index
    %c0_24 = arith.constant 0 : index
    %49 = vector.load %arg8[%c0_23, %c0_24] : memref<256x128xf32, #tpu.memory_space<vmem>>, vector<256x128xf32>
    tpu.vector_store %arg8[%c0_23, %c0_24], %48 {strides = array<i32>} : memref<256x128xf32, #tpu.memory_space<vmem>>, vector<256x128xf32>,
    return
  }
  func.func @transform_0(%arg0: i32) -> (i32, i32) {
    %c0_i32 = arith.constant 0 : i32
    %c0_i32_0 = arith.constant 0 : i32
    return %arg0, %c0_i32 : i32, i32
  }
  func.func @transform_1(%arg0: i32) -> (i32, i32) {
    %c0_i32 = arith.constant 0 : i32
    %c0_i32_0 = arith.constant 0 : i32
    %c0_i32_1 = arith.constant 0 : i32
    return %c0_i32, %c0_i32_0 : i32, i32
  }
  func.func @transform_2(%arg0: i32) -> (i32, i32) {
    %c0_i32 = arith.constant 0 : i32
    %c0_i32_0 = arith.constant 0 : i32
    %c0_i32_1 = arith.constant 0 : i32
    return %c0_i32, %c0_i32_0 : i32, i32
  }
  func.func @transform_3(%arg0: i32) -> (i32, i32) {
    %c0_i32 = arith.constant 0 : i32
    %c0_i32_0 = arith.constant 0 : i32
    %c0_i32_1 = arith.constant 0 : i32
    return %c0_i32, %c0_i32_0 : i32, i32
  }
  func.func @transform_4(%arg0: i32) -> (i32, i32) {
    %c0_i32 = arith.constant 0 : i32
    %c0_i32_0 = arith.constant 0 : i32
    %c0_i32_1 = arith.constant 0 : i32
    return %c0_i32, %c0_i32_0 : i32, i32
  }
  func.func @transform_5(%arg0: i32) -> (i32, i32) {
    %c0_i32 = arith.constant 0 : i32
    %c0_i32_0 = arith.constant 0 : i32
    %c0_i32_1 = arith.constant 0 : i32
    return %c0_i32, %c0_i32_0 : i32, i32
  }
  func.func @transform_6(%arg0: i32) -> (i32, i32) {
    %c0_i32 = arith.constant 0 : i32
    %c0_i32_0 = arith.constant 0 : i32
    %c0_i32_1 = arith.constant 0 : i32
    return %c0_i32, %c0_i32_0 : i32, i32
  }
  func.func @transform_7(%arg0: i32) -> (i32, i32) {
    %c0_i32 = arith.constant 0 : i32
    %c0_i32_0 = arith.constant 0 : i32
    return %arg0, %c0_i32 : i32, i32
  }
}

</mosaic_0001>

<llo_original>
// kernel: stu_block_forward.3
$region0: #{stu_block_forward.3}
  #allocation0 [shape = 'u32[]', space=smem, size = 0x4, offset = 0x4, fixed_abs, tag = 'smem constant byte address 0x4 - core index']
  #allocation1 [shape = 'u32[144,128]{1,0:T(1,128)}', space=vmem, size = 0x12000, scoped, tag = 'internal scratch']
  %s0 = inlined_call_operand.vmem [shape: f32[512,128], index: 0, kind: input, shape index: {}]
  %s1 = inlined_call_operand.vmem [shape: f32[1,128], index: 1, kind: input, shape index: {}]
  %s2 = inlined_call_operand.vmem [shape: f32[1,128], index: 2, kind: input, shape index: {}]
  %s3 = inlined_call_operand.vmem [shape: bf16[128,256], index: 3, kind: input, shape index: {}]
  %s4 = inlined_call_operand.vmem [shape: f32[1,256], index: 4, kind: input, shape index: {}]
  %s5 = inlined_call_operand.vmem [shape: bf16[256,128], index: 5, kind: input, shape index: {}]
  %s6 = inlined_call_operand.vmem [shape: f32[1,128], index: 6, kind: input, shape index: {}]
  %s7 = inlined_call_operand.hbm [shape: f32[512,128], index: 7, kind: output, shape index: {}]
  %s8 = sld [smem:[#allocation0]]
  $region61: #{stu_block_forward.3} parent=0
    _
  %s10 = ssub.s32 1, %s8
  %s11 = scalar_select 0, %s10, %s8
  $region1: #{stu_block_forward.3} parent=0
    #allocation2 [shape = 'u8[262144]{0}', space=vmem, size = 0x40000, scoped, tag = 'output window, operand 0']
    #allocation3 [shape = 's32[2]{0}', space=sflag, size = 0x8, scoped, tag = 'scoped memory for stu_block_forward.3']
    %12 = vsyncpa [#allocation3], 0
    %s13 = scalar_lea.sflag [#allocation3], 1
    %14 = vsyncpa %s13, 0
    loop: start=0, step=1, limit=4
    $region2: #{stu_block_forward.3} parent=1 // loop_pre_header
      _
    $region3: #{stu_block_forward.3} parent=1 // loop_header
      %s16 = sphi 0, %s20
      %p17 = scmp.ge.s32.totalorder %s16, 4
      %s26 = sphi 0, %s28
      %s29 = sphi 0, %s26
      %s30 = sphi 0, %s29
      %s46 = sphi 0, %s30
      %s50 = sphi 0, %s50
      %s52 = sphi 0, %s50
      %s53 = sphi 0, %s52
      %s67 = sphi 0, %s53
      %s71 = sphi 0, %s71
      %s73 = sphi 0, %s71
      %s74 = sphi 0, %s73
      %s88 = sphi 0, %s74
      %s92 = sphi 0, %s92
      %s94 = sphi 0, %s92
      %s95 = sphi 0, %s94
      %s109 = sphi 0, %s95
      %s113 = sphi 0, %s113
      %s115 = sphi 0, %s113
      %s116 = sphi 0, %s115
      %s130 = sphi 0, %s116
      %s134 = sphi 0, %s134
      %s136 = sphi 0, %s134
      %s137 = sphi 0, %s136
      %s151 = sphi 0, %s137
      %s155 = sphi 0, %s155
      %s157 = sphi 0, %s155
      %s158 = sphi 0, %s157
      %s172 = sphi 0, %s158
      %s178 = sphi 0, %s180
      %s181 = sphi 0, %s178
      %s182 = sphi 0, %s181
      %s198 = sphi 0, %s182
    $region4: #{stu_block_forward.3} parent=1 // loop_header_branch
      %19 = sbr.rel (%p17) target = $region8
    $region5: #{stu_block_forward.3} parent=1 // loop_body
      %s21 = ssub.s32 %s16, 1
      %s22 = ssub.s32 %s16, 2
      %s23 = sadd.s32 %s16, 1
      %s24 = ssub.s32 %s16, %s23
      %p25 = scmp.eq.s32.totalorder %s24, 0
      %s27 = sadd.s32 %s26, 1
      %s28 = scalar_select %p25, %s26, %s27
      %p31 = pneg %p25
      %p32 = scmp.eq.s32.totalorder %s16, 1
      %p33 = por %p31, %p32
      %p34 = scmp.ne.s32.totalorder %s26, %s29
      %p35 = scmp.eq.s32.totalorder %s16, 0
      %p36 = por %p34, %p35
      %p37 = scmp.ne.s32.totalorder %s26, %s29
      %p38 = scmp.eq.s32.totalorder %s21, 1
      %p39 = por %p37, %p38
      %p40 = scmp.ne.s32.totalorder %s29, %s30
      %p41 = scmp.eq.s32.totalorder %s21, 0
      %p42 = por %p40, %p41
      %p43 = scmp.ne.s32.totalorder %s29, %s30
      %p44 = scmp.eq.s32.totalorder %s22, 1
      %p45 = por %p43, %p44
      %p47 = scmp.ne.s32.totalorder %s30, %s46
      %p48 = scmp.eq.s32.totalorder %s22, 0
      %p49 = por %p47, %p48
      %s51 = sadd.s32 %s50, 1
      %p54 = scmp.eq.s32.totalorder %s16, 1
      %p55 = scmp.ne.s32.totalorder %s50, %s52
      %p56 = scmp.eq.s32.totalorder %s16, 0
      %p57 = por %p55, %p56
      %p58 = scmp.ne.s32.totalorder %s50, %s52
      %p59 = scmp.eq.s32.totalorder %s21, 1
      %p60 = por %p58, %p59
      %p61 = scmp.ne.s32.totalorder %s52, %s53
      %p62 = scmp.eq.s32.totalorder %s21, 0
      %p63 = por %p61, %p62
      %p64 = scmp.ne.s32.totalorder %s52, %s53
      %p65 = scmp.eq.s32.totalorder %s22, 1
      %p66 = por %p64, %p65
      %p68 = scmp.ne.s32.totalorder %s53, %s67
      %p69 = scmp.eq.s32.totalorder %s22, 0
      %p70 = por %p68, %p69
      %s72 = sadd.s32 %s71, 1
      %p75 = scmp.eq.s32.totalorder %s16, 1
      %p76 = scmp.ne.s32.totalorder %s71, %s73
      %p77 = scmp.eq.s32.totalorder %s16, 0
      %p78 = por %p76, %p77
      %p79 = scmp.ne.s32.totalorder %s71, %s73
      %p80 = scmp.eq.s32.totalorder %s21, 1
      %p81 = por %p79, %p80
      %p82 = scmp.ne.s32.totalorder %s73, %s74
      %p83 = scmp.eq.s32.totalorder %s21, 0
      %p84 = por %p82, %p83
      %p85 = scmp.ne.s32.totalorder %s73, %s74
      %p86 = scmp.eq.s32.totalorder %s22, 1
      %p87 = por %p85, %p86
      %p89 = scmp.ne.s32.totalorder %s74, %s88
      %p90 = scmp.eq.s32.totalorder %s22, 0
      %p91 = por %p89, %p90
      %s93 = sadd.s32 %s92, 1
      %p96 = scmp.eq.s32.totalorder %s16, 1
      %p97 = scmp.ne.s32.totalorder %s92, %s94
      %p98 = scmp.eq.s32.totalorder %s16, 0
      %p99 = por %p97, %p98
      %p100 = scmp.ne.s32.totalorder %s92, %s94
      %p101 = scmp.eq.s32.totalorder %s21, 1
      %p102 = por %p100, %p101
      %p103 = scmp.ne.s32.totalorder %s94, %s95
      %p104 = scmp.eq.s32.totalorder %s21, 0
      %p105 = por %p103, %p104
      %p106 = scmp.ne.s32.totalorder %s94, %s95
      %p107 = scmp.eq.s32.totalorder %s22, 1
      %p108 = por %p106, %p107
      %p110 = scmp.ne.s32.totalorder %s95, %s109
      %p111 = scmp.eq.s32.totalorder %s22, 0
      %p112 = por %p110, %p111
      %s114 = sadd.s32 %s113, 1
      %p117 = scmp.eq.s32.totalorder %s16, 1
      %p118 = scmp.ne.s32.totalorder %s113, %s115
      %p119 = scmp.eq.s32.totalorder %s16, 0
      %p120 = por %p118, %p119
      %p121 = scmp.ne.s32.totalorder %s113, %s115
      %p122 = scmp.eq.s32.totalorder %s21, 1
      %p123 = por %p121, %p122
      %p124 = scmp.ne.s32.totalorder %s115, %s116
      %p125 = scmp.eq.s32.totalorder %s21, 0
      %p126 = por %p124, %p125
      %p127 = scmp.ne.s32.totalorder %s115, %s116
      %p128 = scmp.eq.s32.totalorder %s22, 1
      %p129 = por %p127, %p128
      %p131 = scmp.ne.s32.totalorder %s116, %s130
      %p132 = scmp.eq.s32.totalorder %s22, 0
      %p133 = por %p131, %p132
      %s135 = sadd.s32 %s134, 1
      %p138 = scmp.eq.s32.totalorder %s16, 1
      %p139 = scmp.ne.s32.totalorder %s134, %s136
      %p140 = scmp.eq.s32.totalorder %s16, 0
      %p141 = por %p139, %p140
      %p142 = scmp.ne.s32.totalorder %s134, %s136
      %p143 = scmp.eq.s32.totalorder %s21, 1
      %p144 = por %p142, %p143
      %p145 = scmp.ne.s32.totalorder %s136, %s137
      %p146 = scmp.eq.s32.totalorder %s21, 0
      %p147 = por %p145, %p146
      %p148 = scmp.ne.s32.totalorder %s136, %s137
      %p149 = scmp.eq.s32.totalorder %s22, 1
      %p150 = por %p148, %p149
      %p152 = scmp.ne.s32.totalorder %s137, %s151
      %p153 = scmp.eq.s32.totalorder %s22, 0
      %p154 = por %p152, %p153
      %s156 = sadd.s32 %s155, 1
      %p159 = scmp.eq.s32.totalorder %s16, 1
      %p160 = scmp.ne.s32.totalorder %s155, %s157
      %p161 = scmp.eq.s32.totalorder %s16, 0
      %p162 = por %p160, %p161
      %p163 = scmp.ne.s32.totalorder %s155, %s157
      %p164 = scmp.eq.s32.totalorder %s21, 1
      %p165 = por %p163, %p164
      %p166 = scmp.ne.s32.totalorder %s157, %s158
      %p167 = scmp.eq.s32.totalorder %s21, 0
      %p168 = por %p166, %p167
      %p169 = scmp.ne.s32.totalorder %s157, %s158
      %p170 = scmp.eq.s32.totalorder %s22, 1
      %p171 = por %p169, %p170
      %p173 = scmp.ne.s32.totalorder %s158, %s172
      %p174 = scmp.eq.s32.totalorder %s22, 0
      %p175 = por %p173, %p174
      %s176 = ssub.s32 %s16, %s23
      %p177 = scmp.eq.s32.totalorder %s176, 0
      %s179 = sadd.s32 %s178, 1
      %s180 = scalar_select %p177, %s178, %s179
      %p183 = pneg %p177
      %p184 = scmp.eq.s32.totalorder %s16, 1
      %p185 = por %p183, %p184
      %p186 = scmp.ne.s32.totalorder %s178, %s181
      %p187 = scmp.eq.s32.totalorder %s16, 0
      %p188 = por %p186, %p187
      %p189 = scmp.ne.s32.totalorder %s178, %s181
      %p190 = scmp.eq.s32.totalorder %s21, 1
      %p191 = por %p189, %p190
      %p192 = scmp.ne.s32.totalorder %s181, %s182
      %p193 = scmp.eq.s32.totalorder %s21, 0
      %p194 = por %p192, %p193
      %p195 = scmp.ne.s32.totalorder %s181, %s182
      %p196 = scmp.eq.s32.totalorder %s22, 1
      %p197 = por %p195, %p196
      %p199 = scmp.ne.s32.totalorder %s182, %s198
      %p200 = scmp.eq.s32.totalorder %s22, 0
      %p201 = por %p199, %p200
      %p202 = scmp.le.s32.totalorder 1, %s16
      %p203 = scmp.lt.s32.totalorder %s16, 3
      %p204 = pnand %p202, %p203
      %p205 = pneg %p204
      // Predicated region
      $region9: #{stu_block_forward.3} parent=5 // pred_check
        _
      $region10: #{stu_block_forward.3} parent=5 // pred_check_branch
        %207 = sbr.rel (%p204) target = $region12
      $region11: #{stu_block_forward.3} parent=5 // pred_region
        %s208 = ssub.s32 %s16, 1
        // Predicated region
        $region13: #{stu_block_forward.3} parent=11 // pred_check
          %p209 = pneg %p63
        $region14: #{stu_block_forward.3} parent=11 // pred_check_branch
          %211 = sbr.rel (%p209) target = $region16
        $region15: #{stu_block_forward.3} parent=11 // pred_region
          _
        $region16: #{stu_block_forward.3} parent=11 // pred_fallthru
          _
        // Predicated region
        $region17: #{stu_block_forward.3} parent=11 // pred_check
          %p212 = pneg %p84
        $region18: #{stu_block_forward.3} parent=11 // pred_check_branch
          %214 = sbr.rel (%p212) target = $region20
        $region19: #{stu_block_forward.3} parent=11 // pred_region
          _
        $region20: #{stu_block_forward.3} parent=11 // pred_fallthru
          _
        // Predicated region
        $region21: #{stu_block_forward.3} parent=11 // pred_check
          %p215 = pneg %p105
        $region22: #{stu_block_forward.3} parent=11 // pred_check_branch
          %217 = sbr.rel (%p215) target = $region24
        $region23: #{stu_block_forward.3} parent=11 // pred_region
          _
        $region24: #{stu_block_forward.3} parent=11 // pred_fallthru
          _
        // Predicated region
        $region25: #{stu_block_forward.3} parent=11 // pred_check
          %p218 = pneg %p126
        $region26: #{stu_block_forward.3} parent=11 // pred_check_branch
          %220 = sbr.rel (%p218) target = $region28
        $region27: #{stu_block_forward.3} parent=11 // pred_region
          _
        $region28: #{stu_block_forward.3} parent=11 // pred_fallthru
          _
        // Predicated region
        $region29: #{stu_block_forward.3} parent=11 // pred_check
          %p221 = pneg %p147
        $region30: #{stu_block_forward.3} parent=11 // pred_check_branch
          %223 = sbr.rel (%p221) target = $region32
        $region31: #{stu_block_forward.3} parent=11 // pred_region
          _
        $region32: #{stu_block_forward.3} parent=11 // pred_fallthru
          _
        // Predicated region
        $region33: #{stu_block_forward.3} parent=11 // pred_check
          %p224 = pneg %p168
        $region34: #{stu_block_forward.3} parent=11 // pred_check_branch
          %226 = sbr.rel (%p224) target = $region36
        $region35: #{stu_block_forward.3} parent=11 // pred_region
          _
        $region36: #{stu_block_forward.3} parent=11 // pred_fallthru
          _
      $region12: #{stu_block_forward.3} parent=5 // pred_fallthru
        _
      %p227 = scmp.lt.s32.totalorder %s16, 2
      // Predicated region
      $region37: #{stu_block_forward.3} parent=5 // pred_check
        %p228 = pneg %p227
      $region38: #{stu_block_forward.3} parent=5 // pred_check_branch
        %230 = sbr.rel (%p228) target = $region40
      $region39: #{stu_block_forward.3} parent=5 // pred_region
        // Predicated region
        $region41: #{stu_block_forward.3} parent=39 // pred_check
          %p231 = pneg %p36
        $region42: #{stu_block_forward.3} parent=39 // pred_check_branch
          %233 = sbr.rel (%p231) target = $region44
        $region43: #{stu_block_forward.3} parent=39 // pred_region
          %s234 = smul.u32 32, %s16
          %p235 = scmp.lt.s32.totalorder %s234, 63
          %s236 = scalar_select %p235, %s234, 63
          %s237 = smul.addr %s236, 8
          %s238 = scalar_lea.vmem %s0, %s237
          %s239 = smul.u32 32, %s16
        $region44: #{stu_block_forward.3} parent=39 // pred_fallthru
          _
      $region40: #{stu_block_forward.3} parent=5 // pred_fallthru
        _
      %p240 = scmp.le.s32.totalorder 1, %s16
      %p241 = scmp.lt.s32.totalorder %s16, 3
      %p242 = pnand %p240, %p241
      %p243 = pneg %p242
      // Predicated region
      $region45: #{stu_block_forward.3} parent=5 // pred_check
        _
      $region46: #{stu_block_forward.3} parent=5 // pred_check_branch
        %245 = sbr.rel (%p242) target = $region48
      $region47: #{stu_block_forward.3} parent=5 // pred_region
        %s246 = ssub.s32 %s16, 1
        %s247 = smul.u32 32, %s21
        %p248 = scmp.lt.s32.totalorder %s247, 63
        %s249 = scalar_select %p248, %s247, 63
        %s250 = smul.addr %s249, 8
        %s251 = scalar_lea.vmem %s0, %s250
        %p252 = pneg %p42
        %p253 = pneg %p39
        %p254 = pneg %p63
        %p255 = pneg %p60
        %p256 = pneg %p84
        %p257 = pneg %p81
        %p258 = pneg %p105
        %p259 = pneg %p102
        %p260 = pneg %p126
        %p261 = pneg %p123
        %p262 = pneg %p147
        %p263 = pneg %p144
        %p264 = pneg %p168
        %p265 = pneg %p165
        %p266 = pneg %p194
        %p267 = pneg %p191
        %s268 = sand.u32 %s181, 1
        %s269 = scalar_lea.sflag [#allocation3], %s268
        %s270 = sand.u32 %s181, 1
        %s271 = smul.addr %s270, 256
        %s272 = scalar_lea.vmem [#allocation2], %s271
        %s273 = smul.u32 32, %s21
        %p274 = scmp.lt.s32.totalorder %s273, 63
        %s275 = scalar_select %p274, %s273, 63
        %s276 = smul.addr %s275, 8
        %s277 = scalar_lea.vmem %s0, %s276
        %s278 = smul.u32 32, %s21
        %s279 = smul.u32 32, %s21
        %v281 = vld [vmem:[%s277] sm:$0xff]
        %v282 = vld [vmem:[%s277 + $0x8] sm:$0xff]
        %v283 = vld [vmem:[%s277 + $0x10] sm:$0xff]
        %v284 = vld [vmem:[%s277 + $0x18] sm:$0xff]
        %v285 = vld [vmem:[%s277 + $0x20] sm:$0xff]
        %v286 = vld [vmem:[%s277 + $0x28] sm:$0xff]
        %v287 = vld [vmem:[%s277 + $0x30] sm:$0xff]
        %v288 = vld [vmem:[%s277 + $0x38] sm:$0xff]
        %v289 = vld [vmem:[%s277 + $0x40] sm:$0xff]
        %v290 = vld [vmem:[%s277 + $0x48] sm:$0xff]
        %v291 = vld [vmem:[%s277 + $0x50] sm:$0xff]
        %v292 = vld [vmem:[%s277 + $0x58] sm:$0xff]
        %v293 = vld [vmem:[%s277 + $0x60] sm:$0xff]
        %v294 = vld [vmem:[%s277 + $0x68] sm:$0xff]
        %v295 = vld [vmem:[%s277 + $0x70] sm:$0xff]
        %v296 = vld [vmem:[%s277 + $0x78] sm:$0xff]
        %v297 = vld [vmem:[%s277 + $0x80] sm:$0xff]
        %v298 = vld [vmem:[%s277 + $0x88] sm:$0xff]
        %v299 = vld [vmem:[%s277 + $0x90] sm:$0xff]
        %v300 = vld [vmem:[%s277 + $0x98] sm:$0xff]
        %v301 = vld [vmem:[%s277 + $0xa0] sm:$0xff]
        %v302 = vld [vmem:[%s277 + $0xa8] sm:$0xff]
        %v303 = vld [vmem:[%s277 + $0xb0] sm:$0xff]
        %v304 = vld [vmem:[%s277 + $0xb8] sm:$0xff]
        %v305 = vld [vmem:[%s277 + $0xc0] sm:$0xff]
        %v306 = vld [vmem:[%s277 + $0xc8] sm:$0xff]
        %v307 = vld [vmem:[%s277 + $0xd0] sm:$0xff]
        %v308 = vld [vmem:[%s277 + $0xd8] sm:$0xff]
        %v309 = vld [vmem:[%s277 + $0xe0] sm:$0xff]
        %v310 = vld [vmem:[%s277 + $0xe8] sm:$0xff]
        %v311 = vld [vmem:[%s277 + $0xf0] sm:$0xff]
        %v312 = vld [vmem:[%s277 + $0xf8] sm:$0xff]
        %313 = vadd.xlane.f32.xlu0 %v281
        %v314 = vpop.xlane.xlu0 %313
        %315 = vadd.xlane.f32.xlu0 %v282
        %v316 = vpop.xlane.xlu0 %315
        %317 = vadd.xlane.f32.xlu0 %v283
        %v318 = vpop.xlane.xlu0 %317
        %319 = vadd.xlane.f32.xlu0 %v284
        %v320 = vpop.xlane.xlu0 %319
        %321 = vadd.xlane.f32.xlu0 %v285
        %v322 = vpop.xlane.xlu0 %321
        %323 = vadd.xlane.f32.xlu0 %v286
        %v324 = vpop.xlane.xlu0 %323
        %325 = vadd.xlane.f32.xlu0 %v287
        %v326 = vpop.xlane.xlu0 %325
        %327 = vadd.xlane.f32.xlu0 %v288
        %v328 = vpop.xlane.xlu0 %327
        %329 = vadd.xlane.f32.xlu0 %v289
        %v330 = vpop.xlane.xlu0 %329
        %331 = vadd.xlane.f32.xlu0 %v290
        %v332 = vpop.xlane.xlu0 %331
        %333 = vadd.xlane.f32.xlu0 %v291
        %v334 = vpop.xlane.xlu0 %333
        %335 = vadd.xlane.f32.xlu0 %v292
        %v336 = vpop.xlane.xlu0 %335
        %337 = vadd.xlane.f32.xlu0 %v293
        %v338 = vpop.xlane.xlu0 %337
        %339 = vadd.xlane.f32.xlu0 %v294
        %v340 = vpop.xlane.xlu0 %339
        %341 = vadd.xlane.f32.xlu0 %v295
        %v342 = vpop.xlane.xlu0 %341
        %343 = vadd.xlane.f32.xlu0 %v296
        %v344 = vpop.xlane.xlu0 %343
        %345 = vadd.xlane.f32.xlu0 %v297
        %v346 = vpop.xlane.xlu0 %345
        %347 = vadd.xlane.f32.xlu0 %v298
        %v348 = vpop.xlane.xlu0 %347
        %349 = vadd.xlane.f32.xlu0 %v299
        %v350 = vpop.xlane.xlu0 %349
        %351 = vadd.xlane.f32.xlu0 %v300
        %v352 = vpop.xlane.xlu0 %351
        %353 = vadd.xlane.f32.xlu0 %v301
        %v354 = vpop.xlane.xlu0 %353
        %355 = vadd.xlane.f32.xlu0 %v302
        %v356 = vpop.xlane.xlu0 %355
        %357 = vadd.xlane.f32.xlu0 %v303
        %v358 = vpop.xlane.xlu0 %357
        %359 = vadd.xlane.f32.xlu0 %v304
        %v360 = vpop.xlane.xlu0 %359
        %361 = vadd.xlane.f32.xlu0 %v305
        %v362 = vpop.xlane.xlu0 %361
        %363 = vadd.xlane.f32.xlu0 %v306
        %v364 = vpop.xlane.xlu0 %363
        %365 = vadd.xlane.f32.xlu0 %v307
        %v366 = vpop.xlane.xlu0 %365
        %367 = vadd.xlane.f32.xlu0 %v308
        %v368 = vpop.xlane.xlu0 %367
        %369 = vadd.xlane.f32.xlu0 %v309
        %v370 = vpop.xlane.xlu0 %369
        %371 = vadd.xlane.f32.xlu0 %v310
        %v372 = vpop.xlane.xlu0 %371
        %373 = vadd.xlane.f32.xlu0 %v311
        %v374 = vpop.xlane.xlu0 %373
        %375 = vadd.xlane.f32.xlu0 %v312
        %v376 = vpop.xlane.xlu0 %375
        %v377 = vrcp.pop 128.0
        %v378 = vmul.f32 %v314, %v377
        %v379 = vmul.f32 %v316, %v377
        %v380 = vmul.f32 %v318, %v377
        %v381 = vmul.f32 %v320, %v377
        %v382 = vmul.f32 %v322, %v377
        %v383 = vmul.f32 %v324, %v377
        %v384 = vmul.f32 %v326, %v377
        %v385 = vmul.f32 %v328, %v377
        %v386 = vmul.f32 %v330, %v377
        %v387 = vmul.f32 %v332, %v377
        %v388 = vmul.f32 %v334, %v377
        %v389 = vmul.f32 %v336, %v377
        %v390 = vmul.f32 %v338, %v377
        %v391 = vmul.f32 %v340, %v377
        %v392 = vmul.f32 %v342, %v377
        %v393 = vmul.f32 %v344, %v377
        %v394 = vmul.f32 %v346, %v377
        %v395 = vmul.f32 %v348, %v377
        %v396 = vmul.f32 %v350, %v377
        %v397 = vmul.f32 %v352, %v377
        %v398 = vmul.f32 %v354, %v377
        %v399 = vmul.f32 %v356, %v377
        %v400 = vmul.f32 %v358, %v377
        %v401 = vmul.f32 %v360, %v377
        %v402 = vmul.f32 %v362, %v377
        %v403 = vmul.f32 %v364, %v377
        %v404 = vmul.f32 %v366, %v377
        %v405 = vmul.f32 %v368, %v377
        %v406 = vmul.f32 %v370, %v377
        %v407 = vmul.f32 %v372, %v377
        %v408 = vmul.f32 %v374, %v377
        %v409 = vmul.f32 %v376, %v377
        %v410 = vsub.f32 %v281, %v378
        %v411 = vsub.f32 %v282, %v379
        %v412 = vsub.f32 %v283, %v380
        %v413 = vsub.f32 %v284, %v381
        %v414 = vsub.f32 %v285, %v382
        %v415 = vsub.f32 %v286, %v383
        %v416 = vsub.f32 %v287, %v384
        %v417 = vsub.f32 %v288, %v385
        %v418 = vsub.f32 %v289, %v386
        %v419 = vsub.f32 %v290, %v387
        %v420 = vsub.f32 %v291, %v388
        %v421 = vsub.f32 %v292, %v389
        %v422 = vsub.f32 %v293, %v390
        %v423 = vsub.f32 %v294, %v391
        %v424 = vsub.f32 %v295, %v392
        %v425 = vsub.f32 %v296, %v393
        %v426 = vsub.f32 %v297, %v394
        %v427 = vsub.f32 %v298, %v395
        %v428 = vsub.f32 %v299, %v396
        %v429 = vsub.f32 %v300, %v397
        %v430 = vsub.f32 %v301, %v398
        %v431 = vsub.f32 %v302, %v399
        %v432 = vsub.f32 %v303, %v400
        %v433 = vsub.f32 %v304, %v401
        %v434 = vsub.f32 %v305, %v402
        %v435 = vsub.f32 %v306, %v403
        %v436 = vsub.f32 %v307, %v404
        %v437 = vsub.f32 %v308, %v405
        %v438 = vsub.f32 %v309, %v406
        %v439 = vsub.f32 %v310, %v407
        %v440 = vsub.f32 %v311, %v408
        %v441 = vsub.f32 %v312, %v409
        %v442 = vmul.f32 %v410, %v410
        %v443 = vmul.f32 %v411, %v411
        %v444 = vmul.f32 %v412, %v412
        %v445 = vmul.f32 %v413, %v413
        %v446 = vmul.f32 %v414, %v414
        %v447 = vmul.f32 %v415, %v415
        %v448 = vmul.f32 %v416, %v416
        %v449 = vmul.f32 %v417, %v417
        %v450 = vmul.f32 %v418, %v418
        %v451 = vmul.f32 %v419, %v419
        %v452 = vmul.f32 %v420, %v420
        %v453 = vmul.f32 %v421, %v421
        %v454 = vmul.f32 %v422, %v422
        %v455 = vmul.f32 %v423, %v423
        %v456 = vmul.f32 %v424, %v424
        %v457 = vmul.f32 %v425, %v425
        %v458 = vmul.f32 %v426, %v426
        %v459 = vmul.f32 %v427, %v427
        %v460 = vmul.f32 %v428, %v428
        %v461 = vmul.f32 %v429, %v429
        %v462 = vmul.f32 %v430, %v430
        %v463 = vmul.f32 %v431, %v431
        %v464 = vmul.f32 %v432, %v432
        %v465 = vmul.f32 %v433, %v433
        %v466 = vmul.f32 %v434, %v434
        %v467 = vmul.f32 %v435, %v435
        %v468 = vmul.f32 %v436, %v436
        %v469 = vmul.f32 %v437, %v437
        %v470 = vmul.f32 %v438, %v438
        %v471 = vmul.f32 %v439, %v439
        %v472 = vmul.f32 %v440, %v440
        %v473 = vmul.f32 %v441, %v441
        %474 = vadd.xlane.f32.xlu0 %v442
        %v475 = vpop.xlane.xlu0 %474
        %476 = vadd.xlane.f32.xlu0 %v443
        %v477 = vpop.xlane.xlu0 %476
        %478 = vadd.xlane.f32.xlu0 %v444
        %v479 = vpop.xlane.xlu0 %478
        %480 = vadd.xlane.f32.xlu0 %v445
        %v481 = vpop.xlane.xlu0 %480
        %482 = vadd.xlane.f32.xlu0 %v446
        %v483 = vpop.xlane.xlu0 %482
        %484 = vadd.xlane.f32.xlu0 %v447
        %v485 = vpop.xlane.xlu0 %484
        %486 = vadd.xlane.f32.xlu0 %v448
        %v487 = vpop.xlane.xlu0 %486
        %488 = vadd.xlane.f32.xlu0 %v449
        %v489 = vpop.xlane.xlu0 %488
        %490 = vadd.xlane.f32.xlu0 %v450
        %v491 = vpop.xlane.xlu0 %490
        %492 = vadd.xlane.f32.xlu0 %v451
        %v493 = vpop.xlane.xlu0 %492
        %494 = vadd.xlane.f32.xlu0 %v452
        %v495 = vpop.xlane.xlu0 %494
        %496 = vadd.xlane.f32.xlu0 %v453
        %v497 = vpop.xlane.xlu0 %496
        %498 = vadd.xlane.f32.xlu0 %v454
        %v499 = vpop.xlane.xlu0 %498
        %500 = vadd.xlane.f32.xlu0 %v455
        %v501 = vpop.xlane.xlu0 %500
        %502 = vadd.xlane.f32.xlu0 %v456
        %v503 = vpop.xlane.xlu0 %502
        %504 = vadd.xlane.f32.xlu0 %v457
        %v505 = vpop.xlane.xlu0 %504
        %506 = vadd.xlane.f32.xlu0 %v458
        %v507 = vpop.xlane.xlu0 %506
        %508 = vadd.xlane.f32.xlu0 %v459
        %v509 = vpop.xlane.xlu0 %508
        %510 = vadd.xlane.f32.xlu0 %v460
        %v511 = vpop.xlane.xlu0 %510
        %512 = vadd.xlane.f32.xlu0 %v461
        %v513 = vpop.xlane.xlu0 %512
        %514 = vadd.xlane.f32.xlu0 %v462
        %v515 = vpop.xlane.xlu0 %514
        %516 = vadd.xlane.f32.xlu0 %v463
        %v517 = vpop.xlane.xlu0 %516
        %518 = vadd.xlane.f32.xlu0 %v464
        %v519 = vpop.xlane.xlu0 %518
        %520 = vadd.xlane.f32.xlu0 %v465
        %v521 = vpop.xlane.xlu0 %520
        %522 = vadd.xlane.f32.xlu0 %v466
        %v523 = vpop.xlane.xlu0 %522
        %524 = vadd.xlane.f32.xlu0 %v467
        %v525 = vpop.xlane.xlu0 %524
        %526 = vadd.xlane.f32.xlu0 %v468
        %v527 = vpop.xlane.xlu0 %526
        %528 = vadd.xlane.f32.xlu0 %v469
        %v529 = vpop.xlane.xlu0 %528
        %530 = vadd.xlane.f32.xlu0 %v470
        %v531 = vpop.xlane.xlu0 %530
        %532 = vadd.xlane.f32.xlu0 %v471
        %v533 = vpop.xlane.xlu0 %532
        %534 = vadd.xlane.f32.xlu0 %v472
        %v535 = vpop.xlane.xlu0 %534
        %536 = vadd.xlane.f32.xlu0 %v473
        %v537 = vpop.xlane.xlu0 %536
        %v538 = vmul.f32 %v475, %v377
        %v539 = vmul.f32 %v477, %v377
        %v540 = vmul.f32 %v479, %v377
        %v541 = vmul.f32 %v481, %v377
        %v542 = vmul.f32 %v483, %v377
        %v543 = vmul.f32 %v485, %v377
        %v544 = vmul.f32 %v487, %v377
        %v545 = vmul.f32 %v489, %v377
        %v546 = vmul.f32 %v491, %v377
        %v547 = vmul.f32 %v493, %v377
        %v548 = vmul.f32 %v495, %v377
        %v549 = vmul.f32 %v497, %v377
        %v550 = vmul.f32 %v499, %v377
        %v551 = vmul.f32 %v501, %v377
        %v552 = vmul.f32 %v503, %v377
        %v553 = vmul.f32 %v505, %v377
        %v554 = vmul.f32 %v507, %v377
        %v555 = vmul.f32 %v509, %v377
        %v556 = vmul.f32 %v511, %v377
        %v557 = vmul.f32 %v513, %v377
        %v558 = vmul.f32 %v515, %v377
        %v559 = vmul.f32 %v517, %v377
        %v560 = vmul.f32 %v519, %v377
        %v561 = vmul.f32 %v521, %v377
        %v562 = vmul.f32 %v523, %v377
        %v563 = vmul.f32 %v525, %v377
        %v564 = vmul.f32 %v527, %v377
        %v565 = vmul.f32 %v529, %v377
        %v566 = vmul.f32 %v531, %v377
        %v567 = vmul.f32 %v533, %v377
        %v568 = vmul.f32 %v535, %v377
        %v569 = vmul.f32 %v537, %v377
        %v570 = vadd.f32 %v538, 1e-05
        %v571 = vadd.f32 %v539, 1e-05
        %v572 = vadd.f32 %v540, 1e-05
        %v573 = vadd.f32 %v541, 1e-05
        %v574 = vadd.f32 %v542, 1e-05
        %v575 = vadd.f32 %v543, 1e-05
        %v576 = vadd.f32 %v544, 1e-05
        %v577 = vadd.f32 %v545, 1e-05
        %v578 = vadd.f32 %v546, 1e-05
        %v579 = vadd.f32 %v547, 1e-05
        %v580 = vadd.f32 %v548, 1e-05
        %v581 = vadd.f32 %v549, 1e-05
        %v582 = vadd.f32 %v550, 1e-05
        %v583 = vadd.f32 %v551, 1e-05
        %v584 = vadd.f32 %v552, 1e-05
        %v585 = vadd.f32 %v553, 1e-05
        %v586 = vadd.f32 %v554, 1e-05
        %v587 = vadd.f32 %v555, 1e-05
        %v588 = vadd.f32 %v556, 1e-05
        %v589 = vadd.f32 %v557, 1e-05
        %v590 = vadd.f32 %v558, 1e-05
        %v591 = vadd.f32 %v559, 1e-05
        %v592 = vadd.f32 %v560, 1e-05
        %v593 = vadd.f32 %v561, 1e-05
        %v594 = vadd.f32 %v562, 1e-05
        %v595 = vadd.f32 %v563, 1e-05
        %v596 = vadd.f32 %v564, 1e-05
        %v597 = vadd.f32 %v565, 1e-05
        %v598 = vadd.f32 %v566, 1e-05
        %v599 = vadd.f32 %v567, 1e-05
        %v600 = vadd.f32 %v568, 1e-05
        %v601 = vadd.f32 %v569, 1e-05
        %v602 = vrsqrt.pop %v570
        %v603 = vrsqrt.pop %v571
        %v604 = vrsqrt.pop %v572
        %v605 = vrsqrt.pop %v573
        %v606 = vrsqrt.pop %v574
        %v607 = vrsqrt.pop %v575
        %v608 = vrsqrt.pop %v576
        %v609 = vrsqrt.pop %v577
        %v610 = vrsqrt.pop %v578
        %v611 = vrsqrt.pop %v579
        %v612 = vrsqrt.pop %v580
        %v613 = vrsqrt.pop %v581
        %v614 = vrsqrt.pop %v582
        %v615 = vrsqrt.pop %v583
        %v616 = vrsqrt.pop %v584
        %v617 = vrsqrt.pop %v585
        %v618 = vrsqrt.pop %v586
        %v619 = vrsqrt.pop %v587
        %v620 = vrsqrt.pop %v588
        %v621 = vrsqrt.pop %v589
        %v622 = vrsqrt.pop %v590
        %v623 = vrsqrt.pop %v591
        %v624 = vrsqrt.pop %v592
        %v625 = vrsqrt.pop %v593
        %v626 = vrsqrt.pop %v594
        %v627 = vrsqrt.pop %v595
        %v628 = vrsqrt.pop %v596
        %v629 = vrsqrt.pop %v597
        %v630 = vrsqrt.pop %v598
        %v631 = vrsqrt.pop %v599
        %v632 = vrsqrt.pop %v600
        %v633 = vrsqrt.pop %v601
        %v634 = vmul.f32 %v410, %v602
        %v635 = vmul.f32 %v411, %v603
        %v636 = vmul.f32 %v412, %v604
        %v637 = vmul.f32 %v413, %v605
        %v638 = vmul.f32 %v414, %v606
        %v639 = vmul.f32 %v415, %v607
        %v640 = vmul.f32 %v416, %v608
        %v641 = vmul.f32 %v417, %v609
        %v642 = vmul.f32 %v418, %v610
        %v643 = vmul.f32 %v419, %v611
        %v644 = vmul.f32 %v420, %v612
        %v645 = vmul.f32 %v421, %v613
        %v646 = vmul.f32 %v422, %v614
        %v647 = vmul.f32 %v423, %v615
        %v648 = vmul.f32 %v424, %v616
        %v649 = vmul.f32 %v425, %v617
        %v650 = vmul.f32 %v426, %v618
        %v651 = vmul.f32 %v427, %v619
        %v652 = vmul.f32 %v428, %v620
        %v653 = vmul.f32 %v429, %v621
        %v654 = vmul.f32 %v430, %v622
        %v655 = vmul.f32 %v431, %v623
        %v656 = vmul.f32 %v432, %v624
        %v657 = vmul.f32 %v433, %v625
        %v658 = vmul.f32 %v434, %v626
        %v659 = vmul.f32 %v435, %v627
        %v660 = vmul.f32 %v436, %v628
        %v661 = vmul.f32 %v437, %v629
        %v662 = vmul.f32 %v438, %v630
        %v663 = vmul.f32 %v439, %v631
        %v664 = vmul.f32 %v440, %v632
        %v665 = vmul.f32 %v441, %v633
        %v666 = vld [vmem:[%s1] sm:$0x1]
        %v668 = vlaneseq
        %v669 = vshrl.u32 %v668, 7
        %v670 = vsub.s32 0, %v669
        %v671 = vrot.slane %v666, %v670
        %v673 = vmul.f32 %v634, %v671
        %v674 = vmul.f32 %v635, %v671
        %v675 = vmul.f32 %v636, %v671
        %v676 = vmul.f32 %v637, %v671
        %v677 = vmul.f32 %v638, %v671
        %v678 = vmul.f32 %v639, %v671
        %v679 = vmul.f32 %v640, %v671
        %v680 = vmul.f32 %v641, %v671
        %v681 = vmul.f32 %v642, %v671
        %v682 = vmul.f32 %v643, %v671
        %v683 = vmul.f32 %v644, %v671
        %v684 = vmul.f32 %v645, %v671
        %v685 = vmul.f32 %v646, %v671
        %v686 = vmul.f32 %v647, %v671
        %v687 = vmul.f32 %v648, %v671
        %v688 = vmul.f32 %v649, %v671
        %v689 = vmul.f32 %v650, %v671
        %v690 = vmul.f32 %v651, %v671
        %v691 = vmul.f32 %v652, %v671
        %v692 = vmul.f32 %v653, %v671
        %v693 = vmul.f32 %v654, %v671
        %v694 = vmul.f32 %v655, %v671
        %v695 = vmul.f32 %v656, %v671
        %v696 = vmul.f32 %v657, %v671
        %v697 = vmul.f32 %v658, %v671
        %v698 = vmul.f32 %v659, %v671
        %v699 = vmul.f32 %v660, %v671
        %v700 = vmul.f32 %v661, %v671
        %v701 = vmul.f32 %v662, %v671
        %v702 = vmul.f32 %v663, %v671
        %v703 = vmul.f32 %v664, %v671
        %v704 = vmul.f32 %v665, %v671
        %v705 = vld [vmem:[%s2] sm:$0x1]
        %v707 = vlaneseq
        %v708 = vshrl.u32 %v707, 7
        %v709 = vsub.s32 0, %v708
        %v710 = vrot.slane %v705, %v709
        %v712 = vadd.f32 %v673, %v710
        %v713 = vadd.f32 %v674, %v710
        %v714 = vadd.f32 %v675, %v710
        %v715 = vadd.f32 %v676, %v710
        %v716 = vadd.f32 %v677, %v710
        %v717 = vadd.f32 %v678, %v710
        %v718 = vadd.f32 %v679, %v710
        %v719 = vadd.f32 %v680, %v710
        %v720 = vadd.f32 %v681, %v710
        %v721 = vadd.f32 %v682, %v710
        %v722 = vadd.f32 %v683, %v710
        %v723 = vadd.f32 %v684, %v710
        %v724 = vadd.f32 %v685, %v710
        %v725 = vadd.f32 %v686, %v710
        %v726 = vadd.f32 %v687, %v710
        %v727 = vadd.f32 %v688, %v710
        %v728 = vadd.f32 %v689, %v710
        %v729 = vadd.f32 %v690, %v710
        %v730 = vadd.f32 %v691, %v710
        %v731 = vadd.f32 %v692, %v710
        %v732 = vadd.f32 %v693, %v710
        %v733 = vadd.f32 %v694, %v710
        %v734 = vadd.f32 %v695, %v710
        %v735 = vadd.f32 %v696, %v710
        %v736 = vadd.f32 %v697, %v710
        %v737 = vadd.f32 %v698, %v710
        %v738 = vadd.f32 %v699, %v710
        %v739 = vadd.f32 %v700, %v710
        %v740 = vadd.f32 %v701, %v710
        %v741 = vadd.f32 %v702, %v710
        %v742 = vadd.f32 %v703, %v710
        %v743 = vadd.f32 %v704, %v710
        %v744 = vpack.c.bf16 %v713, %v712
        %v745 = vpack.c.bf16 %v715, %v714
        %v746 = vpack.c.bf16 %v717, %v716
        %v747 = vpack.c.bf16 %v719, %v718
        %v748 = vpack.c.bf16 %v721, %v720
        %v749 = vpack.c.bf16 %v723, %v722
        %v750 = vpack.c.bf16 %v725, %v724
        %v751 = vpack.c.bf16 %v727, %v726
        %v752 = vpack.c.bf16 %v729, %v728
        %v753 = vpack.c.bf16 %v731, %v730
        %v754 = vpack.c.bf16 %v733, %v732
        %v755 = vpack.c.bf16 %v735, %v734
        %v756 = vpack.c.bf16 %v737, %v736
        %v757 = vpack.c.bf16 %v739, %v738
        %v758 = vpack.c.bf16 %v741, %v740
        %v759 = vpack.c.bf16 %v743, %v742
        %v760 = vld [vmem:[%s3] sm:$0xff]
        %v761 = vld [vmem:[%s3 + $0x8] sm:$0xff]
        %v762 = vld [vmem:[%s3 + $0x10] sm:$0xff]
        %v763 = vld [vmem:[%s3 + $0x18] sm:$0xff]
        %v764 = vld [vmem:[%s3 + $0x20] sm:$0xff]
        %v765 = vld [vmem:[%s3 + $0x28] sm:$0xff]
        %v766 = vld [vmem:[%s3 + $0x30] sm:$0xff]
        %v767 = vld [vmem:[%s3 + $0x38] sm:$0xff]
        %v768 = vld [vmem:[%s3 + $0x40] sm:$0xff]
        %v769 = vld [vmem:[%s3 + $0x48] sm:$0xff]
        %v770 = vld [vmem:[%s3 + $0x50] sm:$0xff]
        %v771 = vld [vmem:[%s3 + $0x58] sm:$0xff]
        %v772 = vld [vmem:[%s3 + $0x60] sm:$0xff]
        %v773 = vld [vmem:[%s3 + $0x68] sm:$0xff]
        %v774 = vld [vmem:[%s3 + $0x70] sm:$0xff]
        %v775 = vld [vmem:[%s3 + $0x78] sm:$0xff]
        %v776 = vld [vmem:[%s4] sm:$0x3]
        %v778 = vlaneseq
        %v779 = vshrl.u32 %v778, 7
        %v780 = vsub.s32 0, %v779
        %v781 = vrot.slane %v776, %v780
        %v782 = vlaneseq
        %v783 = vshrl.u32 %v782, 7
        %v784 = vsub.s32 1, %v783
        %v785 = vrot.slane %v776, %v784
        %v804 = vunpack.c.l.b16 %v760
        %v805 = vunpack.c.h.b16 %v760
        %v806 = vunpack.c.l.b16 %v761
        %v807 = vunpack.c.h.b16 %v761
        %v808 = vunpack.c.l.b16 %v762
        %v809 = vunpack.c.h.b16 %v762
        %v810 = vunpack.c.l.b16 %v763
        %v811 = vunpack.c.h.b16 %v763
        %v812 = vunpack.c.l.b16 %v764
        %v813 = vunpack.c.h.b16 %v764
        %v814 = vunpack.c.l.b16 %v765
        %v815 = vunpack.c.h.b16 %v765
        %v816 = vunpack.c.l.b16 %v766
        %v817 = vunpack.c.h.b16 %v766
        %v818 = vunpack.c.l.b16 %v767
        %v819 = vunpack.c.h.b16 %v767
        %v820 = vunpack.c.l.b16 %v768
        %v821 = vunpack.c.h.b16 %v768
        %v822 = vunpack.c.l.b16 %v769
        %v823 = vunpack.c.h.b16 %v769
        %v824 = vunpack.c.l.b16 %v770
        %v825 = vunpack.c.h.b16 %v770
        %v826 = vunpack.c.l.b16 %v771
        %v827 = vunpack.c.h.b16 %v771
        %v828 = vunpack.c.l.b16 %v772
        %v829 = vunpack.c.h.b16 %v772
        %v830 = vunpack.c.l.b16 %v773
        %v831 = vunpack.c.h.b16 %v773
        %v832 = vunpack.c.l.b16 %v774
        %v833 = vunpack.c.h.b16 %v774
        %v834 = vunpack.c.l.b16 %v775
        %v835 = vunpack.c.h.b16 %v775
        %v836 = vpack.c.b16 %v806, %v804
        %v837 = vpack.c.b16 %v807, %v805
        %v838 = vpack.c.b16 %v810, %v808
        %v839 = vpack.c.b16 %v811, %v809
        %v840 = vpack.c.b16 %v814, %v812
        %v841 = vpack.c.b16 %v815, %v813
        %v842 = vpack.c.b16 %v818, %v816
        %v843 = vpack.c.b16 %v819, %v817
        %v844 = vpack.c.b16 %v822, %v820
        %v845 = vpack.c.b16 %v823, %v821
        %v846 = vpack.c.b16 %v826, %v824
        %v847 = vpack.c.b16 %v827, %v825
        %v848 = vpack.c.b16 %v830, %v828
        %v849 = vpack.c.b16 %v831, %v829
        %v850 = vpack.c.b16 %v834, %v832
        %v851 = vpack.c.b16 %v835, %v833
        %868 = vmatprep.subr.bf16.mxu0 %v837
        %869 = vmatpush1.bf16.msra.mxu0 %v836
        %870 = vmatprep.subr.bf16.mxu0 %v839
        %871 = vmatpush1.bf16.msra.mxu0 %v838
        %872 = vmatprep.subr.bf16.mxu0 %v841
        %873 = vmatpush1.bf16.msra.mxu0 %v840
        %874 = vmatprep.subr.bf16.mxu0 %v843
        %875 = vmatpush1.bf16.msra.mxu0 %v842
        %876 = vmatprep.subr.bf16.mxu0 %v845
        %877 = vmatpush1.bf16.msra.mxu0 %v844
        %878 = vmatprep.subr.bf16.mxu0 %v847
        %879 = vmatpush1.bf16.msra.mxu0 %v846
        %880 = vmatprep.subr.bf16.mxu0 %v849
        %881 = vmatpush1.bf16.msra.mxu0 %v848
        %882 = vmatprep.subr.bf16.mxu0 %v851
        %883 = vmatpush1.bf16.msra.mxu0 %v850
        %884 = vmatprep.subr.bf16.mxu0 0
        %885 = vmatpush1.bf16.msra.mxu0 0
        %886 = vmatprep.subr.bf16.mxu0 0
        %887 = vmatpush1.bf16.msra.mxu0 0
        %888 = vmatprep.subr.bf16.mxu0 0
        %889 = vmatpush1.bf16.msra.mxu0 0
        %890 = vmatprep.subr.bf16.mxu0 0
        %891 = vmatpush1.bf16.msra.mxu0 0
        %892 = vmatprep.subr.bf16.mxu0 0
        %893 = vmatpush1.bf16.msra.mxu0 0
        %894 = vmatprep.subr.bf16.mxu0 0
        %895 = vmatpush1.bf16.msra.mxu0 0
        %896 = vmatprep.subr.bf16.mxu0 0
        %897 = vmatpush1.bf16.msra.mxu0 0
        %898 = vmatprep.subr.bf16.mxu0 0
        %899 = vmatpush1.bf16.msra.mxu0 0
        %900 = vmatprep.mubr.bf16.mxu0 0
        %901 = vmatmul.mubr.bf16.gmra.mrb[0].mxu0 %v744
        %v902 = vpop.f32.mrb[0].mxu0
        %v903 = vadd.f32 %v781, %v902
        %v904 = vpop.f32.mrb[0].mxu0
        %v905 = vadd.f32 %v785, %v904
        %v906 = vpop.f32.mrb[0].mxu0
        %v907 = vadd.f32 %v781, %v906
        %v908 = vpop.f32.mrb[0].mxu0
        %v909 = vadd.f32 %v785, %v908
        %910 = vmatprep.mubr.bf16.mxu0 0
        %911 = vmatmul.mubr.bf16.gmra.mrb[0].mxu0 %v745
        %v912 = vpop.f32.mrb[0].mxu0
        %v913 = vadd.f32 %v781, %v912
        %v914 = vpop.f32.mrb[0].mxu0
        %v915 = vadd.f32 %v785, %v914
        %v916 = vpop.f32.mrb[0].mxu0
        %v917 = vadd.f32 %v781, %v916
        %v918 = vpop.f32.mrb[0].mxu0
        %v919 = vadd.f32 %v785, %v918
        %920 = vmatprep.mubr.bf16.mxu0 0
        %921 = vmatmul.mubr.bf16.gmra.mrb[0].mxu0 %v746
        %v922 = vpop.f32.mrb[0].mxu0
        %v923 = vadd.f32 %v781, %v922
        %v924 = vpop.f32.mrb[0].mxu0
        %v925 = vadd.f32 %v785, %v924
        %v926 = vpop.f32.mrb[0].mxu0
        %v927 = vadd.f32 %v781, %v926
        %v928 = vpop.f32.mrb[0].mxu0
        %v929 = vadd.f32 %v785, %v928
        %930 = vmatprep.mubr.bf16.mxu0 0
        %931 = vmatmul.mubr.bf16.gmra.mrb[0].mxu0 %v747
        %v932 = vpop.f32.mrb[0].mxu0
        %v933 = vadd.f32 %v781, %v932
        %v934 = vpop.f32.mrb[0].mxu0
        %v935 = vadd.f32 %v785, %v934
        %v936 = vpop.f32.mrb[0].mxu0
        %v937 = vadd.f32 %v781, %v936
        %v938 = vpop.f32.mrb[0].mxu0
        %v939 = vadd.f32 %v785, %v938
        %940 = vmatprep.mubr.bf16.mxu0 0
        %941 = vmatmul.mubr.bf16.gmra.mrb[0].mxu0 %v748
        %v942 = vpop.f32.mrb[0].mxu0
        %v943 = vadd.f32 %v781, %v942
        %v944 = vpop.f32.mrb[0].mxu0
        %v945 = vadd.f32 %v785, %v944
        %v946 = vpop.f32.mrb[0].mxu0
        %v947 = vadd.f32 %v781, %v946
        %v948 = vpop.f32.mrb[0].mxu0
        %v949 = vadd.f32 %v785, %v948
        %950 = vmatprep.mubr.bf16.mxu0 0
        %951 = vmatmul.mubr.bf16.gmra.mrb[0].mxu0 %v749
        %v952 = vpop.f32.mrb[0].mxu0
        %v953 = vadd.f32 %v781, %v952
        %v954 = vpop.f32.mrb[0].mxu0
        %v955 = vadd.f32 %v785, %v954
        %v956 = vpop.f32.mrb[0].mxu0
        %v957 = vadd.f32 %v781, %v956
        %v958 = vpop.f32.mrb[0].mxu0
        %v959 = vadd.f32 %v785, %v958
        %960 = vmatprep.mubr.bf16.mxu0 0
        %961 = vmatmul.mubr.bf16.gmra.mrb[0].mxu0 %v750
        %v962 = vpop.f32.mrb[0].mxu0
        %v963 = vadd.f32 %v781, %v962
        %v964 = vpop.f32.mrb[0].mxu0
        %v965 = vadd.f32 %v785, %v964
        %v966 = vpop.f32.mrb[0].mxu0
        %v967 = vadd.f32 %v781, %v966
        %v968 = vpop.f32.mrb[0].mxu0
        %v969 = vadd.f32 %v785, %v968
        %970 = vmatprep.mubr.bf16.mxu0 0
        %971 = vmatmul.mubr.bf16.gmra.mrb[0].mxu0 %v751
        %v972 = vpop.f32.mrb[0].mxu0
        %v973 = vadd.f32 %v781, %v972
        %v974 = vpop.f32.mrb[0].mxu0
        %v975 = vadd.f32 %v785, %v974
        %v976 = vpop.f32.mrb[0].mxu0
        %v977 = vadd.f32 %v781, %v976
        %v978 = vpop.f32.mrb[0].mxu0
        %v979 = vadd.f32 %v785, %v978
        %980 = vmatprep.mubr.bf16.mxu0 0
        %981 = vmatmul.mubr.bf16.gmra.mrb[0].mxu0 %v752
        %v982 = vpop.f32.mrb[0].mxu0
        %v983 = vadd.f32 %v781, %v982
        %v984 = vpop.f32.mrb[0].mxu0
        %v985 = vadd.f32 %v785, %v984
        %v986 = vpop.f32.mrb[0].mxu0
        %v987 = vadd.f32 %v781, %v986
        %v988 = vpop.f32.mrb[0].mxu0
        %v989 = vadd.f32 %v785, %v988
        %990 = vmatprep.mubr.bf16.mxu0 0
        %991 = vmatmul.mubr.bf16.gmra.mrb[0].mxu0 %v753
        %v992 = vpop.f32.mrb[0].mxu0
        %v993 = vadd.f32 %v781, %v992
        %v994 = vpop.f32.mrb[0].mxu0
        %v995 = vadd.f32 %v785, %v994
        %v996 = vpop.f32.mrb[0].mxu0
        %v997 = vadd.f32 %v781, %v996
        %v998 = vpop.f32.mrb[0].mxu0
        %v999 = vadd.f32 %v785, %v998
        %1000 = vmatprep.mubr.bf16.mxu0 0
        %1001 = vmatmul.mubr.bf16.gmra.mrb[0].mxu0 %v754
        %v1002 = vpop.f32.mrb[0].mxu0
        %v1003 = vadd.f32 %v781, %v1002
        %v1004 = vpop.f32.mrb[0].mxu0
        %v1005 = vadd.f32 %v785, %v1004
        %v1006 = vpop.f32.mrb[0].mxu0
        %v1007 = vadd.f32 %v781, %v1006
        %v1008 = vpop.f32.mrb[0].mxu0
        %v1009 = vadd.f32 %v785, %v1008
        %1010 = vmatprep.mubr.bf16.mxu0 0
        %1011 = vmatmul.mubr.bf16.gmra.mrb[0].mxu0 %v755
        %v1012 = vpop.f32.mrb[0].mxu0
        %v1013 = vadd.f32 %v781, %v1012
        %v1014 = vpop.f32.mrb[0].mxu0
        %v1015 = vadd.f32 %v785, %v1014
        %v1016 = vpop.f32.mrb[0].mxu0
        %v1017 = vadd.f32 %v781, %v1016
        %v1018 = vpop.f32.mrb[0].mxu0
        %v1019 = vadd.f32 %v785, %v1018
        %1020 = vmatprep.mubr.bf16.mxu0 0
        %1021 = vmatmul.mubr.bf16.gmra.mrb[0].mxu0 %v756
        %v1022 = vpop.f32.mrb[0].mxu0
        %v1023 = vadd.f32 %v781, %v1022
        %v1024 = vpop.f32.mrb[0].mxu0
        %v1025 = vadd.f32 %v785, %v1024
        %v1026 = vpop.f32.mrb[0].mxu0
        %v1027 = vadd.f32 %v781, %v1026
        %v1028 = vpop.f32.mrb[0].mxu0
        %v1029 = vadd.f32 %v785, %v1028
        %1030 = vmatprep.mubr.bf16.mxu0 0
        %1031 = vmatmul.mubr.bf16.gmra.mrb[0].mxu0 %v757
        %v1032 = vpop.f32.mrb[0].mxu0
        %v1033 = vadd.f32 %v781, %v1032
        %v1034 = vpop.f32.mrb[0].mxu0
        %v1035 = vadd.f32 %v785, %v1034
        %v1036 = vpop.f32.mrb[0].mxu0
        %v1037 = vadd.f32 %v781, %v1036
        %v1038 = vpop.f32.mrb[0].mxu0
        %v1039 = vadd.f32 %v785, %v1038
        %1040 = vmatprep.mubr.bf16.mxu0 0
        %1041 = vmatmul.mubr.bf16.gmra.mrb[0].mxu0 %v758
        %v1042 = vpop.f32.mrb[0].mxu0
        %v1043 = vadd.f32 %v781, %v1042
        %v1044 = vpop.f32.mrb[0].mxu0
        %v1045 = vadd.f32 %v785, %v1044
        %v1046 = vpop.f32.mrb[0].mxu0
        %v1047 = vadd.f32 %v781, %v1046
        %v1048 = vpop.f32.mrb[0].mxu0
        %v1049 = vadd.f32 %v785, %v1048
        %1050 = vmatprep.mubr.bf16.mxu0 0
        %1051 = vmatmul.mubr.bf16.gmra.mrb[0].mxu0 %v759
        %v1052 = vpop.f32.mrb[0].mxu0
        %v1053 = vadd.f32 %v781, %v1052
        %v1054 = vpop.f32.mrb[0].mxu0
        %v1055 = vadd.f32 %v785, %v1054
        %v1056 = vpop.f32.mrb[0].mxu0
        %v1057 = vadd.f32 %v781, %v1056
        %v1058 = vpop.f32.mrb[0].mxu0
        %v1059 = vadd.f32 %v785, %v1058
        %1060 = vdwg.mxu0
        %v1061 = vmul.f32 %v903, 0.5
        %v1062 = vmul.f32 %v905, 0.5
        %v1063 = vmul.f32 %v907, 0.5
        %v1064 = vmul.f32 %v909, 0.5
        %v1065 = vmul.f32 %v913, 0.5
        %v1066 = vmul.f32 %v915, 0.5
        %v1067 = vmul.f32 %v917, 0.5
        %v1068 = vmul.f32 %v919, 0.5
        %v1069 = vmul.f32 %v923, 0.5
        %v1070 = vmul.f32 %v925, 0.5
        %v1071 = vmul.f32 %v927, 0.5
        %v1072 = vmul.f32 %v929, 0.5
        %v1073 = vmul.f32 %v933, 0.5
        %v1074 = vmul.f32 %v935, 0.5
        %v1075 = vmul.f32 %v937, 0.5
        %v1076 = vmul.f32 %v939, 0.5
        %v1077 = vmul.f32 %v943, 0.5
        %v1078 = vmul.f32 %v945, 0.5
        %v1079 = vmul.f32 %v947, 0.5
        %v1080 = vmul.f32 %v949, 0.5
        %v1081 = vmul.f32 %v953, 0.5
        %v1082 = vmul.f32 %v955, 0.5
        %v1083 = vmul.f32 %v957, 0.5
        %v1084 = vmul.f32 %v959, 0.5
        %v1085 = vmul.f32 %v963, 0.5
        %v1086 = vmul.f32 %v965, 0.5
        %v1087 = vmul.f32 %v967, 0.5
        %v1088 = vmul.f32 %v969, 0.5
        %v1089 = vmul.f32 %v973, 0.5
        %v1090 = vmul.f32 %v975, 0.5
        %v1091 = vmul.f32 %v977, 0.5
        %v1092 = vmul.f32 %v979, 0.5
        %v1093 = vmul.f32 %v983, 0.5
        %v1094 = vmul.f32 %v985, 0.5
        %v1095 = vmul.f32 %v987, 0.5
        %v1096 = vmul.f32 %v989, 0.5
        %v1097 = vmul.f32 %v993, 0.5
        %v1098 = vmul.f32 %v995, 0.5
        %v1099 = vmul.f32 %v997, 0.5
        %v1100 = vmul.f32 %v999, 0.5
        %v1101 = vmul.f32 %v1003, 0.5
        %v1102 = vmul.f32 %v1005, 0.5
        %v1103 = vmul.f32 %v1007, 0.5
        %v1104 = vmul.f32 %v1009, 0.5
        %v1105 = vmul.f32 %v1013, 0.5
        %v1106 = vmul.f32 %v1015, 0.5
        %v1107 = vmul.f32 %v1017, 0.5
        %v1108 = vmul.f32 %v1019, 0.5
        %v1109 = vmul.f32 %v1023, 0.5
        %v1110 = vmul.f32 %v1025, 0.5
        %v1111 = vmul.f32 %v1027, 0.5
        %v1112 = vmul.f32 %v1029, 0.5
        %v1113 = vmul.f32 %v1033, 0.5
        %v1114 = vmul.f32 %v1035, 0.5
        %v1115 = vmul.f32 %v1037, 0.5
        %v1116 = vmul.f32 %v1039, 0.5
        %v1117 = vmul.f32 %v1043, 0.5
        %v1118 = vmul.f32 %v1045, 0.5
        %v1119 = vmul.f32 %v1047, 0.5
        %v1120 = vmul.f32 %v1049, 0.5
        %v1121 = vmul.f32 %v1053, 0.5
        %v1122 = vmul.f32 %v1055, 0.5
        %v1123 = vmul.f32 %v1057, 0.5
        %v1124 = vmul.f32 %v1059, 0.5
        %v1125 = vmul.f32 %v903, 0.044715
        %v1126 = vmul.f32 %v905, 0.044715
        %v1127 = vmul.f32 %v907, 0.044715
        %v1128 = vmul.f32 %v909, 0.044715
        %v1129 = vmul.f32 %v913, 0.044715
        %v1130 = vmul.f32 %v915, 0.044715
        %v1131 = vmul.f32 %v917, 0.044715
        %v1132 = vmul.f32 %v919, 0.044715
        %v1133 = vmul.f32 %v923, 0.044715
        %v1134 = vmul.f32 %v925, 0.044715
        %v1135 = vmul.f32 %v927, 0.044715
        %v1136 = vmul.f32 %v929, 0.044715
        %v1137 = vmul.f32 %v933, 0.044715
        %v1138 = vmul.f32 %v935, 0.044715
        %v1139 = vmul.f32 %v937, 0.044715
        %v1140 = vmul.f32 %v939, 0.044715
        %v1141 = vmul.f32 %v943, 0.044715
        %v1142 = vmul.f32 %v945, 0.044715
        %v1143 = vmul.f32 %v947, 0.044715
        %v1144 = vmul.f32 %v949, 0.044715
        %v1145 = vmul.f32 %v953, 0.044715
        %v1146 = vmul.f32 %v955, 0.044715
        %v1147 = vmul.f32 %v957, 0.044715
        %v1148 = vmul.f32 %v959, 0.044715
        %v1149 = vmul.f32 %v963, 0.044715
        %v1150 = vmul.f32 %v965, 0.044715
        %v1151 = vmul.f32 %v967, 0.044715
        %v1152 = vmul.f32 %v969, 0.044715
        %v1153 = vmul.f32 %v973, 0.044715
        %v1154 = vmul.f32 %v975, 0.044715
        %v1155 = vmul.f32 %v977, 0.044715
        %v1156 = vmul.f32 %v979, 0.044715
        %v1157 = vmul.f32 %v983, 0.044715
        %v1158 = vmul.f32 %v985, 0.044715
        %v1159 = vmul.f32 %v987, 0.044715
        %v1160 = vmul.f32 %v989, 0.044715
        %v1161 = vmul.f32 %v993, 0.044715
        %v1162 = vmul.f32 %v995, 0.044715
        %v1163 = vmul.f32 %v997, 0.044715
        %v1164 = vmul.f32 %v999, 0.044715
        %v1165 = vmul.f32 %v1003, 0.044715
        %v1166 = vmul.f32 %v1005, 0.044715
        %v1167 = vmul.f32 %v1007, 0.044715
        %v1168 = vmul.f32 %v1009, 0.044715
        %v1169 = vmul.f32 %v1013, 0.044715
        %v1170 = vmul.f32 %v1015, 0.044715
        %v1171 = vmul.f32 %v1017, 0.044715
        %v1172 = vmul.f32 %v1019, 0.044715
        %v1173 = vmul.f32 %v1023, 0.044715
        %v1174 = vmul.f32 %v1025, 0.044715
        %v1175 = vmul.f32 %v1027, 0.044715
        %v1176 = vmul.f32 %v1029, 0.044715
        %v1177 = vmul.f32 %v1033, 0.044715
        %v1178 = vmul.f32 %v1035, 0.044715
        %v1179 = vmul.f32 %v1037, 0.044715
        %v1180 = vmul.f32 %v1039, 0.044715
        %v1181 = vmul.f32 %v1043, 0.044715
        %v1182 = vmul.f32 %v1045, 0.044715
        %v1183 = vmul.f32 %v1047, 0.044715
        %v1184 = vmul.f32 %v1049, 0.044715
        %v1185 = vmul.f32 %v1053, 0.044715
        %v1186 = vmul.f32 %v1055, 0.044715
        %v1187 = vmul.f32 %v1057, 0.044715
        %v1188 = vmul.f32 %v1059, 0.044715
        %v1189 = vmul.f32 %v1125, %v903
        %v1190 = vmul.f32 %v1126, %v905
        %v1191 = vmul.f32 %v1127, %v907
        %v1192 = vmul.f32 %v1128, %v909
        %v1193 = vmul.f32 %v1129, %v913
        %v1194 = vmul.f32 %v1130, %v915
        %v1195 = vmul.f32 %v1131, %v917
        %v1196 = vmul.f32 %v1132, %v919
        %v1197 = vmul.f32 %v1133, %v923
        %v1198 = vmul.f32 %v1134, %v925
        %v1199 = vmul.f32 %v1135, %v927
        %v1200 = vmul.f32 %v1136, %v929
        %v1201 = vmul.f32 %v1137, %v933
        %v1202 = vmul.f32 %v1138, %v935
        %v1203 = vmul.f32 %v1139, %v937
        %v1204 = vmul.f32 %v1140, %v939
        %v1205 = vmul.f32 %v1141, %v943
        %v1206 = vmul.f32 %v1142, %v945
        %v1207 = vmul.f32 %v1143, %v947
        %v1208 = vmul.f32 %v1144, %v949
        %v1209 = vmul.f32 %v1145, %v953
        %v1210 = vmul.f32 %v1146, %v955
        %v1211 = vmul.f32 %v1147, %v957
        %v1212 = vmul.f32 %v1148, %v959
        %v1213 = vmul.f32 %v1149, %v963
        %v1214 = vmul.f32 %v1150, %v965
        %v1215 = vmul.f32 %v1151, %v967
        %v1216 = vmul.f32 %v1152, %v969
        %v1217 = vmul.f32 %v1153, %v973
        %v1218 = vmul.f32 %v1154, %v975
        %v1219 = vmul.f32 %v1155, %v977
        %v1220 = vmul.f32 %v1156, %v979
        %v1221 = vmul.f32 %v1157, %v983
        %v1222 = vmul.f32 %v1158, %v985
        %v1223 = vmul.f32 %v1159, %v987
        %v1224 = vmul.f32 %v1160, %v989
        %v1225 = vmul.f32 %v1161, %v993
        %v1226 = vmul.f32 %v1162, %v995
        %v1227 = vmul.f32 %v1163, %v997
        %v1228 = vmul.f32 %v1164, %v999
        %v1229 = vmul.f32 %v1165, %v1003
        %v1230 = vmul.f32 %v1166, %v1005
        %v1231 = vmul.f32 %v1167, %v1007
        %v1232 = vmul.f32 %v1168, %v1009
        %v1233 = vmul.f32 %v1169, %v1013
        %v1234 = vmul.f32 %v1170, %v1015
        %v1235 = vmul.f32 %v1171, %v1017
        %v1236 = vmul.f32 %v1172, %v1019
        %v1237 = vmul.f32 %v1173, %v1023
        %v1238 = vmul.f32 %v1174, %v1025
        %v1239 = vmul.f32 %v1175, %v1027
        %v1240 = vmul.f32 %v1176, %v1029
        %v1241 = vmul.f32 %v1177, %v1033
        %v1242 = vmul.f32 %v1178, %v1035
        %v1243 = vmul.f32 %v1179, %v1037
        %v1244 = vmul.f32 %v1180, %v1039
        %v1245 = vmul.f32 %v1181, %v1043
        %v1246 = vmul.f32 %v1182, %v1045
        %v1247 = vmul.f32 %v1183, %v1047
        %v1248 = vmul.f32 %v1184, %v1049
        %v1249 = vmul.f32 %v1185, %v1053
        %v1250 = vmul.f32 %v1186, %v1055
        %v1251 = vmul.f32 %v1187, %v1057
        %v1252 = vmul.f32 %v1188, %v1059
        %v1253 = vmul.f32 %v1189, %v903
        %v1254 = vmul.f32 %v1190, %v905
        %v1255 = vmul.f32 %v1191, %v907
        %v1256 = vmul.f32 %v1192, %v909
        %v1257 = vmul.f32 %v1193, %v913
        %v1258 = vmul.f32 %v1194, %v915
        %v1259 = vmul.f32 %v1195, %v917
        %v1260 = vmul.f32 %v1196, %v919
        %v1261 = vmul.f32 %v1197, %v923
        %v1262 = vmul.f32 %v1198, %v925
        %v1263 = vmul.f32 %v1199, %v927
        %v1264 = vmul.f32 %v1200, %v929
        %v1265 = vmul.f32 %v1201, %v933
        %v1266 = vmul.f32 %v1202, %v935
        %v1267 = vmul.f32 %v1203, %v937
        %v1268 = vmul.f32 %v1204, %v939
        %v1269 = vmul.f32 %v1205, %v943
        %v1270 = vmul.f32 %v1206, %v945
        %v1271 = vmul.f32 %v1207, %v947
        %v1272 = vmul.f32 %v1208, %v949
        %v1273 = vmul.f32 %v1209, %v953
        %v1274 = vmul.f32 %v1210, %v955
        %v1275 = vmul.f32 %v1211, %v957
        %v1276 = vmul.f32 %v1212, %v959
        %v1277 = vmul.f32 %v1213, %v963
        %v1278 = vmul.f32 %v1214, %v965
        %v1279 = vmul.f32 %v1215, %v967
        %v1280 = vmul.f32 %v1216, %v969
        %v1281 = vmul.f32 %v1217, %v973
        %v1282 = vmul.f32 %v1218, %v975
        %v1283 = vmul.f32 %v1219, %v977
        %v1284 = vmul.f32 %v1220, %v979
        %v1285 = vmul.f32 %v1221, %v983
        %v1286 = vmul.f32 %v1222, %v985
        %v1287 = vmul.f32 %v1223, %v987
        %v1288 = vmul.f32 %v1224, %v989
        %v1289 = vmul.f32 %v1225, %v993
        %v1290 = vmul.f32 %v1226, %v995
        %v1291 = vmul.f32 %v1227, %v997
        %v1292 = vmul.f32 %v1228, %v999
        %v1293 = vmul.f32 %v1229, %v1003
        %v1294 = vmul.f32 %v1230, %v1005
        %v1295 = vmul.f32 %v1231, %v1007
        %v1296 = vmul.f32 %v1232, %v1009
        %v1297 = vmul.f32 %v1233, %v1013
        %v1298 = vmul.f32 %v1234, %v1015
        %v1299 = vmul.f32 %v1235, %v1017
        %v1300 = vmul.f32 %v1236, %v1019
        %v1301 = vmul.f32 %v1237, %v1023
        %v1302 = vmul.f32 %v1238, %v1025
        %v1303 = vmul.f32 %v1239, %v1027
        %v1304 = vmul.f32 %v1240, %v1029
        %v1305 = vmul.f32 %v1241, %v1033
        %v1306 = vmul.f32 %v1242, %v1035
        %v1307 = vmul.f32 %v1243, %v1037
        %v1308 = vmul.f32 %v1244, %v1039
        %v1309 = vmul.f32 %v1245, %v1043
        %v1310 = vmul.f32 %v1246, %v1045
        %v1311 = vmul.f32 %v1247, %v1047
        %v1312 = vmul.f32 %v1248, %v1049
        %v1313 = vmul.f32 %v1249, %v1053
        %v1314 = vmul.f32 %v1250, %v1055
        %v1315 = vmul.f32 %v1251, %v1057
        %v1316 = vmul.f32 %v1252, %v1059
        %v1317 = vadd.f32 %v903, %v1253
        %v1318 = vadd.f32 %v905, %v1254
        %v1319 = vadd.f32 %v907, %v1255
        %v1320 = vadd.f32 %v909, %v1256
        %v1321 = vadd.f32 %v913, %v1257
        %v1322 = vadd.f32 %v915, %v1258
        %v1323 = vadd.f32 %v917, %v1259
        %v1324 = vadd.f32 %v919, %v1260
        %v1325 = vadd.f32 %v923, %v1261
        %v1326 = vadd.f32 %v925, %v1262
        %v1327 = vadd.f32 %v927, %v1263
        %v1328 = vadd.f32 %v929, %v1264
        %v1329 = vadd.f32 %v933, %v1265
        %v1330 = vadd.f32 %v935, %v1266
        %v1331 = vadd.f32 %v937, %v1267
        %v1332 = vadd.f32 %v939, %v1268
        %v1333 = vadd.f32 %v943, %v1269
        %v1334 = vadd.f32 %v945, %v1270
        %v1335 = vadd.f32 %v947, %v1271
        %v1336 = vadd.f32 %v949, %v1272
        %v1337 = vadd.f32 %v953, %v1273
        %v1338 = vadd.f32 %v955, %v1274
        %v1339 = vadd.f32 %v957, %v1275
        %v1340 = vadd.f32 %v959, %v1276
        %v1341 = vadd.f32 %v963, %v1277
        %v1342 = vadd.f32 %v965, %v1278
        %v1343 = vadd.f32 %v967, %v1279
        %v1344 = vadd.f32 %v969, %v1280
        %v1345 = vadd.f32 %v973, %v1281
        %v1346 = vadd.f32 %v975, %v1282
        %v1347 = vadd.f32 %v977, %v1283
        %v1348 = vadd.f32 %v979, %v1284
        %v1349 = vadd.f32 %v983, %v1285
        %v1350 = vadd.f32 %v985, %v1286
        %v1351 = vadd.f32 %v987, %v1287
        %v1352 = vadd.f32 %v989, %v1288
        %v1353 = vadd.f32 %v993, %v1289
        %v1354 = vadd.f32 %v995, %v1290
        %v1355 = vadd.f32 %v997, %v1291
        %v1356 = vadd.f32 %v999, %v1292
        %v1357 = vadd.f32 %v1003, %v1293
        %v1358 = vadd.f32 %v1005, %v1294
        %v1359 = vadd.f32 %v1007, %v1295
        %v1360 = vadd.f32 %v1009, %v1296
        %v1361 = vadd.f32 %v1013, %v1297
        %v1362 = vadd.f32 %v1015, %v1298
        %v1363 = vadd.f32 %v1017, %v1299
        %v1364 = vadd.f32 %v1019, %v1300
        %v1365 = vadd.f32 %v1023, %v1301
        %v1366 = vadd.f32 %v1025, %v1302
        %v1367 = vadd.f32 %v1027, %v1303
        %v1368 = vadd.f32 %v1029, %v1304
        %v1369 = vadd.f32 %v1033, %v1305
        %v1370 = vadd.f32 %v1035, %v1306
        %v1371 = vadd.f32 %v1037, %v1307
        %v1372 = vadd.f32 %v1039, %v1308
        %v1373 = vadd.f32 %v1043, %v1309
        %v1374 = vadd.f32 %v1045, %v1310
        %v1375 = vadd.f32 %v1047, %v1311
        %v1376 = vadd.f32 %v1049, %v1312
        %v1377 = vadd.f32 %v1053, %v1313
        %v1378 = vadd.f32 %v1055, %v1314
        %v1379 = vadd.f32 %v1057, %v1315
        %v1380 = vadd.f32 %v1059, %v1316
        %v1381 = vmul.f32 %v1317, 0.7978846
        %v1382 = vmul.f32 %v1318, 0.7978846
        %v1383 = vmul.f32 %v1319, 0.7978846
        %v1384 = vmul.f32 %v1320, 0.7978846
        %v1385 = vmul.f32 %v1321, 0.7978846
        %v1386 = vmul.f32 %v1322, 0.7978846
        %v1387 = vmul.f32 %v1323, 0.7978846
        %v1388 = vmul.f32 %v1324, 0.7978846
        %v1389 = vmul.f32 %v1325, 0.7978846
        %v1390 = vmul.f32 %v1326, 0.7978846
        %v1391 = vmul.f32 %v1327, 0.7978846
        %v1392 = vmul.f32 %v1328, 0.7978846
        %v1393 = vmul.f32 %v1329, 0.7978846
        %v1394 = vmul.f32 %v1330, 0.7978846
        %v1395 = vmul.f32 %v1331, 0.7978846
        %v1396 = vmul.f32 %v1332, 0.7978846
        %v1397 = vmul.f32 %v1333, 0.7978846
        %v1398 = vmul.f32 %v1334, 0.7978846
        %v1399 = vmul.f32 %v1335, 0.7978846
        %v1400 = vmul.f32 %v1336, 0.7978846
        %v1401 = vmul.f32 %v1337, 0.7978846
        %v1402 = vmul.f32 %v1338, 0.7978846
        %v1403 = vmul.f32 %v1339, 0.7978846
        %v1404 = vmul.f32 %v1340, 0.7978846
        %v1405 = vmul.f32 %v1341, 0.7978846
        %v1406 = vmul.f32 %v1342, 0.7978846
        %v1407 = vmul.f32 %v1343, 0.7978846
        %v1408 = vmul.f32 %v1344, 0.7978846
        %v1409 = vmul.f32 %v1345, 0.7978846
        %v1410 = vmul.f32 %v1346, 0.7978846
        %v1411 = vmul.f32 %v1347, 0.7978846
        %v1412 = vmul.f32 %v1348, 0.7978846
        %v1413 = vmul.f32 %v1349, 0.7978846
        %v1414 = vmul.f32 %v1350, 0.7978846
        %v1415 = vmul.f32 %v1351, 0.7978846
        %v1416 = vmul.f32 %v1352, 0.7978846
        %v1417 = vmul.f32 %v1353, 0.7978846
        %v1418 = vmul.f32 %v1354, 0.7978846
        %v1419 = vmul.f32 %v1355, 0.7978846
        %v1420 = vmul.f32 %v1356, 0.7978846
        %v1421 = vmul.f32 %v1357, 0.7978846
        %v1422 = vmul.f32 %v1358, 0.7978846
        %v1423 = vmul.f32 %v1359, 0.7978846
        %v1424 = vmul.f32 %v1360, 0.7978846
        %v1425 = vmul.f32 %v1361, 0.7978846
        %v1426 = vmul.f32 %v1362, 0.7978846
        %v1427 = vmul.f32 %v1363, 0.7978846
        %v1428 = vmul.f32 %v1364, 0.7978846
        %v1429 = vmul.f32 %v1365, 0.7978846
        %v1430 = vmul.f32 %v1366, 0.7978846
        %v1431 = vmul.f32 %v1367, 0.7978846
        %v1432 = vmul.f32 %v1368, 0.7978846
        %v1433 = vmul.f32 %v1369, 0.7978846
        %v1434 = vmul.f32 %v1370, 0.7978846
        %v1435 = vmul.f32 %v1371, 0.7978846
        %v1436 = vmul.f32 %v1372, 0.7978846
        %v1437 = vmul.f32 %v1373, 0.7978846
        %v1438 = vmul.f32 %v1374, 0.7978846
        %v1439 = vmul.f32 %v1375, 0.7978846
        %v1440 = vmul.f32 %v1376, 0.7978846
        %v1441 = vmul.f32 %v1377, 0.7978846
        %v1442 = vmul.f32 %v1378, 0.7978846
        %v1443 = vmul.f32 %v1379, 0.7978846
        %v1444 = vmul.f32 %v1380, 0.7978846
        %v1445 = vtanh.pop %v1381
        %v1446 = vtanh.pop %v1382
        %v1447 = vtanh.pop %v1383
        %v1448 = vtanh.pop %v1384
        %v1449 = vtanh.pop %v1385
        %v1450 = vtanh.pop %v1386
        %v1451 = vtanh.pop %v1387
        %v1452 = vtanh.pop %v1388
        %v1453 = vtanh.pop %v1389
        %v1454 = vtanh.pop %v1390
        %v1455 = vtanh.pop %v1391
        %v1456 = vtanh.pop %v1392
        %v1457 = vtanh.pop %v1393
        %v1458 = vtanh.pop %v1394
        %v1459 = vtanh.pop %v1395
        %v1460 = vtanh.pop %v1396
        %v1461 = vtanh.pop %v1397
        %v1462 = vtanh.pop %v1398
        %v1463 = vtanh.pop %v1399
        %v1464 = vtanh.pop %v1400
        %v1465 = vtanh.pop %v1401
        %v1466 = vtanh.pop %v1402
        %v1467 = vtanh.pop %v1403
        %v1468 = vtanh.pop %v1404
        %v1469 = vtanh.pop %v1405
        %v1470 = vtanh.pop %v1406
        %v1471 = vtanh.pop %v1407
        %v1472 = vtanh.pop %v1408
        %v1473 = vtanh.pop %v1409
        %v1474 = vtanh.pop %v1410
        %v1475 = vtanh.pop %v1411
        %v1476 = vtanh.pop %v1412
        %v1477 = vtanh.pop %v1413
        %v1478 = vtanh.pop %v1414
        %v1479 = vtanh.pop %v1415
        %v1480 = vtanh.pop %v1416
        %v1481 = vtanh.pop %v1417
        %v1482 = vtanh.pop %v1418
        %v1483 = vtanh.pop %v1419
        %v1484 = vtanh.pop %v1420
        %v1485 = vtanh.pop %v1421
        %v1486 = vtanh.pop %v1422
        %v1487 = vtanh.pop %v1423
        %v1488 = vtanh.pop %v1424
        %v1489 = vtanh.pop %v1425
        %v1490 = vtanh.pop %v1426
        %v1491 = vtanh.pop %v1427
        %v1492 = vtanh.pop %v1428
        %v1493 = vtanh.pop %v1429
        %v1494 = vtanh.pop %v1430
        %v1495 = vtanh.pop %v1431
        %v1496 = vtanh.pop %v1432
        %v1497 = vtanh.pop %v1433
        %v1498 = vtanh.pop %v1434
        %v1499 = vtanh.pop %v1435
        %v1500 = vtanh.pop %v1436
        %v1501 = vtanh.pop %v1437
        %v1502 = vtanh.pop %v1438
        %v1503 = vtanh.pop %v1439
        %v1504 = vtanh.pop %v1440
        %v1505 = vtanh.pop %v1441
        %v1506 = vtanh.pop %v1442
        %v1507 = vtanh.pop %v1443
        %v1508 = vtanh.pop %v1444
        %v1509 = vadd.f32 %v1445, 1.0
        %v1510 = vadd.f32 %v1446, 1.0
        %v1511 = vadd.f32 %v1447, 1.0
        %v1512 = vadd.f32 %v1448, 1.0
        %v1513 = vadd.f32 %v1449, 1.0
        %v1514 = vadd.f32 %v1450, 1.0
        %v1515 = vadd.f32 %v1451, 1.0
        %v1516 = vadd.f32 %v1452, 1.0
        %v1517 = vadd.f32 %v1453, 1.0
        %v1518 = vadd.f32 %v1454, 1.0
        %v1519 = vadd.f32 %v1455, 1.0
        %v1520 = vadd.f32 %v1456, 1.0
        %v1521 = vadd.f32 %v1457, 1.0
        %v1522 = vadd.f32 %v1458, 1.0
        %v1523 = vadd.f32 %v1459, 1.0
        %v1524 = vadd.f32 %v1460, 1.0
        %v1525 = vadd.f32 %v1461, 1.0
        %v1526 = vadd.f32 %v1462, 1.0
        %v1527 = vadd.f32 %v1463, 1.0
        %v1528 = vadd.f32 %v1464, 1.0
        %v1529 = vadd.f32 %v1465, 1.0
        %v1530 = vadd.f32 %v1466, 1.0
        %v1531 = vadd.f32 %v1467, 1.0
        %v1532 = vadd.f32 %v1468, 1.0
        %v1533 = vadd.f32 %v1469, 1.0
        %v1534 = vadd.f32 %v1470, 1.0
        %v1535 = vadd.f32 %v1471, 1.0
        %v1536 = vadd.f32 %v1472, 1.0
        %v1537 = vadd.f32 %v1473, 1.0
        %v1538 = vadd.f32 %v1474, 1.0
        %v1539 = vadd.f32 %v1475, 1.0
        %v1540 = vadd.f32 %v1476, 1.0
        %v1541 = vadd.f32 %v1477, 1.0
        %v1542 = vadd.f32 %v1478, 1.0
        %v1543 = vadd.f32 %v1479, 1.0
        %v1544 = vadd.f32 %v1480, 1.0
        %v1545 = vadd.f32 %v1481, 1.0
        %v1546 = vadd.f32 %v1482, 1.0
        %v1547 = vadd.f32 %v1483, 1.0
        %v1548 = vadd.f32 %v1484, 1.0
        %v1549 = vadd.f32 %v1485, 1.0
        %v1550 = vadd.f32 %v1486, 1.0
        %v1551 = vadd.f32 %v1487, 1.0
        %v1552 = vadd.f32 %v1488, 1.0
        %v1553 = vadd.f32 %v1489, 1.0
        %v1554 = vadd.f32 %v1490, 1.0
        %v1555 = vadd.f32 %v1491, 1.0
        %v1556 = vadd.f32 %v1492, 1.0
        %v1557 = vadd.f32 %v1493, 1.0
        %v1558 = vadd.f32 %v1494, 1.0
        %v1559 = vadd.f32 %v1495, 1.0
        %v1560 = vadd.f32 %v1496, 1.0
        %v1561 = vadd.f32 %v1497, 1.0
        %v1562 = vadd.f32 %v1498, 1.0
        %v1563 = vadd.f32 %v1499, 1.0
        %v1564 = vadd.f32 %v1500, 1.0
        %v1565 = vadd.f32 %v1501, 1.0
        %v1566 = vadd.f32 %v1502, 1.0
        %v1567 = vadd.f32 %v1503, 1.0
        %v1568 = vadd.f32 %v1504, 1.0
        %v1569 = vadd.f32 %v1505, 1.0
        %v1570 = vadd.f32 %v1506, 1.0
        %v1571 = vadd.f32 %v1507, 1.0
        %v1572 = vadd.f32 %v1508, 1.0
        %v1573 = vmul.f32 %v1061, %v1509
        %v1574 = vmul.f32 %v1062, %v1510
        %v1575 = vmul.f32 %v1063, %v1511
        %v1576 = vmul.f32 %v1064, %v1512
        %v1577 = vmul.f32 %v1065, %v1513
        %v1578 = vmul.f32 %v1066, %v1514
        %v1579 = vmul.f32 %v1067, %v1515
        %v1580 = vmul.f32 %v1068, %v1516
        %v1581 = vmul.f32 %v1069, %v1517
        %v1582 = vmul.f32 %v1070, %v1518
        %v1583 = vmul.f32 %v1071, %v1519
        %v1584 = vmul.f32 %v1072, %v1520
        %v1585 = vmul.f32 %v1073, %v1521
        %v1586 = vmul.f32 %v1074, %v1522
        %v1587 = vmul.f32 %v1075, %v1523
        %v1588 = vmul.f32 %v1076, %v1524
        %v1589 = vmul.f32 %v1077, %v1525
        %v1590 = vmul.f32 %v1078, %v1526
        %v1591 = vmul.f32 %v1079, %v1527
        %v1592 = vmul.f32 %v1080, %v1528
        %v1593 = vmul.f32 %v1081, %v1529
        %v1594 = vmul.f32 %v1082, %v1530
        %v1595 = vmul.f32 %v1083, %v1531
        %v1596 = vmul.f32 %v1084, %v1532
        %v1597 = vmul.f32 %v1085, %v1533
        %v1598 = vmul.f32 %v1086, %v1534
        %v1599 = vmul.f32 %v1087, %v1535
        %v1600 = vmul.f32 %v1088, %v1536
        %v1601 = vmul.f32 %v1089, %v1537
        %v1602 = vmul.f32 %v1090, %v1538
        %v1603 = vmul.f32 %v1091, %v1539
        %v1604 = vmul.f32 %v1092, %v1540
        %v1605 = vmul.f32 %v1093, %v1541
        %v1606 = vmul.f32 %v1094, %v1542
        %v1607 = vmul.f32 %v1095, %v1543
        %v1608 = vmul.f32 %v1096, %v1544
        %v1609 = vmul.f32 %v1097, %v1545
        %v1610 = vmul.f32 %v1098, %v1546
        %v1611 = vmul.f32 %v1099, %v1547
        %v1612 = vmul.f32 %v1100, %v1548
        %v1613 = vmul.f32 %v1101, %v1549
        %v1614 = vmul.f32 %v1102, %v1550
        %v1615 = vmul.f32 %v1103, %v1551
        %v1616 = vmul.f32 %v1104, %v1552
        %v1617 = vmul.f32 %v1105, %v1553
        %v1618 = vmul.f32 %v1106, %v1554
        %v1619 = vmul.f32 %v1107, %v1555
        %v1620 = vmul.f32 %v1108, %v1556
        %v1621 = vmul.f32 %v1109, %v1557
        %v1622 = vmul.f32 %v1110, %v1558
        %v1623 = vmul.f32 %v1111, %v1559
        %v1624 = vmul.f32 %v1112, %v1560
        %v1625 = vmul.f32 %v1113, %v1561
        %v1626 = vmul.f32 %v1114, %v1562
        %v1627 = vmul.f32 %v1115, %v1563
        %v1628 = vmul.f32 %v1116, %v1564
        %v1629 = vmul.f32 %v1117, %v1565
        %v1630 = vmul.f32 %v1118, %v1566
        %v1631 = vmul.f32 %v1119, %v1567
        %v1632 = vmul.f32 %v1120, %v1568
        %v1633 = vmul.f32 %v1121, %v1569
        %v1634 = vmul.f32 %v1122, %v1570
        %v1635 = vmul.f32 %v1123, %v1571
        %v1636 = vmul.f32 %v1124, %v1572
        %v1637 = vpack.c.bf16 %v1575, %v1573
        %v1638 = vpack.c.bf16 %v1576, %v1574
        %v1639 = vpack.c.bf16 %v1579, %v1577
        %v1640 = vpack.c.bf16 %v1580, %v1578
        %v1641 = vpack.c.bf16 %v1583, %v1581
        %v1642 = vpack.c.bf16 %v1584, %v1582
        %v1643 = vpack.c.bf16 %v1587, %v1585
        %v1644 = vpack.c.bf16 %v1588, %v1586
        %v1645 = vpack.c.bf16 %v1591, %v1589
        %v1646 = vpack.c.bf16 %v1592, %v1590
        %v1647 = vpack.c.bf16 %v1595, %v1593
        %v1648 = vpack.c.bf16 %v1596, %v1594
        %v1649 = vpack.c.bf16 %v1599, %v1597
        %v1650 = vpack.c.bf16 %v1600, %v1598
        %v1651 = vpack.c.bf16 %v1603, %v1601
        %v1652 = vpack.c.bf16 %v1604, %v1602
        %v1653 = vpack.c.bf16 %v1607, %v1605
        %v1654 = vpack.c.bf16 %v1608, %v1606
        %v1655 = vpack.c.bf16 %v1611, %v1609
        %v1656 = vpack.c.bf16 %v1612, %v1610
        %v1657 = vpack.c.bf16 %v1615, %v1613
        %v1658 = vpack.c.bf16 %v1616, %v1614
        %v1659 = vpack.c.bf16 %v1619, %v1617
        %v1660 = vpack.c.bf16 %v1620, %v1618
        %v1661 = vpack.c.bf16 %v1623, %v1621
        %v1662 = vpack.c.bf16 %v1624, %v1622
        %v1663 = vpack.c.bf16 %v1627, %v1625
        %v1664 = vpack.c.bf16 %v1628, %v1626
        %v1665 = vpack.c.bf16 %v1631, %v1629
        %v1666 = vpack.c.bf16 %v1632, %v1630
        %v1667 = vpack.c.bf16 %v1635, %v1633
        %v1668 = vpack.c.bf16 %v1636, %v1634
        %v1669 = vld [vmem:[%s5] sm:$0xf]
        %v1670 = vld [vmem:[%s5 + $0x4] sm:$0xf]
        %v1671 = vld [vmem:[%s5 + $0x8] sm:$0xf]
        %v1672 = vld [vmem:[%s5 + $0xc] sm:$0xf]
        %v1673 = vld [vmem:[%s5 + $0x10] sm:$0xf]
        %v1674 = vld [vmem:[%s5 + $0x14] sm:$0xf]
        %v1675 = vld [vmem:[%s5 + $0x18] sm:$0xf]
        %v1676 = vld [vmem:[%s5 + $0x1c] sm:$0xf]
        %v1677 = vld [vmem:[%s5 + $0x20] sm:$0xf]
        %v1678 = vld [vmem:[%s5 + $0x24] sm:$0xf]
        %v1679 = vld [vmem:[%s5 + $0x28] sm:$0xf]
        %v1680 = vld [vmem:[%s5 + $0x2c] sm:$0xf]
        %v1681 = vld [vmem:[%s5 + $0x30] sm:$0xf]
        %v1682 = vld [vmem:[%s5 + $0x34] sm:$0xf]
        %v1683 = vld [vmem:[%s5 + $0x38] sm:$0xf]
        %v1684 = vld [vmem:[%s5 + $0x3c] sm:$0xf]
        %v1685 = vld [vmem:[%s5 + $0x40] sm:$0xf]
        %v1686 = vld [vmem:[%s5 + $0x44] sm:$0xf]
        %v1687 = vld [vmem:[%s5 + $0x48] sm:$0xf]
        %v1688 = vld [vmem:[%s5 + $0x4c] sm:$0xf]
        %v1689 = vld [vmem:[%s5 + $0x50] sm:$0xf]
        %v1690 = vld [vmem:[%s5 + $0x54] sm:$0xf]
        %v1691 = vld [vmem:[%s5 + $0x58] sm:$0xf]
        %v1692 = vld [vmem:[%s5 + $0x5c] sm:$0xf]
        %v1693 = vld [vmem:[%s5 + $0x60] sm:$0xf]
        %v1694 = vld [vmem:[%s5 + $0x64] sm:$0xf]
        %v1695 = vld [vmem:[%s5 + $0x68] sm:$0xf]
        %v1696 = vld [vmem:[%s5 + $0x6c] sm:$0xf]
        %v1697 = vld [vmem:[%s5 + $0x70] sm:$0xf]
        %v1698 = vld [vmem:[%s5 + $0x74] sm:$0xf]
        %v1699 = vld [vmem:[%s5 + $0x78] sm:$0xf]
        %v1700 = vld [vmem:[%s5 + $0x7c] sm:$0xf]
        %v1701 = vld [vmem:[%s6] sm:$0x1]
        %v1703 = vlaneseq
        %v1704 = vshrl.u32 %v1703, 7
        %v1705 = vsub.s32 0, %v1704
        %v1706 = vrot.slane %v1701, %v1705
        %v1740 = vunpack.c.l.b16 %v1669
        %v1741 = vunpack.c.l.b16 %v1670
        %v1742 = vunpack.c.l.b16 %v1671
        %v1743 = vunpack.c.l.b16 %v1672
        %v1744 = vunpack.c.l.b16 %v1673
        %v1745 = vunpack.c.l.b16 %v1674
        %v1746 = vunpack.c.l.b16 %v1675
        %v1747 = vunpack.c.l.b16 %v1676
        %v1748 = vunpack.c.l.b16 %v1677
        %v1749 = vunpack.c.l.b16 %v1678
        %v1750 = vunpack.c.l.b16 %v1679
        %v1751 = vunpack.c.l.b16 %v1680
        %v1752 = vunpack.c.l.b16 %v1681
        %v1753 = vunpack.c.l.b16 %v1682
        %v1754 = vunpack.c.l.b16 %v1683
        %v1755 = vunpack.c.l.b16 %v1684
        %v1756 = vunpack.c.l.b16 %v1685
        %v1757 = vunpack.c.l.b16 %v1686
        %v1758 = vunpack.c.l.b16 %v1687
        %v1759 = vunpack.c.l.b16 %v1688
        %v1760 = vunpack.c.l.b16 %v1689
        %v1761 = vunpack.c.l.b16 %v1690
        %v1762 = vunpack.c.l.b16 %v1691
        %v1763 = vunpack.c.l.b16 %v1692
        %v1764 = vunpack.c.l.b16 %v1693
        %v1765 = vunpack.c.l.b16 %v1694
        %v1766 = vunpack.c.l.b16 %v1695
        %v1767 = vunpack.c.l.b16 %v1696
        %v1768 = vunpack.c.l.b16 %v1697
        %v1769 = vunpack.c.l.b16 %v1698
        %v1770 = vunpack.c.l.b16 %v1699
        %v1771 = vunpack.c.l.b16 %v1700
        %v1772 = vpack.c.b16 %v1741, %v1740
        %v1773 = vpack.c.b16 %v1743, %v1742
        %v1774 = vpack.c.b16 %v1745, %v1744
        %v1775 = vpack.c.b16 %v1747, %v1746
        %v1776 = vpack.c.b16 %v1749, %v1748
        %v1777 = vpack.c.b16 %v1751, %v1750
        %v1778 = vpack.c.b16 %v1753, %v1752
        %v1779 = vpack.c.b16 %v1755, %v1754
        %v1780 = vpack.c.b16 %v1757, %v1756
        %v1781 = vpack.c.b16 %v1759, %v1758
        %v1782 = vpack.c.b16 %v1761, %v1760
        %v1783 = vpack.c.b16 %v1763, %v1762
        %v1784 = vpack.c.b16 %v1765, %v1764
        %v1785 = vpack.c.b16 %v1767, %v1766
        %v1786 = vpack.c.b16 %v1769, %v1768
        %v1787 = vpack.c.b16 %v1771, %v1770
        %1804 = vmatprep.subr.bf16.mxu0 0
        %1805 = vmatpush1.bf16.msra.mxu0 %v1772
        %1806 = vmatprep.subr.bf16.mxu0 0
        %1807 = vmatpush1.bf16.msra.mxu0 %v1773
        %1808 = vmatprep.subr.bf16.mxu0 0
        %1809 = vmatpush1.bf16.msra.mxu0 %v1774
        %1810 = vmatprep.subr.bf16.mxu0 0
        %1811 = vmatpush1.bf16.msra.mxu0 %v1775
        %1812 = vmatprep.subr.bf16.mxu0 0
        %1813 = vmatpush1.bf16.msra.mxu0 %v1776
        %1814 = vmatprep.subr.bf16.mxu0 0
        %1815 = vmatpush1.bf16.msra.mxu0 %v1777
        %1816 = vmatprep.subr.bf16.mxu0 0
        %1817 = vmatpush1.bf16.msra.mxu0 %v1778
        %1818 = vmatprep.subr.bf16.mxu0 0
        %1819 = vmatpush1.bf16.msra.mxu0 %v1779
        %1820 = vmatprep.subr.bf16.mxu0 0
        %1821 = vmatpush1.bf16.msra.mxu0 %v1780
        %1822 = vmatprep.subr.bf16.mxu0 0
        %1823 = vmatpush1.bf16.msra.mxu0 %v1781
        %1824 = vmatprep.subr.bf16.mxu0 0
        %1825 = vmatpush1.bf16.msra.mxu0 %v1782
        %1826 = vmatprep.subr.bf16.mxu0 0
        %1827 = vmatpush1.bf16.msra.mxu0 %v1783
        %1828 = vmatprep.subr.bf16.mxu0 0
        %1829 = vmatpush1.bf16.msra.mxu0 %v1784
        %1830 = vmatprep.subr.bf16.mxu0 0
        %1831 = vmatpush1.bf16.msra.mxu0 %v1785
        %1832 = vmatprep.subr.bf16.mxu0 0
        %1833 = vmatpush1.bf16.msra.mxu0 %v1786
        %1834 = vmatprep.subr.bf16.mxu0 0
        %1835 = vmatpush1.bf16.msra.mxu0 %v1787
        %1836 = vmatprep.mubr.bf16.mxu0 %v1638
        %1837 = vmatmul.mubr.bf16.gmra.mrb[0].mxu0 %v1637
        %v1838 = vpop.f32.mrb[0].mxu0
        %v1839 = vadd.f32 %v1706, %v1838
        %v1840 = vpop.f32.mrb[0].mxu0
        %v1841 = vpop.f32.mrb[0].mxu0
        %v1842 = vadd.f32 %v1706, %v1841
        %v1843 = vpop.f32.mrb[0].mxu0
        %1844 = vmatprep.mubr.bf16.mxu0 %v1640
        %1845 = vmatmul.mubr.bf16.gmra.mrb[0].mxu0 %v1639
        %v1846 = vpop.f32.mrb[0].mxu0
        %v1847 = vadd.f32 %v1706, %v1846
        %v1848 = vpop.f32.mrb[0].mxu0
        %v1849 = vpop.f32.mrb[0].mxu0
        %v1850 = vadd.f32 %v1706, %v1849
        %v1851 = vpop.f32.mrb[0].mxu0
        %1852 = vmatprep.mubr.bf16.mxu0 %v1642
        %1853 = vmatmul.mubr.bf16.gmra.mrb[0].mxu0 %v1641
        %v1854 = vpop.f32.mrb[0].mxu0
        %v1855 = vadd.f32 %v1706, %v1854
        %v1856 = vpop.f32.mrb[0].mxu0
        %v1857 = vpop.f32.mrb[0].mxu0
        %v1858 = vadd.f32 %v1706, %v1857
        %v1859 = vpop.f32.mrb[0].mxu0
        %1860 = vmatprep.mubr.bf16.mxu0 %v1644
        %1861 = vmatmul.mubr.bf16.gmra.mrb[0].mxu0 %v1643
        %v1862 = vpop.f32.mrb[0].mxu0
        %v1863 = vadd.f32 %v1706, %v1862
        %v1864 = vpop.f32.mrb[0].mxu0
        %v1865 = vpop.f32.mrb[0].mxu0
        %v1866 = vadd.f32 %v1706, %v1865
        %v1867 = vpop.f32.mrb[0].mxu0
        %1868 = vmatprep.mubr.bf16.mxu0 %v1646
        %1869 = vmatmul.mubr.bf16.gmra.mrb[0].mxu0 %v1645
        %v1870 = vpop.f32.mrb[0].mxu0
        %v1871 = vadd.f32 %v1706, %v1870
        %v1872 = vpop.f32.mrb[0].mxu0
        %v1873 = vpop.f32.mrb[0].mxu0
        %v1874 = vadd.f32 %v1706, %v1873
        %v1875 = vpop.f32.mrb[0].mxu0
        %1876 = vmatprep.mubr.bf16.mxu0 %v1648
        %1877 = vmatmul.mubr.bf16.gmra.mrb[0].mxu0 %v1647
        %v1878 = vpop.f32.mrb[0].mxu0
        %v1879 = vadd.f32 %v1706, %v1878
        %v1880 = vpop.f32.mrb[0].mxu0
        %v1881 = vpop.f32.mrb[0].mxu0
        %v1882 = vadd.f32 %v1706, %v1881
        %v1883 = vpop.f32.mrb[0].mxu0
        %1884 = vmatprep.mubr.bf16.mxu0 %v1650
        %1885 = vmatmul.mubr.bf16.gmra.mrb[0].mxu0 %v1649
        %v1886 = vpop.f32.mrb[0].mxu0
        %v1887 = vadd.f32 %v1706, %v1886
        %v1888 = vpop.f32.mrb[0].mxu0
        %v1889 = vpop.f32.mrb[0].mxu0
        %v1890 = vadd.f32 %v1706, %v1889
        %v1891 = vpop.f32.mrb[0].mxu0
        %1892 = vmatprep.mubr.bf16.mxu0 %v1652
        %1893 = vmatmul.mubr.bf16.gmra.mrb[0].mxu0 %v1651
        %v1894 = vpop.f32.mrb[0].mxu0
        %v1895 = vadd.f32 %v1706, %v1894
        %v1896 = vpop.f32.mrb[0].mxu0
        %v1897 = vpop.f32.mrb[0].mxu0
        %v1898 = vadd.f32 %v1706, %v1897
        %v1899 = vpop.f32.mrb[0].mxu0
        %1900 = vmatprep.mubr.bf16.mxu0 %v1654
        %1901 = vmatmul.mubr.bf16.gmra.mrb[0].mxu0 %v1653
        %v1902 = vpop.f32.mrb[0].mxu0
        %v1903 = vadd.f32 %v1706, %v1902
        %v1904 = vpop.f32.mrb[0].mxu0
        %v1905 = vpop.f32.mrb[0].mxu0
        %v1906 = vadd.f32 %v1706, %v1905
        %v1907 = vpop.f32.mrb[0].mxu0
        %1908 = vmatprep.mubr.bf16.mxu0 %v1656
        %1909 = vmatmul.mubr.bf16.gmra.mrb[0].mxu0 %v1655
        %v1910 = vpop.f32.mrb[0].mxu0
        %v1911 = vadd.f32 %v1706, %v1910
        %v1912 = vpop.f32.mrb[0].mxu0
        %v1913 = vpop.f32.mrb[0].mxu0
        %v1914 = vadd.f32 %v1706, %v1913
        %v1915 = vpop.f32.mrb[0].mxu0
        %1916 = vmatprep.mubr.bf16.mxu0 %v1658
        %1917 = vmatmul.mubr.bf16.gmra.mrb[0].mxu0 %v1657
        %v1918 = vpop.f32.mrb[0].mxu0
        %v1919 = vadd.f32 %v1706, %v1918
        %v1920 = vpop.f32.mrb[0].mxu0
        %v1921 = vpop.f32.mrb[0].mxu0
        %v1922 = vadd.f32 %v1706, %v1921
        %v1923 = vpop.f32.mrb[0].mxu0
        %1924 = vmatprep.mubr.bf16.mxu0 %v1660
        %1925 = vmatmul.mubr.bf16.gmra.mrb[0].mxu0 %v1659
        %v1926 = vpop.f32.mrb[0].mxu0
        %v1927 = vadd.f32 %v1706, %v1926
        %v1928 = vpop.f32.mrb[0].mxu0
        %v1929 = vpop.f32.mrb[0].mxu0
        %v1930 = vadd.f32 %v1706, %v1929
        %v1931 = vpop.f32.mrb[0].mxu0
        %1932 = vmatprep.mubr.bf16.mxu0 %v1662
        %1933 = vmatmul.mubr.bf16.gmra.mrb[0].mxu0 %v1661
        %v1934 = vpop.f32.mrb[0].mxu0
        %v1935 = vadd.f32 %v1706, %v1934
        %v1936 = vpop.f32.mrb[0].mxu0
        %v1937 = vpop.f32.mrb[0].mxu0
        %v1938 = vadd.f32 %v1706, %v1937
        %v1939 = vpop.f32.mrb[0].mxu0
        %1940 = vmatprep.mubr.bf16.mxu0 %v1664
        %1941 = vmatmul.mubr.bf16.gmra.mrb[0].mxu0 %v1663
        %v1942 = vpop.f32.mrb[0].mxu0
        %v1943 = vadd.f32 %v1706, %v1942
        %v1944 = vpop.f32.mrb[0].mxu0
        %v1945 = vpop.f32.mrb[0].mxu0
        %v1946 = vadd.f32 %v1706, %v1945
        %v1947 = vpop.f32.mrb[0].mxu0
        %1948 = vmatprep.mubr.bf16.mxu0 %v1666
        %1949 = vmatmul.mubr.bf16.gmra.mrb[0].mxu0 %v1665
        %v1950 = vpop.f32.mrb[0].mxu0
        %v1951 = vadd.f32 %v1706, %v1950
        %v1952 = vpop.f32.mrb[0].mxu0
        %v1953 = vpop.f32.mrb[0].mxu0
        %v1954 = vadd.f32 %v1706, %v1953
        %v1955 = vpop.f32.mrb[0].mxu0
        %1956 = vmatprep.mubr.bf16.mxu0 %v1668
        %1957 = vmatmul.mubr.bf16.gmra.mrb[0].mxu0 %v1667
        %v1958 = vpop.f32.mrb[0].mxu0
        %v1959 = vadd.f32 %v1706, %v1958
        %v1960 = vpop.f32.mrb[0].mxu0
        %v1961 = vpop.f32.mrb[0].mxu0
        %v1962 = vadd.f32 %v1706, %v1961
        %v1963 = vpop.f32.mrb[0].mxu0
        %1964 = vdwg.mxu0
        %v1965 = vadd.f32 %v281, %v1839
        %v1966 = vadd.f32 %v282, %v1842
        %v1967 = vadd.f32 %v283, %v1847
        %v1968 = vadd.f32 %v284, %v1850
        %v1969 = vadd.f32 %v285, %v1855
        %v1970 = vadd.f32 %v286, %v1858
        %v1971 = vadd.f32 %v287, %v1863
        %v1972 = vadd.f32 %v288, %v1866
        %v1973 = vadd.f32 %v289, %v1871
        %v1974 = vadd.f32 %v290, %v1874
        %v1975 = vadd.f32 %v291, %v1879
        %v1976 = vadd.f32 %v292, %v1882
        %v1977 = vadd.f32 %v293, %v1887
        %v1978 = vadd.f32 %v294, %v1890
        %v1979 = vadd.f32 %v295, %v1895
        %v1980 = vadd.f32 %v296, %v1898
        %v1981 = vadd.f32 %v297, %v1903
        %v1982 = vadd.f32 %v298, %v1906
        %v1983 = vadd.f32 %v299, %v1911
        %v1984 = vadd.f32 %v300, %v1914
        %v1985 = vadd.f32 %v301, %v1919
        %v1986 = vadd.f32 %v302, %v1922
        %v1987 = vadd.f32 %v303, %v1927
        %v1988 = vadd.f32 %v304, %v1930
        %v1989 = vadd.f32 %v305, %v1935
        %v1990 = vadd.f32 %v306, %v1938
        %v1991 = vadd.f32 %v307, %v1943
        %v1992 = vadd.f32 %v308, %v1946
        %v1993 = vadd.f32 %v309, %v1951
        %v1994 = vadd.f32 %v310, %v1954
        %v1995 = vadd.f32 %v311, %v1959
        %v1996 = vadd.f32 %v312, %v1962
        %1997 = vst [vmem:[%s272] sm:$0xff] %v1965
        %1998 = vst [vmem:[%s272 + $0x8] sm:$0xff] %v1966
        %1999 = vst [vmem:[%s272 + $0x10] sm:$0xff] %v1967
        %2000 = vst [vmem:[%s272 + $0x18] sm:$0xff] %v1968
        %2001 = vst [vmem:[%s272 + $0x20] sm:$0xff] %v1969
        %2002 = vst [vmem:[%s272 + $0x28] sm:$0xff] %v1970
        %2003 = vst [vmem:[%s272 + $0x30] sm:$0xff] %v1971
        %2004 = vst [vmem:[%s272 + $0x38] sm:$0xff] %v1972
        %2005 = vst [vmem:[%s272 + $0x40] sm:$0xff] %v1973
        %2006 = vst [vmem:[%s272 + $0x48] sm:$0xff] %v1974
        %2007 = vst [vmem:[%s272 + $0x50] sm:$0xff] %v1975
        %2008 = vst [vmem:[%s272 + $0x58] sm:$0xff] %v1976
        %2009 = vst [vmem:[%s272 + $0x60] sm:$0xff] %v1977
        %2010 = vst [vmem:[%s272 + $0x68] sm:$0xff] %v1978
        %2011 = vst [vmem:[%s272 + $0x70] sm:$0xff] %v1979
        %2012 = vst [vmem:[%s272 + $0x78] sm:$0xff] %v1980
        %2013 = vst [vmem:[%s272 + $0x80] sm:$0xff] %v1981
        %2014 = vst [vmem:[%s272 + $0x88] sm:$0xff] %v1982
        %2015 = vst [vmem:[%s272 + $0x90] sm:$0xff] %v1983
        %2016 = vst [vmem:[%s272 + $0x98] sm:$0xff] %v1984
        %2017 = vst [vmem:[%s272 + $0xa0] sm:$0xff] %v1985
        %2018 = vst [vmem:[%s272 + $0xa8] sm:$0xff] %v1986
        %2019 = vst [vmem:[%s272 + $0xb0] sm:$0xff] %v1987
        %2020 = vst [vmem:[%s272 + $0xb8] sm:$0xff] %v1988
        %2021 = vst [vmem:[%s272 + $0xc0] sm:$0xff] %v1989
        %2022 = vst [vmem:[%s272 + $0xc8] sm:$0xff] %v1990
        %2023 = vst [vmem:[%s272 + $0xd0] sm:$0xff] %v1991
        %2024 = vst [vmem:[%s272 + $0xd8] sm:$0xff] %v1992
        %2025 = vst [vmem:[%s272 + $0xe0] sm:$0xff] %v1993
        %2026 = vst [vmem:[%s272 + $0xe8] sm:$0xff] %v1994
        %2027 = vst [vmem:[%s272 + $0xf0] sm:$0xff] %v1995
        %2028 = vst [vmem:[%s272 + $0xf8] sm:$0xff] %v1996
        %s2029 = sand.u32 %s181, 1
        %s2030 = scalar_lea.sflag [#allocation3], %s2029
        %s2031 = sand.u32 %s181, 1
        %s2032 = smul.addr %s2031, 256
        %s2033 = scalar_lea.vmem [#allocation2], %s2032
        // Predicated region
        $region49: #{stu_block_forward.3} parent=47 // pred_check
          %p2034 = pneg %p191
        $region50: #{stu_block_forward.3} parent=47 // pred_check_branch
          %2036 = sbr.rel (%p2034) target = $region52
        $region51: #{stu_block_forward.3} parent=47 // pred_region
          %s2037 = smul.u32 32, %s21
          %s2039 = ssub.s32 4096, 4096
          %2040 = vsyncadd %s2030, %s2039
          %s2041 = smul.addr %s2037, 128
          %s2042 = scalar_lea.hbm %s7, %s2041
          %s2043 = sshll.u32 %s2033, 4
          %s2044 = int_to_ptr.vmem [resolvable:$true] %s2043
          %2049 = dma.vmem_to_hbm [thread:$0]  %s2044, 4096, %s2042, %s2030, 128, 128, 8
        $region52: #{stu_block_forward.3} parent=47 // pred_fallthru
          _
      $region48: #{stu_block_forward.3} parent=5 // pred_fallthru
        _
      %p2050 = scmp.le.s32.totalorder 2, %s16
      // Predicated region
      $region53: #{stu_block_forward.3} parent=5 // pred_check
        %p2051 = pneg %p2050
      $region54: #{stu_block_forward.3} parent=5 // pred_check_branch
        %2053 = sbr.rel (%p2051) target = $region56
      $region55: #{stu_block_forward.3} parent=5 // pred_region
        %s2054 = ssub.s32 %s16, 2
        // Predicated region
        $region57: #{stu_block_forward.3} parent=55 // pred_check
          %p2055 = pneg %p197
        $region58: #{stu_block_forward.3} parent=55 // pred_check_branch
          %2057 = sbr.rel (%p2055) target = $region60
        $region59: #{stu_block_forward.3} parent=55 // pred_region
          %s2058 = sand.u32 %s182, 1
          %s2059 = scalar_lea.sflag [#allocation3], %s2058
          %s2060 = sand.u32 %s182, 1
          %s2061 = smul.addr %s2060, 256
          %s2062 = scalar_lea.vmem [#allocation2], %s2061
          %2063 = dma.done %s2059, 4096
        $region60: #{stu_block_forward.3} parent=55 // pred_fallthru
          _
      $region56: #{stu_block_forward.3} parent=5 // pred_fallthru
        _
    $region6: #{stu_block_forward.3} parent=1 // loop_footer
      %s20 = sadd.s32 1, %s16
    $region7: #{stu_block_forward.3} parent=1 // loop_footer_branch
      %15 = sbr.rel target = $region3
    $region8: #{stu_block_forward.3} parent=1 // loop_exit
      _
    %2064 = vsyncpa [#allocation3], 1
    %s2065 = scalar_lea.sflag [#allocation3], 1
    %2066 = vsyncpa %s2065, 1

// kernel: stu_block_forward.2
$region0: #{stu_block_forward.2}
  #allocation0 [shape = 'u32[]', space=smem, size = 0x4, offset = 0x4, fixed_abs, tag = 'smem constant byte address 0x4 - core index']
  #allocation1 [shape = 'u32[144,128]{1,0:T(1,128)}', space=vmem, size = 0x12000, scoped, tag = 'internal scratch']
  #allocation2 [shape = 'bf16[128,1024]{1,0:T(16,128)(2,1)}', space=vmem, size = 0x40000, scoped, tag = 'scratch operand']
  %s0 = inlined_call_operand.hbm [shape: bf16[2,1024,256], index: 0, kind: input, shape index: {}]
  %s1 = inlined_call_operand.vmem [shape: bf16[256,256], index: 1, kind: input, shape index: {}]
  %s2 = inlined_call_operand.vmem [shape: bf16[1024,128], index: 2, kind: input, shape index: {}]
  %s3 = inlined_call_operand.vmem [shape: f32[2,256,128], index: 3, kind: input, shape index: {}]
  %s4 = inlined_call_operand.vmem [shape: f32[2,256,128], index: 4, kind: output, shape index: {}]
  %s5 = sld [smem:[#allocation0]]
  $region125: #{stu_block_forward.2} parent=0
    _
  %s7 = ssub.s32 1, %s5
  %s8 = scalar_select 0, %s7, %s5
  $region1: #{stu_block_forward.2} parent=0
    #allocation3 [shape = 'u8[1048576]{0}', space=vmem, size = 0x100000, scoped, tag = 'input window, operand 0']
    #allocation4 [shape = 's32[2]{0}', space=sflag, size = 0x8, scoped, tag = 'scoped memory for stu_block_forward.2']
    #allocation5 [shape = 'u8[262144]{0}', space=vmem, size = 0x40000, scoped, tag = 'input window, operand 3']
    #allocation6 [shape = 'u8[262144]{0}', space=vmem, size = 0x40000, scoped, tag = 'output window, operand 0']
    %9 = vsyncpa [#allocation4], 0
    %s10 = scalar_lea.sflag [#allocation4], 1
    %11 = vsyncpa %s10, 0
    loop: start=0, step=1, limit=4
    $region2: #{stu_block_forward.2} parent=1 // loop_pre_header
      _
    $region3: #{stu_block_forward.2} parent=1 // loop_header
      %s13 = sphi 0, %s17
      %p14 = scmp.ge.s32.totalorder %s13, 4
      %s23 = sphi 0, %s25
      %s26 = sphi 0, %s23
      %s27 = sphi 0, %s26
      %s43 = sphi 0, %s27
      %s47 = sphi 0, %s47
      %s49 = sphi 0, %s47
      %s50 = sphi 0, %s49
      %s64 = sphi 0, %s50
      %s68 = sphi 0, %s68
      %s70 = sphi 0, %s68
      %s71 = sphi 0, %s70
      %s85 = sphi 0, %s71
      %s91 = sphi 0, %s93
      %s94 = sphi 0, %s91
      %s95 = sphi 0, %s94
      %s111 = sphi 0, %s95
      %s117 = sphi 0, %s119
      %s120 = sphi 0, %s117
      %s121 = sphi 0, %s120
      %s137 = sphi 0, %s121
    $region4: #{stu_block_forward.2} parent=1 // loop_header_branch
      %16 = sbr.rel (%p14) target = $region8
    $region5: #{stu_block_forward.2} parent=1 // loop_body
      %s18 = ssub.s32 %s13, 1
      %s19 = ssub.s32 %s13, 2
      %s20 = sadd.s32 %s13, 1
      %s21 = ssub.s32 %s13, %s20
      %p22 = scmp.eq.s32.totalorder %s21, 0
      %s24 = sadd.s32 %s23, 1
      %s25 = scalar_select %p22, %s23, %s24
      %p28 = pneg %p22
      %p29 = scmp.eq.s32.totalorder %s13, 1
      %p30 = por %p28, %p29
      %p31 = scmp.ne.s32.totalorder %s23, %s26
      %p32 = scmp.eq.s32.totalorder %s13, 0
      %p33 = por %p31, %p32
      %p34 = scmp.ne.s32.totalorder %s23, %s26
      %p35 = scmp.eq.s32.totalorder %s18, 1
      %p36 = por %p34, %p35
      %p37 = scmp.ne.s32.totalorder %s26, %s27
      %p38 = scmp.eq.s32.totalorder %s18, 0
      %p39 = por %p37, %p38
      %p40 = scmp.ne.s32.totalorder %s26, %s27
      %p41 = scmp.eq.s32.totalorder %s19, 1
      %p42 = por %p40, %p41
      %p44 = scmp.ne.s32.totalorder %s27, %s43
      %p45 = scmp.eq.s32.totalorder %s19, 0
      %p46 = por %p44, %p45
      %s48 = sadd.s32 %s47, 1
      %p51 = scmp.eq.s32.totalorder %s13, 1
      %p52 = scmp.ne.s32.totalorder %s47, %s49
      %p53 = scmp.eq.s32.totalorder %s13, 0
      %p54 = por %p52, %p53
      %p55 = scmp.ne.s32.totalorder %s47, %s49
      %p56 = scmp.eq.s32.totalorder %s18, 1
      %p57 = por %p55, %p56
      %p58 = scmp.ne.s32.totalorder %s49, %s50
      %p59 = scmp.eq.s32.totalorder %s18, 0
      %p60 = por %p58, %p59
      %p61 = scmp.ne.s32.totalorder %s49, %s50
      %p62 = scmp.eq.s32.totalorder %s19, 1
      %p63 = por %p61, %p62
      %p65 = scmp.ne.s32.totalorder %s50, %s64
      %p66 = scmp.eq.s32.totalorder %s19, 0
      %p67 = por %p65, %p66
      %s69 = sadd.s32 %s68, 1
      %p72 = scmp.eq.s32.totalorder %s13, 1
      %p73 = scmp.ne.s32.totalorder %s68, %s70
      %p74 = scmp.eq.s32.totalorder %s13, 0
      %p75 = por %p73, %p74
      %p76 = scmp.ne.s32.totalorder %s68, %s70
      %p77 = scmp.eq.s32.totalorder %s18, 1
      %p78 = por %p76, %p77
      %p79 = scmp.ne.s32.totalorder %s70, %s71
      %p80 = scmp.eq.s32.totalorder %s18, 0
      %p81 = por %p79, %p80
      %p82 = scmp.ne.s32.totalorder %s70, %s71
      %p83 = scmp.eq.s32.totalorder %s19, 1
      %p84 = por %p82, %p83
      %p86 = scmp.ne.s32.totalorder %s71, %s85
      %p87 = scmp.eq.s32.totalorder %s19, 0
      %p88 = por %p86, %p87
      %s89 = ssub.s32 %s13, %s20
      %p90 = scmp.eq.s32.totalorder %s89, 0
      %s92 = sadd.s32 %s91, 1
      %s93 = scalar_select %p90, %s91, %s92
      %p96 = pneg %p90
      %p97 = scmp.eq.s32.totalorder %s13, 1
      %p98 = por %p96, %p97
      %p99 = scmp.ne.s32.totalorder %s91, %s94
      %p100 = scmp.eq.s32.totalorder %s13, 0
      %p101 = por %p99, %p100
      %p102 = scmp.ne.s32.totalorder %s91, %s94
      %p103 = scmp.eq.s32.totalorder %s18, 1
      %p104 = por %p102, %p103
      %p105 = scmp.ne.s32.totalorder %s94, %s95
      %p106 = scmp.eq.s32.totalorder %s18, 0
      %p107 = por %p105, %p106
      %p108 = scmp.ne.s32.totalorder %s94, %s95
      %p109 = scmp.eq.s32.totalorder %s19, 1
      %p110 = por %p108, %p109
      %p112 = scmp.ne.s32.totalorder %s95, %s111
      %p113 = scmp.eq.s32.totalorder %s19, 0
      %p114 = por %p112, %p113
      %s115 = ssub.s32 %s13, %s20
      %p116 = scmp.eq.s32.totalorder %s115, 0
      %s118 = sadd.s32 %s117, 1
      %s119 = scalar_select %p116, %s117, %s118
      %p122 = pneg %p116
      %p123 = scmp.eq.s32.totalorder %s13, 1
      %p124 = por %p122, %p123
      %p125 = scmp.ne.s32.totalorder %s117, %s120
      %p126 = scmp.eq.s32.totalorder %s13, 0
      %p127 = por %p125, %p126
      %p128 = scmp.ne.s32.totalorder %s117, %s120
      %p129 = scmp.eq.s32.totalorder %s18, 1
      %p130 = por %p128, %p129
      %p131 = scmp.ne.s32.totalorder %s120, %s121
      %p132 = scmp.eq.s32.totalorder %s18, 0
      %p133 = por %p131, %p132
      %p134 = scmp.ne.s32.totalorder %s120, %s121
      %p135 = scmp.eq.s32.totalorder %s19, 1
      %p136 = por %p134, %p135
      %p138 = scmp.ne.s32.totalorder %s121, %s137
      %p139 = scmp.eq.s32.totalorder %s19, 0
      %p140 = por %p138, %p139
      %p141 = scmp.le.s32.totalorder 1, %s13
      %p142 = scmp.lt.s32.totalorder %s13, 3
      %p143 = pnand %p141, %p142
      %p144 = pneg %p143
      // Predicated region
      $region9: #{stu_block_forward.2} parent=5 // pred_check
        _
      $region10: #{stu_block_forward.2} parent=5 // pred_check_branch
        %146 = sbr.rel (%p143) target = $region12
      $region11: #{stu_block_forward.2} parent=5 // pred_region
        %s147 = ssub.s32 %s13, 1
        // Predicated region
        $region13: #{stu_block_forward.2} parent=11 // pred_check
          %p148 = pneg %p60
        $region14: #{stu_block_forward.2} parent=11 // pred_check_branch
          %150 = sbr.rel (%p148) target = $region16
        $region15: #{stu_block_forward.2} parent=11 // pred_region
          _
        $region16: #{stu_block_forward.2} parent=11 // pred_fallthru
          _
        // Predicated region
        $region17: #{stu_block_forward.2} parent=11 // pred_check
          %p151 = pneg %p81
        $region18: #{stu_block_forward.2} parent=11 // pred_check_branch
          %153 = sbr.rel (%p151) target = $region20
        $region19: #{stu_block_forward.2} parent=11 // pred_region
          _
        $region20: #{stu_block_forward.2} parent=11 // pred_fallthru
          _
      $region12: #{stu_block_forward.2} parent=5 // pred_fallthru
        _
      %p154 = scmp.lt.s32.totalorder %s13, 2
      // Predicated region
      $region21: #{stu_block_forward.2} parent=5 // pred_check
        %p155 = pneg %p154
      $region22: #{stu_block_forward.2} parent=5 // pred_check_branch
        %157 = sbr.rel (%p155) target = $region24
      $region23: #{stu_block_forward.2} parent=5 // pred_region
        // Predicated region
        $region25: #{stu_block_forward.2} parent=23 // pred_check
          %p158 = pneg %p33
        $region26: #{stu_block_forward.2} parent=23 // pred_check_branch
          %160 = sbr.rel (%p158) target = $region28
        $region27: #{stu_block_forward.2} parent=23 // pred_region
          %s161 = sand.u32 %s23, 1
          %s162 = scalar_lea.sflag [#allocation4], %s161
          %s163 = sand.u32 %s23, 1
          %s164 = smul.addr %s163, 1024
          %s165 = scalar_lea.vmem [#allocation3], %s164
          %s167 = ssub.s32 16384, 16384
          %168 = vsyncadd %s162, %s167
          %s169 = smul.addr %s13, 256
          %s170 = smul.addr %s169, 64
          %s171 = scalar_lea.hbm %s0, %s170
          %s172 = sshll.u32 %s165, 4
          %s173 = int_to_ptr.vmem [resolvable:$true] %s172
          %178 = dma.hbm_to_vmem [thread:$0]  %s171, 16384, %s173, %s162, 128, 128, 8
        $region28: #{stu_block_forward.2} parent=23 // pred_fallthru
          _
        // Predicated region
        $region29: #{stu_block_forward.2} parent=23 // pred_check
          %p179 = pneg %p101
        $region30: #{stu_block_forward.2} parent=23 // pred_check_branch
          %181 = sbr.rel (%p179) target = $region32
        $region31: #{stu_block_forward.2} parent=23 // pred_region
          %s182 = sand.u32 %s91, 1
          %s183 = sand.u32 %s91, 1
          %s184 = smul.addr %s183, 256
          %s185 = scalar_lea.vmem [#allocation5], %s184
          %s186 = smul.u32 16, %s13
          %s187 = smul.addr %s186, 8
          %s188 = scalar_lea.vmem %s3, %s187
          // Predicated region
          $region33: #{stu_block_forward.2} parent=31 // pred_check
            _
          $region34: #{stu_block_forward.2} parent=31 // pred_check_branch
            %190 = sbr.rel (0) target = $region36
          $region35: #{stu_block_forward.2} parent=31 // pred_region
            // Predicated region
            $region37: #{stu_block_forward.2} parent=35 // pred_check
              _
            $region38: #{stu_block_forward.2} parent=35 // pred_check_branch
              %192 = sbr.rel (0) target = $region40
            $region39: #{stu_block_forward.2} parent=35 // pred_region
              // Predicated region
              $region52: #{stu_block_forward.2} parent=39 // pred_check
                _
              $region53: #{stu_block_forward.2} parent=39 // pred_check_branch
                %269 = sbr.rel (0) target = $region55
              $region54: #{stu_block_forward.2} parent=39 // pred_region
                loop: start=0, step=1, limit=1
                $region56: #{stu_block_forward.2} parent=54 // loop_pre_header
                  _
                $region57: #{stu_block_forward.2} parent=54 // loop_header
                  %s271 = sphi 0, %s275
                  %p272 = scmp.ge.s32.totalorder %s271, 1
                  %s276 = sphi %s188, %s188
                  %s277 = sphi %s185, %s185
                $region58: #{stu_block_forward.2} parent=54 // loop_header_branch
                  %274 = sbr.rel (%p272) target = $region62
                $region59: #{stu_block_forward.2} parent=54 // loop_body
                  %v278 = vld [vmem:[%s276] sm:$0xff]
                  %279 = vst [vmem:[%s277] sm:$0xff] %v278
                  %v280 = vld [vmem:[%s276 + $0x8] sm:$0xff]
                  %281 = vst [vmem:[%s277 + $0x8] sm:$0xff] %v280
                  %v282 = vld [vmem:[%s276 + $0x10] sm:$0xff]
                  %283 = vst [vmem:[%s277 + $0x10] sm:$0xff] %v282
                  %v284 = vld [vmem:[%s276 + $0x18] sm:$0xff]
                  %285 = vst [vmem:[%s277 + $0x18] sm:$0xff] %v284
                  %v286 = vld [vmem:[%s276 + $0x20] sm:$0xff]
                  %287 = vst [vmem:[%s277 + $0x20] sm:$0xff] %v286
                  %v288 = vld [vmem:[%s276 + $0x28] sm:$0xff]
                  %289 = vst [vmem:[%s277 + $0x28] sm:$0xff] %v288
                  %v290 = vld [vmem:[%s276 + $0x30] sm:$0xff]
                  %291 = vst [vmem:[%s277 + $0x30] sm:$0xff] %v290
                  %v292 = vld [vmem:[%s276 + $0x38] sm:$0xff]
                  %293 = vst [vmem:[%s277 + $0x38] sm:$0xff] %v292
                  %v294 = vld [vmem:[%s276 + $0x40] sm:$0xff]
                  %295 = vst [vmem:[%s277 + $0x40] sm:$0xff] %v294
                  %v296 = vld [vmem:[%s276 + $0x48] sm:$0xff]
                  %297 = vst [vmem:[%s277 + $0x48] sm:$0xff] %v296
                  %v298 = vld [vmem:[%s276 + $0x50] sm:$0xff]
                  %299 = vst [vmem:[%s277 + $0x50] sm:$0xff] %v298
                  %v300 = vld [vmem:[%s276 + $0x58] sm:$0xff]
                  %301 = vst [vmem:[%s277 + $0x58] sm:$0xff] %v300
                  %v302 = vld [vmem:[%s276 + $0x60] sm:$0xff]
                  %303 = vst [vmem:[%s277 + $0x60] sm:$0xff] %v302
                  %v304 = vld [vmem:[%s276 + $0x68] sm:$0xff]
                  %305 = vst [vmem:[%s277 + $0x68] sm:$0xff] %v304
                  %v306 = vld [vmem:[%s276 + $0x70] sm:$0xff]
                  %307 = vst [vmem:[%s277 + $0x70] sm:$0xff] %v306
                  %v308 = vld [vmem:[%s276 + $0x78] sm:$0xff]
                  %309 = vst [vmem:[%s277 + $0x78] sm:$0xff] %v308
                  %v310 = vld [vmem:[%s276 + $0x100] sm:$0xff]
                  %311 = vst [vmem:[%s277 + $0x80] sm:$0xff] %v310
                  %v312 = vld [vmem:[%s276 + $0x108] sm:$0xff]
                  %313 = vst [vmem:[%s277 + $0x88] sm:$0xff] %v312
                  %v314 = vld [vmem:[%s276 + $0x110] sm:$0xff]
                  %315 = vst [vmem:[%s277 + $0x90] sm:$0xff] %v314
                  %v316 = vld [vmem:[%s276 + $0x118] sm:$0xff]
                  %317 = vst [vmem:[%s277 + $0x98] sm:$0xff] %v316
                  %v318 = vld [vmem:[%s276 + $0x120] sm:$0xff]
                  %319 = vst [vmem:[%s277 + $0xa0] sm:$0xff] %v318
                  %v320 = vld [vmem:[%s276 + $0x128] sm:$0xff]
                  %321 = vst [vmem:[%s277 + $0xa8] sm:$0xff] %v320
                  %v322 = vld [vmem:[%s276 + $0x130] sm:$0xff]
                  %323 = vst [vmem:[%s277 + $0xb0] sm:$0xff] %v322
                  %v324 = vld [vmem:[%s276 + $0x138] sm:$0xff]
                  %325 = vst [vmem:[%s277 + $0xb8] sm:$0xff] %v324
                  %v326 = vld [vmem:[%s276 + $0x140] sm:$0xff]
                  %327 = vst [vmem:[%s277 + $0xc0] sm:$0xff] %v326
                  %v328 = vld [vmem:[%s276 + $0x148] sm:$0xff]
                  %329 = vst [vmem:[%s277 + $0xc8] sm:$0xff] %v328
                  %v330 = vld [vmem:[%s276 + $0x150] sm:$0xff]
                  %331 = vst [vmem:[%s277 + $0xd0] sm:$0xff] %v330
                  %v332 = vld [vmem:[%s276 + $0x158] sm:$0xff]
                  %333 = vst [vmem:[%s277 + $0xd8] sm:$0xff] %v332
                  %v334 = vld [vmem:[%s276 + $0x160] sm:$0xff]
                  %335 = vst [vmem:[%s277 + $0xe0] sm:$0xff] %v334
                  %v336 = vld [vmem:[%s276 + $0x168] sm:$0xff]
                  %337 = vst [vmem:[%s277 + $0xe8] sm:$0xff] %v336
                  %v338 = vld [vmem:[%s276 + $0x170] sm:$0xff]
                  %339 = vst [vmem:[%s277 + $0xf0] sm:$0xff] %v338
                  %v340 = vld [vmem:[%s276 + $0x178] sm:$0xff]
                  %341 = vst [vmem:[%s277 + $0xf8] sm:$0xff] %v340
                $region60: #{stu_block_forward.2} parent=54 // loop_footer
                  %s275 = sadd.s32 1, %s271
                $region61: #{stu_block_forward.2} parent=54 // loop_footer_branch
                  %270 = sbr.rel target = $region57
                $region62: #{stu_block_forward.2} parent=54 // loop_exit
                  _
              $region55: #{stu_block_forward.2} parent=39 // pred_fallthru
                _
              // Predicated region
              $region63: #{stu_block_forward.2} parent=39 // pred_check
                _
              $region64: #{stu_block_forward.2} parent=39 // pred_check_branch
                %343 = sbr.rel target = $region66
              $region65: #{stu_block_forward.2} parent=39 // pred_region
                _
              $region66: #{stu_block_forward.2} parent=39 // pred_fallthru
                _
            $region40: #{stu_block_forward.2} parent=35 // pred_fallthru
              _
            // Predicated region
            $region41: #{stu_block_forward.2} parent=35 // pred_check
              _
            $region42: #{stu_block_forward.2} parent=35 // pred_check_branch
              %194 = sbr.rel target = $region44
            $region43: #{stu_block_forward.2} parent=35 // pred_region
              loop: start=0, step=1, limit=1
              $region45: #{stu_block_forward.2} parent=43 // loop_pre_header
                _
              $region46: #{stu_block_forward.2} parent=43 // loop_header
                %s197 = sphi 0, %s201
                %p198 = scmp.ge.s32.totalorder %s197, 1
                %s202 = sphi %s188, %s188
                %s203 = sphi %s185, %s185
              $region47: #{stu_block_forward.2} parent=43 // loop_header_branch
                %200 = sbr.rel (%p198) target = $region51
              $region48: #{stu_block_forward.2} parent=43 // loop_body
                %v204 = vld [vmem:[%s202] sm:$0xff]
                %205 = vst [vmem:[%s203] sm:$0xff] %v204
                %v206 = vld [vmem:[%s202 + $0x8] sm:$0xff]
                %207 = vst [vmem:[%s203 + $0x8] sm:$0xff] %v206
                %v208 = vld [vmem:[%s202 + $0x10] sm:$0xff]
                %209 = vst [vmem:[%s203 + $0x10] sm:$0xff] %v208
                %v210 = vld [vmem:[%s202 + $0x18] sm:$0xff]
                %211 = vst [vmem:[%s203 + $0x18] sm:$0xff] %v210
                %v212 = vld [vmem:[%s202 + $0x20] sm:$0xff]
                %213 = vst [vmem:[%s203 + $0x20] sm:$0xff] %v212
                %v214 = vld [vmem:[%s202 + $0x28] sm:$0xff]
                %215 = vst [vmem:[%s203 + $0x28] sm:$0xff] %v214
                %v216 = vld [vmem:[%s202 + $0x30] sm:$0xff]
                %217 = vst [vmem:[%s203 + $0x30] sm:$0xff] %v216
                %v218 = vld [vmem:[%s202 + $0x38] sm:$0xff]
                %219 = vst [vmem:[%s203 + $0x38] sm:$0xff] %v218
                %v220 = vld [vmem:[%s202 + $0x40] sm:$0xff]
                %221 = vst [vmem:[%s203 + $0x40] sm:$0xff] %v220
                %v222 = vld [vmem:[%s202 + $0x48] sm:$0xff]
                %223 = vst [vmem:[%s203 + $0x48] sm:$0xff] %v222
                %v224 = vld [vmem:[%s202 + $0x50] sm:$0xff]
                %225 = vst [vmem:[%s203 + $0x50] sm:$0xff] %v224
                %v226 = vld [vmem:[%s202 + $0x58] sm:$0xff]
                %227 = vst [vmem:[%s203 + $0x58] sm:$0xff] %v226
                %v228 = vld [vmem:[%s202 + $0x60] sm:$0xff]
                %229 = vst [vmem:[%s203 + $0x60] sm:$0xff] %v228
                %v230 = vld [vmem:[%s202 + $0x68] sm:$0xff]
                %231 = vst [vmem:[%s203 + $0x68] sm:$0xff] %v230
                %v232 = vld [vmem:[%s202 + $0x70] sm:$0xff]
                %233 = vst [vmem:[%s203 + $0x70] sm:$0xff] %v232
                %v234 = vld [vmem:[%s202 + $0x78] sm:$0xff]
                %235 = vst [vmem:[%s203 + $0x78] sm:$0xff] %v234
                %v236 = vld [vmem:[%s202 + $0x100] sm:$0xff]
                %237 = vst [vmem:[%s203 + $0x80] sm:$0xff] %v236
                %v238 = vld [vmem:[%s202 + $0x108] sm:$0xff]
                %239 = vst [vmem:[%s203 + $0x88] sm:$0xff] %v238
                %v240 = vld [vmem:[%s202 + $0x110] sm:$0xff]
                %241 = vst [vmem:[%s203 + $0x90] sm:$0xff] %v240
                %v242 = vld [vmem:[%s202 + $0x118] sm:$0xff]
                %243 = vst [vmem:[%s203 + $0x98] sm:$0xff] %v242
                %v244 = vld [vmem:[%s202 + $0x120] sm:$0xff]
                %245 = vst [vmem:[%s203 + $0xa0] sm:$0xff] %v244
                %v246 = vld [vmem:[%s202 + $0x128] sm:$0xff]
                %247 = vst [vmem:[%s203 + $0xa8] sm:$0xff] %v246
                %v248 = vld [vmem:[%s202 + $0x130] sm:$0xff]
                %249 = vst [vmem:[%s203 + $0xb0] sm:$0xff] %v248
                %v250 = vld [vmem:[%s202 + $0x138] sm:$0xff]
                %251 = vst [vmem:[%s203 + $0xb8] sm:$0xff] %v250
                %v252 = vld [vmem:[%s202 + $0x140] sm:$0xff]
                %253 = vst [vmem:[%s203 + $0xc0] sm:$0xff] %v252
                %v254 = vld [vmem:[%s202 + $0x148] sm:$0xff]
                %255 = vst [vmem:[%s203 + $0xc8] sm:$0xff] %v254
                %v256 = vld [vmem:[%s202 + $0x150] sm:$0xff]
                %257 = vst [vmem:[%s203 + $0xd0] sm:$0xff] %v256
                %v258 = vld [vmem:[%s202 + $0x158] sm:$0xff]
                %259 = vst [vmem:[%s203 + $0xd8] sm:$0xff] %v258
                %v260 = vld [vmem:[%s202 + $0x160] sm:$0xff]
                %261 = vst [vmem:[%s203 + $0xe0] sm:$0xff] %v260
                %v262 = vld [vmem:[%s202 + $0x168] sm:$0xff]
                %263 = vst [vmem:[%s203 + $0xe8] sm:$0xff] %v262
                %v264 = vld [vmem:[%s202 + $0x170] sm:$0xff]
                %265 = vst [vmem:[%s203 + $0xf0] sm:$0xff] %v264
                %v266 = vld [vmem:[%s202 + $0x178] sm:$0xff]
                %267 = vst [vmem:[%s203 + $0xf8] sm:$0xff] %v266
              $region49: #{stu_block_forward.2} parent=43 // loop_footer
                %s201 = sadd.s32 1, %s197
              $region50: #{stu_block_forward.2} parent=43 // loop_footer_branch
                %196 = sbr.rel target = $region46
              $region51: #{stu_block_forward.2} parent=43 // loop_exit
                _
            $region44: #{stu_block_forward.2} parent=35 // pred_fallthru
              _
          $region36: #{stu_block_forward.2} parent=31 // pred_fallthru
            _
          %344 = vnop
        $region32: #{stu_block_forward.2} parent=23 // pred_fallthru
          _
      $region24: #{stu_block_forward.2} parent=5 // pred_fallthru
        _
      %p345 = scmp.le.s32.totalorder 1, %s13
      %p346 = scmp.lt.s32.totalorder %s13, 3
      %p347 = pnand %p345, %p346
      %p348 = pneg %p347
      // Predicated region
      $region67: #{stu_block_forward.2} parent=5 // pred_check
        _
      $region68: #{stu_block_forward.2} parent=5 // pred_check_branch
        %350 = sbr.rel (%p347) target = $region70
      $region69: #{stu_block_forward.2} parent=5 // pred_region
        %s351 = ssub.s32 %s13, 1
        %s352 = sand.u32 %s26, 1
        %s353 = scalar_lea.sflag [#allocation4], %s352
        %s354 = sand.u32 %s26, 1
        %s355 = smul.addr %s354, 1024
        %s356 = scalar_lea.vmem [#allocation3], %s355
        // Predicated region
        $region71: #{stu_block_forward.2} parent=69 // pred_check
          %p357 = pneg %p39
        $region72: #{stu_block_forward.2} parent=69 // pred_check_branch
          %359 = sbr.rel (%p357) target = $region74
        $region73: #{stu_block_forward.2} parent=69 // pred_region
          %360 = dma.done %s353, 16384
        $region74: #{stu_block_forward.2} parent=69 // pred_fallthru
          _
        %s361 = sand.u32 %s94, 1
        %s362 = sand.u32 %s94, 1
        %s363 = smul.addr %s362, 256
        %s364 = scalar_lea.vmem [#allocation5], %s363
        // Predicated region
        $region75: #{stu_block_forward.2} parent=69 // pred_check
          %p365 = pneg %p107
        $region76: #{stu_block_forward.2} parent=69 // pred_check_branch
          %367 = sbr.rel (%p365) target = $region78
        $region77: #{stu_block_forward.2} parent=69 // pred_region
          _
        $region78: #{stu_block_forward.2} parent=69 // pred_fallthru
          _
        %s368 = sand.u32 %s26, 1
        %s369 = scalar_lea.sflag [#allocation4], %s368
        %s370 = sand.u32 %s26, 1
        %s371 = smul.addr %s370, 1024
        %s372 = scalar_lea.vmem [#allocation3], %s371
        %p373 = pneg %p39
        %p374 = pneg %p36
        %p375 = pneg %p60
        %p376 = pneg %p57
        %p377 = pneg %p81
        %p378 = pneg %p78
        %s379 = sand.u32 %s94, 1
        %s380 = sand.u32 %s94, 1
        %s381 = smul.addr %s380, 256
        %s382 = scalar_lea.vmem [#allocation5], %s381
        %p383 = pneg %p107
        %p384 = pneg %p104
        %p385 = pneg %p133
        %p386 = pneg %p130
        %s387 = sand.u32 %s120, 1
        %s388 = sand.u32 %s120, 1
        %s389 = smul.addr %s388, 256
        %s390 = scalar_lea.vmem [#allocation6], %s389
        %s391 = smul.u32 16, %s18
        %s392 = smul.u32 16, %s18
        %v394 = vld [vmem:[%s356] sm:$0xff]
        %v395 = vld [vmem:[%s356 + $0x8] sm:$0xff]
        %v396 = vld [vmem:[%s356 + $0x10] sm:$0xff]
        %v397 = vld [vmem:[%s356 + $0x18] sm:$0xff]
        %v398 = vld [vmem:[%s356 + $0x20] sm:$0xff]
        %v399 = vld [vmem:[%s356 + $0x28] sm:$0xff]
        %v400 = vld [vmem:[%s356 + $0x30] sm:$0xff]
        %v401 = vld [vmem:[%s356 + $0x38] sm:$0xff]
        %v402 = vld [vmem:[%s356 + $0x40] sm:$0xff]
        %v403 = vld [vmem:[%s356 + $0x48] sm:$0xff]
        %v404 = vld [vmem:[%s356 + $0x50] sm:$0xff]
        %v405 = vld [vmem:[%s356 + $0x58] sm:$0xff]
        %v406 = vld [vmem:[%s356 + $0x60] sm:$0xff]
        %v407 = vld [vmem:[%s356 + $0x68] sm:$0xff]
        %v408 = vld [vmem:[%s356 + $0x70] sm:$0xff]
        %v409 = vld [vmem:[%s356 + $0x78] sm:$0xff]
        %v410 = vld [vmem:[%s356 + $0x80] sm:$0xff]
        %v411 = vld [vmem:[%s356 + $0x88] sm:$0xff]
        %v412 = vld [vmem:[%s356 + $0x90] sm:$0xff]
        %v413 = vld [vmem:[%s356 + $0x98] sm:$0xff]
        %v414 = vld [vmem:[%s356 + $0xa0] sm:$0xff]
        %v415 = vld [vmem:[%s356 + $0xa8] sm:$0xff]
        %v416 = vld [vmem:[%s356 + $0xb0] sm:$0xff]
        %v417 = vld [vmem:[%s356 + $0xb8] sm:$0xff]
        %v418 = vld [vmem:[%s356 + $0xc0] sm:$0xff]
        %v419 = vld [vmem:[%s356 + $0xc8] sm:$0xff]
        %v420 = vld [vmem:[%s356 + $0xd0] sm:$0xff]
        %v421 = vld [vmem:[%s356 + $0xd8] sm:$0xff]
        %v422 = vld [vmem:[%s356 + $0xe0] sm:$0xff]
        %v423 = vld [vmem:[%s356 + $0xe8] sm:$0xff]
        %v424 = vld [vmem:[%s356 + $0xf0] sm:$0xff]
        %v425 = vld [vmem:[%s356 + $0xf8] sm:$0xff]
        %v426 = vld [vmem:[%s356 + $0x100] sm:$0xff]
        %v427 = vld [vmem:[%s356 + $0x108] sm:$0xff]
        %v428 = vld [vmem:[%s356 + $0x110] sm:$0xff]
        %v429 = vld [vmem:[%s356 + $0x118] sm:$0xff]
        %v430 = vld [vmem:[%s356 + $0x120] sm:$0xff]
        %v431 = vld [vmem:[%s356 + $0x128] sm:$0xff]
        %v432 = vld [vmem:[%s356 + $0x130] sm:$0xff]
        %v433 = vld [vmem:[%s356 + $0x138] sm:$0xff]
        %v434 = vld [vmem:[%s356 + $0x140] sm:$0xff]
        %v435 = vld [vmem:[%s356 + $0x148] sm:$0xff]
        %v436 = vld [vmem:[%s356 + $0x150] sm:$0xff]
        %v437 = vld [vmem:[%s356 + $0x158] sm:$0xff]
        %v438 = vld [vmem:[%s356 + $0x160] sm:$0xff]
        %v439 = vld [vmem:[%s356 + $0x168] sm:$0xff]
        %v440 = vld [vmem:[%s356 + $0x170] sm:$0xff]
        %v441 = vld [vmem:[%s356 + $0x178] sm:$0xff]
        %v442 = vld [vmem:[%s356 + $0x180] sm:$0xff]
        %v443 = vld [vmem:[%s356 + $0x188] sm:$0xff]
        %v444 = vld [vmem:[%s356 + $0x190] sm:$0xff]
        %v445 = vld [vmem:[%s356 + $0x198] sm:$0xff]
        %v446 = vld [vmem:[%s356 + $0x1a0] sm:$0xff]
        %v447 = vld [vmem:[%s356 + $0x1a8] sm:$0xff]
        %v448 = vld [vmem:[%s356 + $0x1b0] sm:$0xff]
        %v449 = vld [vmem:[%s356 + $0x1b8] sm:$0xff]
        %v450 = vld [vmem:[%s356 + $0x1c0] sm:$0xff]
        %v451 = vld [vmem:[%s356 + $0x1c8] sm:$0xff]
        %v452 = vld [vmem:[%s356 + $0x1d0] sm:$0xff]
        %v453 = vld [vmem:[%s356 + $0x1d8] sm:$0xff]
        %v454 = vld [vmem:[%s356 + $0x1e0] sm:$0xff]
        %v455 = vld [vmem:[%s356 + $0x1e8] sm:$0xff]
        %v456 = vld [vmem:[%s356 + $0x1f0] sm:$0xff]
        %v457 = vld [vmem:[%s356 + $0x1f8] sm:$0xff]
        %v458 = vld [vmem:[%s356 + $0x200] sm:$0xff]
        %v459 = vld [vmem:[%s356 + $0x208] sm:$0xff]
        %v460 = vld [vmem:[%s356 + $0x210] sm:$0xff]
        %v461 = vld [vmem:[%s356 + $0x218] sm:$0xff]
        %v462 = vld [vmem:[%s356 + $0x220] sm:$0xff]
        %v463 = vld [vmem:[%s356 + $0x228] sm:$0xff]
        %v464 = vld [vmem:[%s356 + $0x230] sm:$0xff]
        %v465 = vld [vmem:[%s356 + $0x238] sm:$0xff]
        %v466 = vld [vmem:[%s356 + $0x240] sm:$0xff]
        %v467 = vld [vmem:[%s356 + $0x248] sm:$0xff]
        %v468 = vld [vmem:[%s356 + $0x250] sm:$0xff]
        %v469 = vld [vmem:[%s356 + $0x258] sm:$0xff]
        %v470 = vld [vmem:[%s356 + $0x260] sm:$0xff]
        %v471 = vld [vmem:[%s356 + $0x268] sm:$0xff]
        %v472 = vld [vmem:[%s356 + $0x270] sm:$0xff]
        %v473 = vld [vmem:[%s356 + $0x278] sm:$0xff]
        %v474 = vld [vmem:[%s356 + $0x280] sm:$0xff]
        %v475 = vld [vmem:[%s356 + $0x288] sm:$0xff]
        %v476 = vld [vmem:[%s356 + $0x290] sm:$0xff]
        %v477 = vld [vmem:[%s356 + $0x298] sm:$0xff]
        %v478 = vld [vmem:[%s356 + $0x2a0] sm:$0xff]
        %v479 = vld [vmem:[%s356 + $0x2a8] sm:$0xff]
        %v480 = vld [vmem:[%s356 + $0x2b0] sm:$0xff]
        %v481 = vld [vmem:[%s356 + $0x2b8] sm:$0xff]
        %v482 = vld [vmem:[%s356 + $0x2c0] sm:$0xff]
        %v483 = vld [vmem:[%s356 + $0x2c8] sm:$0xff]
        %v484 = vld [vmem:[%s356 + $0x2d0] sm:$0xff]
        %v485 = vld [vmem:[%s356 + $0x2d8] sm:$0xff]
        %v486 = vld [vmem:[%s356 + $0x2e0] sm:$0xff]
        %v487 = vld [vmem:[%s356 + $0x2e8] sm:$0xff]
        %v488 = vld [vmem:[%s356 + $0x2f0] sm:$0xff]
        %v489 = vld [vmem:[%s356 + $0x2f8] sm:$0xff]
        %v490 = vld [vmem:[%s356 + $0x300] sm:$0xff]
        %v491 = vld [vmem:[%s356 + $0x308] sm:$0xff]
        %v492 = vld [vmem:[%s356 + $0x310] sm:$0xff]
        %v493 = vld [vmem:[%s356 + $0x318] sm:$0xff]
        %v494 = vld [vmem:[%s356 + $0x320] sm:$0xff]
        %v495 = vld [vmem:[%s356 + $0x328] sm:$0xff]
        %v496 = vld [vmem:[%s356 + $0x330] sm:$0xff]
        %v497 = vld [vmem:[%s356 + $0x338] sm:$0xff]
        %v498 = vld [vmem:[%s356 + $0x340] sm:$0xff]
        %v499 = vld [vmem:[%s356 + $0x348] sm:$0xff]
        %v500 = vld [vmem:[%s356 + $0x350] sm:$0xff]
        %v501 = vld [vmem:[%s356 + $0x358] sm:$0xff]
        %v502 = vld [vmem:[%s356 + $0x360] sm:$0xff]
        %v503 = vld [vmem:[%s356 + $0x368] sm:$0xff]
        %v504 = vld [vmem:[%s356 + $0x370] sm:$0xff]
        %v505 = vld [vmem:[%s356 + $0x378] sm:$0xff]
        %v506 = vld [vmem:[%s356 + $0x380] sm:$0xff]
        %v507 = vld [vmem:[%s356 + $0x388] sm:$0xff]
        %v508 = vld [vmem:[%s356 + $0x390] sm:$0xff]
        %v509 = vld [vmem:[%s356 + $0x398] sm:$0xff]
        %v510 = vld [vmem:[%s356 + $0x3a0] sm:$0xff]
        %v511 = vld [vmem:[%s356 + $0x3a8] sm:$0xff]
        %v512 = vld [vmem:[%s356 + $0x3b0] sm:$0xff]
        %v513 = vld [vmem:[%s356 + $0x3b8] sm:$0xff]
        %v514 = vld [vmem:[%s356 + $0x3c0] sm:$0xff]
        %v515 = vld [vmem:[%s356 + $0x3c8] sm:$0xff]
        %v516 = vld [vmem:[%s356 + $0x3d0] sm:$0xff]
        %v517 = vld [vmem:[%s356 + $0x3d8] sm:$0xff]
        %v518 = vld [vmem:[%s356 + $0x3e0] sm:$0xff]
        %v519 = vld [vmem:[%s356 + $0x3e8] sm:$0xff]
        %v520 = vld [vmem:[%s356 + $0x3f0] sm:$0xff]
        %v521 = vld [vmem:[%s356 + $0x3f8] sm:$0xff]
        %v522 = vld [vmem:[%s1] sm:$0xff]
        %v523 = vld [vmem:[%s1 + $0x8] sm:$0xff]
        %v524 = vld [vmem:[%s1 + $0x10] sm:$0xff]
        %v525 = vld [vmem:[%s1 + $0x18] sm:$0xff]
        %v526 = vld [vmem:[%s1 + $0x20] sm:$0xff]
        %v527 = vld [vmem:[%s1 + $0x28] sm:$0xff]
        %v528 = vld [vmem:[%s1 + $0x30] sm:$0xff]
        %v529 = vld [vmem:[%s1 + $0x38] sm:$0xff]
        %v530 = vld [vmem:[%s1 + $0x40] sm:$0xff]
        %v531 = vld [vmem:[%s1 + $0x48] sm:$0xff]
        %v532 = vld [vmem:[%s1 + $0x50] sm:$0xff]
        %v533 = vld [vmem:[%s1 + $0x58] sm:$0xff]
        %v534 = vld [vmem:[%s1 + $0x60] sm:$0xff]
        %v535 = vld [vmem:[%s1 + $0x68] sm:$0xff]
        %v536 = vld [vmem:[%s1 + $0x70] sm:$0xff]
        %v537 = vld [vmem:[%s1 + $0x78] sm:$0xff]
        %v538 = vld [vmem:[%s1 + $0x80] sm:$0xff]
        %v539 = vld [vmem:[%s1 + $0x88] sm:$0xff]
        %v540 = vld [vmem:[%s1 + $0x90] sm:$0xff]
        %v541 = vld [vmem:[%s1 + $0x98] sm:$0xff]
        %v542 = vld [vmem:[%s1 + $0xa0] sm:$0xff]
        %v543 = vld [vmem:[%s1 + $0xa8] sm:$0xff]
        %v544 = vld [vmem:[%s1 + $0xb0] sm:$0xff]
        %v545 = vld [vmem:[%s1 + $0xb8] sm:$0xff]
        %v546 = vld [vmem:[%s1 + $0xc0] sm:$0xff]
        %v547 = vld [vmem:[%s1 + $0xc8] sm:$0xff]
        %v548 = vld [vmem:[%s1 + $0xd0] sm:$0xff]
        %v549 = vld [vmem:[%s1 + $0xd8] sm:$0xff]
        %v550 = vld [vmem:[%s1 + $0xe0] sm:$0xff]
        %v551 = vld [vmem:[%s1 + $0xe8] sm:$0xff]
        %v552 = vld [vmem:[%s1 + $0xf0] sm:$0xff]
        %v553 = vld [vmem:[%s1 + $0xf8] sm:$0xff]
        %v682 = vunpack.c.l.b16 %v394
        %v683 = vunpack.c.h.b16 %v394
        %v684 = vunpack.c.l.b16 %v395
        %v685 = vunpack.c.h.b16 %v395
        %v686 = vunpack.c.l.b16 %v396
        %v687 = vunpack.c.h.b16 %v396
        %v688 = vunpack.c.l.b16 %v397
        %v689 = vunpack.c.h.b16 %v397
        %v690 = vunpack.c.l.b16 %v398
        %v691 = vunpack.c.h.b16 %v398
        %v692 = vunpack.c.l.b16 %v399
        %v693 = vunpack.c.h.b16 %v399
        %v694 = vunpack.c.l.b16 %v400
        %v695 = vunpack.c.h.b16 %v400
        %v696 = vunpack.c.l.b16 %v401
        %v697 = vunpack.c.h.b16 %v401
        %v698 = vunpack.c.l.b16 %v402
        %v699 = vunpack.c.h.b16 %v402
        %v700 = vunpack.c.l.b16 %v403
        %v701 = vunpack.c.h.b16 %v403
        %v702 = vunpack.c.l.b16 %v404
        %v703 = vunpack.c.h.b16 %v404
        %v704 = vunpack.c.l.b16 %v405
        %v705 = vunpack.c.h.b16 %v405
        %v706 = vunpack.c.l.b16 %v406
        %v707 = vunpack.c.h.b16 %v406
        %v708 = vunpack.c.l.b16 %v407
        %v709 = vunpack.c.h.b16 %v407
        %v710 = vunpack.c.l.b16 %v408
        %v711 = vunpack.c.h.b16 %v408
        %v712 = vunpack.c.l.b16 %v409
        %v713 = vunpack.c.h.b16 %v409
        %v714 = vunpack.c.l.b16 %v410
        %v715 = vunpack.c.h.b16 %v410
        %v716 = vunpack.c.l.b16 %v411
        %v717 = vunpack.c.h.b16 %v411
        %v718 = vunpack.c.l.b16 %v412
        %v719 = vunpack.c.h.b16 %v412
        %v720 = vunpack.c.l.b16 %v413
        %v721 = vunpack.c.h.b16 %v413
        %v722 = vunpack.c.l.b16 %v414
        %v723 = vunpack.c.h.b16 %v414
        %v724 = vunpack.c.l.b16 %v415
        %v725 = vunpack.c.h.b16 %v415
        %v726 = vunpack.c.l.b16 %v416
        %v727 = vunpack.c.h.b16 %v416
        %v728 = vunpack.c.l.b16 %v417
        %v729 = vunpack.c.h.b16 %v417
        %v730 = vunpack.c.l.b16 %v418
        %v731 = vunpack.c.h.b16 %v418
        %v732 = vunpack.c.l.b16 %v419
        %v733 = vunpack.c.h.b16 %v419
        %v734 = vunpack.c.l.b16 %v420
        %v735 = vunpack.c.h.b16 %v420
        %v736 = vunpack.c.l.b16 %v421
        %v737 = vunpack.c.h.b16 %v421
        %v738 = vunpack.c.l.b16 %v422
        %v739 = vunpack.c.h.b16 %v422
        %v740 = vunpack.c.l.b16 %v423
        %v741 = vunpack.c.h.b16 %v423
        %v742 = vunpack.c.l.b16 %v424
        %v743 = vunpack.c.h.b16 %v424
        %v744 = vunpack.c.l.b16 %v425
        %v745 = vunpack.c.h.b16 %v425
        %v746 = vunpack.c.l.b16 %v426
        %v747 = vunpack.c.h.b16 %v426
        %v748 = vunpack.c.l.b16 %v427
        %v749 = vunpack.c.h.b16 %v427
        %v750 = vunpack.c.l.b16 %v428
        %v751 = vunpack.c.h.b16 %v428
        %v752 = vunpack.c.l.b16 %v429
        %v753 = vunpack.c.h.b16 %v429
        %v754 = vunpack.c.l.b16 %v430
        %v755 = vunpack.c.h.b16 %v430
        %v756 = vunpack.c.l.b16 %v431
        %v757 = vunpack.c.h.b16 %v431
        %v758 = vunpack.c.l.b16 %v432
        %v759 = vunpack.c.h.b16 %v432
        %v760 = vunpack.c.l.b16 %v433
        %v761 = vunpack.c.h.b16 %v433
        %v762 = vunpack.c.l.b16 %v434
        %v763 = vunpack.c.h.b16 %v434
        %v764 = vunpack.c.l.b16 %v435
        %v765 = vunpack.c.h.b16 %v435
        %v766 = vunpack.c.l.b16 %v436
        %v767 = vunpack.c.h.b16 %v436
        %v768 = vunpack.c.l.b16 %v437
        %v769 = vunpack.c.h.b16 %v437
        %v770 = vunpack.c.l.b16 %v438
        %v771 = vunpack.c.h.b16 %v438
        %v772 = vunpack.c.l.b16 %v439
        %v773 = vunpack.c.h.b16 %v439
        %v774 = vunpack.c.l.b16 %v440
        %v775 = vunpack.c.h.b16 %v440
        %v776 = vunpack.c.l.b16 %v441
        %v777 = vunpack.c.h.b16 %v441
        %v778 = vunpack.c.l.b16 %v442
        %v779 = vunpack.c.h.b16 %v442
        %v780 = vunpack.c.l.b16 %v443
        %v781 = vunpack.c.h.b16 %v443
        %v782 = vunpack.c.l.b16 %v444
        %v783 = vunpack.c.h.b16 %v444
        %v784 = vunpack.c.l.b16 %v445
        %v785 = vunpack.c.h.b16 %v445
        %v786 = vunpack.c.l.b16 %v446
        %v787 = vunpack.c.h.b16 %v446
        %v788 = vunpack.c.l.b16 %v447
        %v789 = vunpack.c.h.b16 %v447
        %v790 = vunpack.c.l.b16 %v448
        %v791 = vunpack.c.h.b16 %v448
        %v792 = vunpack.c.l.b16 %v449
        %v793 = vunpack.c.h.b16 %v449
        %v794 = vunpack.c.l.b16 %v450
        %v795 = vunpack.c.h.b16 %v450
        %v796 = vunpack.c.l.b16 %v451
        %v797 = vunpack.c.h.b16 %v451
        %v798 = vunpack.c.l.b16 %v452
        %v799 = vunpack.c.h.b16 %v452
        %v800 = vunpack.c.l.b16 %v453
        %v801 = vunpack.c.h.b16 %v453
        %v802 = vunpack.c.l.b16 %v454
        %v803 = vunpack.c.h.b16 %v454
        %v804 = vunpack.c.l.b16 %v455
        %v805 = vunpack.c.h.b16 %v455
        %v806 = vunpack.c.l.b16 %v456
        %v807 = vunpack.c.h.b16 %v456
        %v808 = vunpack.c.l.b16 %v457
        %v809 = vunpack.c.h.b16 %v457
        %v810 = vunpack.c.l.b16 %v458
        %v811 = vunpack.c.h.b16 %v458
        %v812 = vunpack.c.l.b16 %v459
        %v813 = vunpack.c.h.b16 %v459
        %v814 = vunpack.c.l.b16 %v460
        %v815 = vunpack.c.h.b16 %v460
        %v816 = vunpack.c.l.b16 %v461
        %v817 = vunpack.c.h.b16 %v461
        %v818 = vunpack.c.l.b16 %v462
        %v819 = vunpack.c.h.b16 %v462
        %v820 = vunpack.c.l.b16 %v463
        %v821 = vunpack.c.h.b16 %v463
        %v822 = vunpack.c.l.b16 %v464
        %v823 = vunpack.c.h.b16 %v464
        %v824 = vunpack.c.l.b16 %v465
        %v825 = vunpack.c.h.b16 %v465
        %v826 = vunpack.c.l.b16 %v466
        %v827 = vunpack.c.h.b16 %v466
        %v828 = vunpack.c.l.b16 %v467
        %v829 = vunpack.c.h.b16 %v467
        %v830 = vunpack.c.l.b16 %v468
        %v831 = vunpack.c.h.b16 %v468
        %v832 = vunpack.c.l.b16 %v469
        %v833 = vunpack.c.h.b16 %v469
        %v834 = vunpack.c.l.b16 %v470
        %v835 = vunpack.c.h.b16 %v470
        %v836 = vunpack.c.l.b16 %v471
        %v837 = vunpack.c.h.b16 %v471
        %v838 = vunpack.c.l.b16 %v472
        %v839 = vunpack.c.h.b16 %v472
        %v840 = vunpack.c.l.b16 %v473
        %v841 = vunpack.c.h.b16 %v473
        %v842 = vunpack.c.l.b16 %v474
        %v843 = vunpack.c.h.b16 %v474
        %v844 = vunpack.c.l.b16 %v475
        %v845 = vunpack.c.h.b16 %v475
        %v846 = vunpack.c.l.b16 %v476
        %v847 = vunpack.c.h.b16 %v476
        %v848 = vunpack.c.l.b16 %v477
        %v849 = vunpack.c.h.b16 %v477
        %v850 = vunpack.c.l.b16 %v478
        %v851 = vunpack.c.h.b16 %v478
        %v852 = vunpack.c.l.b16 %v479
        %v853 = vunpack.c.h.b16 %v479
        %v854 = vunpack.c.l.b16 %v480
        %v855 = vunpack.c.h.b16 %v480
        %v856 = vunpack.c.l.b16 %v481
        %v857 = vunpack.c.h.b16 %v481
        %v858 = vunpack.c.l.b16 %v482
        %v859 = vunpack.c.h.b16 %v482
        %v860 = vunpack.c.l.b16 %v483
        %v861 = vunpack.c.h.b16 %v483
        %v862 = vunpack.c.l.b16 %v484
        %v863 = vunpack.c.h.b16 %v484
        %v864 = vunpack.c.l.b16 %v485
        %v865 = vunpack.c.h.b16 %v485
        %v866 = vunpack.c.l.b16 %v486
        %v867 = vunpack.c.h.b16 %v486
        %v868 = vunpack.c.l.b16 %v487
        %v869 = vunpack.c.h.b16 %v487
        %v870 = vunpack.c.l.b16 %v488
        %v871 = vunpack.c.h.b16 %v488
        %v872 = vunpack.c.l.b16 %v489
        %v873 = vunpack.c.h.b16 %v489
        %v874 = vunpack.c.l.b16 %v490
        %v875 = vunpack.c.h.b16 %v490
        %v876 = vunpack.c.l.b16 %v491
        %v877 = vunpack.c.h.b16 %v491
        %v878 = vunpack.c.l.b16 %v492
        %v879 = vunpack.c.h.b16 %v492
        %v880 = vunpack.c.l.b16 %v493
        %v881 = vunpack.c.h.b16 %v493
        %v882 = vunpack.c.l.b16 %v494
        %v883 = vunpack.c.h.b16 %v494
        %v884 = vunpack.c.l.b16 %v495
        %v885 = vunpack.c.h.b16 %v495
        %v886 = vunpack.c.l.b16 %v496
        %v887 = vunpack.c.h.b16 %v496
        %v888 = vunpack.c.l.b16 %v497
        %v889 = vunpack.c.h.b16 %v497
        %v890 = vunpack.c.l.b16 %v498
        %v891 = vunpack.c.h.b16 %v498
        %v892 = vunpack.c.l.b16 %v499
        %v893 = vunpack.c.h.b16 %v499
        %v894 = vunpack.c.l.b16 %v500
        %v895 = vunpack.c.h.b16 %v500
        %v896 = vunpack.c.l.b16 %v501
        %v897 = vunpack.c.h.b16 %v501
        %v898 = vunpack.c.l.b16 %v502
        %v899 = vunpack.c.h.b16 %v502
        %v900 = vunpack.c.l.b16 %v503
        %v901 = vunpack.c.h.b16 %v503
        %v902 = vunpack.c.l.b16 %v504
        %v903 = vunpack.c.h.b16 %v504
        %v904 = vunpack.c.l.b16 %v505
        %v905 = vunpack.c.h.b16 %v505
        %v906 = vunpack.c.l.b16 %v506
        %v907 = vunpack.c.h.b16 %v506
        %v908 = vunpack.c.l.b16 %v507
        %v909 = vunpack.c.h.b16 %v507
        %v910 = vunpack.c.l.b16 %v508
        %v911 = vunpack.c.h.b16 %v508
        %v912 = vunpack.c.l.b16 %v509
        %v913 = vunpack.c.h.b16 %v509
        %v914 = vunpack.c.l.b16 %v510
        %v915 = vunpack.c.h.b16 %v510
        %v916 = vunpack.c.l.b16 %v511
        %v917 = vunpack.c.h.b16 %v511
        %v918 = vunpack.c.l.b16 %v512
        %v919 = vunpack.c.h.b16 %v512
        %v920 = vunpack.c.l.b16 %v513
        %v921 = vunpack.c.h.b16 %v513
        %v922 = vunpack.c.l.b16 %v514
        %v923 = vunpack.c.h.b16 %v514
        %v924 = vunpack.c.l.b16 %v515
        %v925 = vunpack.c.h.b16 %v515
        %v926 = vunpack.c.l.b16 %v516
        %v927 = vunpack.c.h.b16 %v516
        %v928 = vunpack.c.l.b16 %v517
        %v929 = vunpack.c.h.b16 %v517
        %v930 = vunpack.c.l.b16 %v518
        %v931 = vunpack.c.h.b16 %v518
        %v932 = vunpack.c.l.b16 %v519
        %v933 = vunpack.c.h.b16 %v519
        %v934 = vunpack.c.l.b16 %v520
        %v935 = vunpack.c.h.b16 %v520
        %v936 = vunpack.c.l.b16 %v521
        %v937 = vunpack.c.h.b16 %v521
        %v938 = vpack.c.b16 %v684, %v682
        %v939 = vpack.c.b16 %v685, %v683
        %v940 = vpack.c.b16 %v688, %v686
        %v941 = vpack.c.b16 %v689, %v687
        %v942 = vpack.c.b16 %v692, %v690
        %v943 = vpack.c.b16 %v693, %v691
        %v944 = vpack.c.b16 %v696, %v694
        %v945 = vpack.c.b16 %v697, %v695
        %v946 = vpack.c.b16 %v700, %v698
        %v947 = vpack.c.b16 %v701, %v699
        %v948 = vpack.c.b16 %v704, %v702
        %v949 = vpack.c.b16 %v705, %v703
        %v950 = vpack.c.b16 %v708, %v706
        %v951 = vpack.c.b16 %v709, %v707
        %v952 = vpack.c.b16 %v712, %v710
        %v953 = vpack.c.b16 %v713, %v711
        %v954 = vpack.c.b16 %v716, %v714
        %v955 = vpack.c.b16 %v717, %v715
        %v956 = vpack.c.b16 %v720, %v718
        %v957 = vpack.c.b16 %v721, %v719
        %v958 = vpack.c.b16 %v724, %v722
        %v959 = vpack.c.b16 %v725, %v723
        %v960 = vpack.c.b16 %v728, %v726
        %v961 = vpack.c.b16 %v729, %v727
        %v962 = vpack.c.b16 %v732, %v730
        %v963 = vpack.c.b16 %v733, %v731
        %v964 = vpack.c.b16 %v736, %v734
        %v965 = vpack.c.b16 %v737, %v735
        %v966 = vpack.c.b16 %v740, %v738
        %v967 = vpack.c.b16 %v741, %v739
        %v968 = vpack.c.b16 %v744, %v742
        %v969 = vpack.c.b16 %v745, %v743
        %v970 = vpack.c.b16 %v748, %v746
        %v971 = vpack.c.b16 %v749, %v747
        %v972 = vpack.c.b16 %v752, %v750
        %v973 = vpack.c.b16 %v753, %v751
        %v974 = vpack.c.b16 %v756, %v754
        %v975 = vpack.c.b16 %v757, %v755
        %v976 = vpack.c.b16 %v760, %v758
        %v977 = vpack.c.b16 %v761, %v759
        %v978 = vpack.c.b16 %v764, %v762
        %v979 = vpack.c.b16 %v765, %v763
        %v980 = vpack.c.b16 %v768, %v766
        %v981 = vpack.c.b16 %v769, %v767
        %v982 = vpack.c.b16 %v772, %v770
        %v983 = vpack.c.b16 %v773, %v771
        %v984 = vpack.c.b16 %v776, %v774
        %v985 = vpack.c.b16 %v777, %v775
        %v986 = vpack.c.b16 %v780, %v778
        %v987 = vpack.c.b16 %v781, %v779
        %v988 = vpack.c.b16 %v784, %v782
        %v989 = vpack.c.b16 %v785, %v783
        %v990 = vpack.c.b16 %v788, %v786
        %v991 = vpack.c.b16 %v789, %v787
        %v992 = vpack.c.b16 %v792, %v790
        %v993 = vpack.c.b16 %v793, %v791
        %v994 = vpack.c.b16 %v796, %v794
        %v995 = vpack.c.b16 %v797, %v795
        %v996 = vpack.c.b16 %v800, %v798
        %v997 = vpack.c.b16 %v801, %v799
        %v998 = vpack.c.b16 %v804, %v802
        %v999 = vpack.c.b16 %v805, %v803
        %v1000 = vpack.c.b16 %v808, %v806
        %v1001 = vpack.c.b16 %v809, %v807
        %v1002 = vpack.c.b16 %v812, %v810
        %v1003 = vpack.c.b16 %v813, %v811
        %v1004 = vpack.c.b16 %v816, %v814
        %v1005 = vpack.c.b16 %v817, %v815
        %v1006 = vpack.c.b16 %v820, %v818
        %v1007 = vpack.c.b16 %v821, %v819
        %v1008 = vpack.c.b16 %v824, %v822
        %v1009 = vpack.c.b16 %v825, %v823
        %v1010 = vpack.c.b16 %v828, %v826
        %v1011 = vpack.c.b16 %v829, %v827
        %v1012 = vpack.c.b16 %v832, %v830
        %v1013 = vpack.c.b16 %v833, %v831
        %v1014 = vpack.c.b16 %v836, %v834
        %v1015 = vpack.c.b16 %v837, %v835
        %v1016 = vpack.c.b16 %v840, %v838
        %v1017 = vpack.c.b16 %v841, %v839
        %v1018 = vpack.c.b16 %v844, %v842
        %v1019 = vpack.c.b16 %v845, %v843
        %v1020 = vpack.c.b16 %v848, %v846
        %v1021 = vpack.c.b16 %v849, %v847
        %v1022 = vpack.c.b16 %v852, %v850
        %v1023 = vpack.c.b16 %v853, %v851
        %v1024 = vpack.c.b16 %v856, %v854
        %v1025 = vpack.c.b16 %v857, %v855
        %v1026 = vpack.c.b16 %v860, %v858
        %v1027 = vpack.c.b16 %v861, %v859
        %v1028 = vpack.c.b16 %v864, %v862
        %v1029 = vpack.c.b16 %v865, %v863
        %v1030 = vpack.c.b16 %v868, %v866
        %v1031 = vpack.c.b16 %v869, %v867
        %v1032 = vpack.c.b16 %v872, %v870
        %v1033 = vpack.c.b16 %v873, %v871
        %v1034 = vpack.c.b16 %v876, %v874
        %v1035 = vpack.c.b16 %v877, %v875
        %v1036 = vpack.c.b16 %v880, %v878
        %v1037 = vpack.c.b16 %v881, %v879
        %v1038 = vpack.c.b16 %v884, %v882
        %v1039 = vpack.c.b16 %v885, %v883
        %v1040 = vpack.c.b16 %v888, %v886
        %v1041 = vpack.c.b16 %v889, %v887
        %v1042 = vpack.c.b16 %v892, %v890
        %v1043 = vpack.c.b16 %v893, %v891
        %v1044 = vpack.c.b16 %v896, %v894
        %v1045 = vpack.c.b16 %v897, %v895
        %v1046 = vpack.c.b16 %v900, %v898
        %v1047 = vpack.c.b16 %v901, %v899
        %v1048 = vpack.c.b16 %v904, %v902
        %v1049 = vpack.c.b16 %v905, %v903
        %v1050 = vpack.c.b16 %v908, %v906
        %v1051 = vpack.c.b16 %v909, %v907
        %v1052 = vpack.c.b16 %v912, %v910
        %v1053 = vpack.c.b16 %v913, %v911
        %v1054 = vpack.c.b16 %v916, %v914
        %v1055 = vpack.c.b16 %v917, %v915
        %v1056 = vpack.c.b16 %v920, %v918
        %v1057 = vpack.c.b16 %v921, %v919
        %v1058 = vpack.c.b16 %v924, %v922
        %v1059 = vpack.c.b16 %v925, %v923
        %v1060 = vpack.c.b16 %v928, %v926
        %v1061 = vpack.c.b16 %v929, %v927
        %v1062 = vpack.c.b16 %v932, %v930
        %v1063 = vpack.c.b16 %v933, %v931
        %v1064 = vpack.c.b16 %v936, %v934
        %v1065 = vpack.c.b16 %v937, %v935
        %v1226 = vunpack.c.l.b16 %v522
        %v1227 = vunpack.c.h.b16 %v522
        %v1228 = vunpack.c.l.b16 %v523
        %v1229 = vunpack.c.h.b16 %v523
        %v1230 = vunpack.c.l.b16 %v524
        %v1231 = vunpack.c.h.b16 %v524
        %v1232 = vunpack.c.l.b16 %v525
        %v1233 = vunpack.c.h.b16 %v525
        %v1234 = vunpack.c.l.b16 %v526
        %v1235 = vunpack.c.h.b16 %v526
        %v1236 = vunpack.c.l.b16 %v527
        %v1237 = vunpack.c.h.b16 %v527
        %v1238 = vunpack.c.l.b16 %v528
        %v1239 = vunpack.c.h.b16 %v528
        %v1240 = vunpack.c.l.b16 %v529
        %v1241 = vunpack.c.h.b16 %v529
        %v1242 = vunpack.c.l.b16 %v530
        %v1243 = vunpack.c.h.b16 %v530
        %v1244 = vunpack.c.l.b16 %v531
        %v1245 = vunpack.c.h.b16 %v531
        %v1246 = vunpack.c.l.b16 %v532
        %v1247 = vunpack.c.h.b16 %v532
        %v1248 = vunpack.c.l.b16 %v533
        %v1249 = vunpack.c.h.b16 %v533
        %v1250 = vunpack.c.l.b16 %v534
        %v1251 = vunpack.c.h.b16 %v534
        %v1252 = vunpack.c.l.b16 %v535
        %v1253 = vunpack.c.h.b16 %v535
        %v1254 = vunpack.c.l.b16 %v536
        %v1255 = vunpack.c.h.b16 %v536
        %v1256 = vunpack.c.l.b16 %v537
        %v1257 = vunpack.c.h.b16 %v537
        %v1258 = vunpack.c.l.b16 %v538
        %v1259 = vunpack.c.h.b16 %v538
        %v1260 = vunpack.c.l.b16 %v539
        %v1261 = vunpack.c.h.b16 %v539
        %v1262 = vunpack.c.l.b16 %v540
        %v1263 = vunpack.c.h.b16 %v540
        %v1264 = vunpack.c.l.b16 %v541
        %v1265 = vunpack.c.h.b16 %v541
        %v1266 = vunpack.c.l.b16 %v542
        %v1267 = vunpack.c.h.b16 %v542
        %v1268 = vunpack.c.l.b16 %v543
        %v1269 = vunpack.c.h.b16 %v543
        %v1270 = vunpack.c.l.b16 %v544
        %v1271 = vunpack.c.h.b16 %v544
        %v1272 = vunpack.c.l.b16 %v545
        %v1273 = vunpack.c.h.b16 %v545
        %v1274 = vunpack.c.l.b16 %v546
        %v1275 = vunpack.c.h.b16 %v546
        %v1276 = vunpack.c.l.b16 %v547
        %v1277 = vunpack.c.h.b16 %v547
        %v1278 = vunpack.c.l.b16 %v548
        %v1279 = vunpack.c.h.b16 %v548
        %v1280 = vunpack.c.l.b16 %v549
        %v1281 = vunpack.c.h.b16 %v549
        %v1282 = vunpack.c.l.b16 %v550
        %v1283 = vunpack.c.h.b16 %v550
        %v1284 = vunpack.c.l.b16 %v551
        %v1285 = vunpack.c.h.b16 %v551
        %v1286 = vunpack.c.l.b16 %v552
        %v1287 = vunpack.c.h.b16 %v552
        %v1288 = vunpack.c.l.b16 %v553
        %v1289 = vunpack.c.h.b16 %v553
        %v1290 = vpack.c.b16 %v1228, %v1226
        %v1291 = vpack.c.b16 %v1229, %v1227
        %v1292 = vpack.c.b16 %v1232, %v1230
        %v1293 = vpack.c.b16 %v1233, %v1231
        %v1294 = vpack.c.b16 %v1236, %v1234
        %v1295 = vpack.c.b16 %v1237, %v1235
        %v1296 = vpack.c.b16 %v1240, %v1238
        %v1297 = vpack.c.b16 %v1241, %v1239
        %v1298 = vpack.c.b16 %v1244, %v1242
        %v1299 = vpack.c.b16 %v1245, %v1243
        %v1300 = vpack.c.b16 %v1248, %v1246
        %v1301 = vpack.c.b16 %v1249, %v1247
        %v1302 = vpack.c.b16 %v1252, %v1250
        %v1303 = vpack.c.b16 %v1253, %v1251
        %v1304 = vpack.c.b16 %v1256, %v1254
        %v1305 = vpack.c.b16 %v1257, %v1255
        %v1306 = vpack.c.b16 %v1260, %v1258
        %v1307 = vpack.c.b16 %v1261, %v1259
        %v1308 = vpack.c.b16 %v1264, %v1262
        %v1309 = vpack.c.b16 %v1265, %v1263
        %v1310 = vpack.c.b16 %v1268, %v1266
        %v1311 = vpack.c.b16 %v1269, %v1267
        %v1312 = vpack.c.b16 %v1272, %v1270
        %v1313 = vpack.c.b16 %v1273, %v1271
        %v1314 = vpack.c.b16 %v1276, %v1274
        %v1315 = vpack.c.b16 %v1277, %v1275
        %v1316 = vpack.c.b16 %v1280, %v1278
        %v1317 = vpack.c.b16 %v1281, %v1279
        %v1318 = vpack.c.b16 %v1284, %v1282
        %v1319 = vpack.c.b16 %v1285, %v1283
        %v1320 = vpack.c.b16 %v1288, %v1286
        %v1321 = vpack.c.b16 %v1289, %v1287
        %1354 = vmatprep.subr.bf16.mxu0 %v1291
        %1355 = vmatpush1.bf16.msra.mxu0 %v1290
        %1356 = vmatprep.subr.bf16.mxu0 %v1293
        %1357 = vmatpush1.bf16.msra.mxu0 %v1292
        %1358 = vmatprep.subr.bf16.mxu0 %v1295
        %1359 = vmatpush1.bf16.msra.mxu0 %v1294
        %1360 = vmatprep.subr.bf16.mxu0 %v1297
        %1361 = vmatpush1.bf16.msra.mxu0 %v1296
        %1362 = vmatprep.subr.bf16.mxu0 %v1299
        %1363 = vmatpush1.bf16.msra.mxu0 %v1298
        %1364 = vmatprep.subr.bf16.mxu0 %v1301
        %1365 = vmatpush1.bf16.msra.mxu0 %v1300
        %1366 = vmatprep.subr.bf16.mxu0 %v1303
        %1367 = vmatpush1.bf16.msra.mxu0 %v1302
        %1368 = vmatprep.subr.bf16.mxu0 %v1305
        %1369 = vmatpush1.bf16.msra.mxu0 %v1304
        %1370 = vmatprep.subr.bf16.mxu0 %v1307
        %1371 = vmatpush1.bf16.msra.mxu0 %v1306
        %1372 = vmatprep.subr.bf16.mxu0 %v1309
        %1373 = vmatpush1.bf16.msra.mxu0 %v1308
        %1374 = vmatprep.subr.bf16.mxu0 %v1311
        %1375 = vmatpush1.bf16.msra.mxu0 %v1310
        %1376 = vmatprep.subr.bf16.mxu0 %v1313
        %1377 = vmatpush1.bf16.msra.mxu0 %v1312
        %1378 = vmatprep.subr.bf16.mxu0 %v1315
        %1379 = vmatpush1.bf16.msra.mxu0 %v1314
        %1380 = vmatprep.subr.bf16.mxu0 %v1317
        %1381 = vmatpush1.bf16.msra.mxu0 %v1316
        %1382 = vmatprep.subr.bf16.mxu0 %v1319
        %1383 = vmatpush1.bf16.msra.mxu0 %v1318
        %1384 = vmatprep.subr.bf16.mxu0 %v1321
        %1385 = vmatpush1.bf16.msra.mxu0 %v1320
        %1386 = vmatprep.mubr.bf16.mxu0 %v939
        %1387 = vmatmul.mubr.bf16.gmra.mrb[0].mxu0 %v938
        %v1388 = vpop.f32.mrb[0].mxu0
        %v1389 = vadd.f32 0.0, %v1388
        %v1390 = vpop.f32.mrb[0].mxu0
        %v1391 = vadd.f32 0.0, %v1390
        %v1392 = vpop.f32.mrb[0].mxu0
        %v1393 = vadd.f32 0.0, %v1392
        %v1394 = vpop.f32.mrb[0].mxu0
        %v1395 = vadd.f32 0.0, %v1394
        %1396 = vmatprep.mubr.bf16.mxu0 %v941
        %1397 = vmatmul.mubr.bf16.gmra.mrb[0].mxu0 %v940
        %v1398 = vpop.f32.mrb[0].mxu0
        %v1399 = vadd.f32 0.0, %v1398
        %v1400 = vpop.f32.mrb[0].mxu0
        %v1401 = vadd.f32 0.0, %v1400
        %v1402 = vpop.f32.mrb[0].mxu0
        %v1403 = vadd.f32 0.0, %v1402
        %v1404 = vpop.f32.mrb[0].mxu0
        %v1405 = vadd.f32 0.0, %v1404
        %1406 = vmatprep.mubr.bf16.mxu0 %v943
        %1407 = vmatmul.mubr.bf16.gmra.mrb[0].mxu0 %v942
        %v1408 = vpop.f32.mrb[0].mxu0
        %v1409 = vadd.f32 0.0, %v1408
        %v1410 = vpop.f32.mrb[0].mxu0
        %v1411 = vadd.f32 0.0, %v1410
        %v1412 = vpop.f32.mrb[0].mxu0
        %v1413 = vadd.f32 0.0, %v1412
        %v1414 = vpop.f32.mrb[0].mxu0
        %v1415 = vadd.f32 0.0, %v1414
        %1416 = vmatprep.mubr.bf16.mxu0 %v945
        %1417 = vmatmul.mubr.bf16.gmra.mrb[0].mxu0 %v944
        %v1418 = vpop.f32.mrb[0].mxu0
        %v1419 = vadd.f32 0.0, %v1418
        %v1420 = vpop.f32.mrb[0].mxu0
        %v1421 = vadd.f32 0.0, %v1420
        %v1422 = vpop.f32.mrb[0].mxu0
        %v1423 = vadd.f32 0.0, %v1422
        %v1424 = vpop.f32.mrb[0].mxu0
        %v1425 = vadd.f32 0.0, %v1424
        %1426 = vmatprep.mubr.bf16.mxu0 %v947
        %1427 = vmatmul.mubr.bf16.gmra.mrb[0].mxu0 %v946
        %v1428 = vpop.f32.mrb[0].mxu0
        %v1429 = vadd.f32 0.0, %v1428
        %v1430 = vpop.f32.mrb[0].mxu0
        %v1431 = vadd.f32 0.0, %v1430
        %v1432 = vpop.f32.mrb[0].mxu0
        %v1433 = vadd.f32 0.0, %v1432
        %v1434 = vpop.f32.mrb[0].mxu0
        %v1435 = vadd.f32 0.0, %v1434
        %1436 = vmatprep.mubr.bf16.mxu0 %v949
        %1437 = vmatmul.mubr.bf16.gmra.mrb[0].mxu0 %v948
        %v1438 = vpop.f32.mrb[0].mxu0
        %v1439 = vadd.f32 0.0, %v1438
        %v1440 = vpop.f32.mrb[0].mxu0
        %v1441 = vadd.f32 0.0, %v1440
        %v1442 = vpop.f32.mrb[0].mxu0
        %v1443 = vadd.f32 0.0, %v1442
        %v1444 = vpop.f32.mrb[0].mxu0
        %v1445 = vadd.f32 0.0, %v1444
        %1446 = vmatprep.mubr.bf16.mxu0 %v951
        %1447 = vmatmul.mubr.bf16.gmra.mrb[0].mxu0 %v950
        %v1448 = vpop.f32.mrb[0].mxu0
        %v1449 = vadd.f32 0.0, %v1448
        %v1450 = vpop.f32.mrb[0].mxu0
        %v1451 = vadd.f32 0.0, %v1450
        %v1452 = vpop.f32.mrb[0].mxu0
        %v1453 = vadd.f32 0.0, %v1452
        %v1454 = vpop.f32.mrb[0].mxu0
        %v1455 = vadd.f32 0.0, %v1454
        %1456 = vmatprep.mubr.bf16.mxu0 %v953
        %1457 = vmatmul.mubr.bf16.gmra.mrb[0].mxu0 %v952
        %v1458 = vpop.f32.mrb[0].mxu0
        %v1459 = vadd.f32 0.0, %v1458
        %v1460 = vpop.f32.mrb[0].mxu0
        %v1461 = vadd.f32 0.0, %v1460
        %v1462 = vpop.f32.mrb[0].mxu0
        %v1463 = vadd.f32 0.0, %v1462
        %v1464 = vpop.f32.mrb[0].mxu0
        %v1465 = vadd.f32 0.0, %v1464
        %1466 = vmatprep.mubr.bf16.mxu0 %v955
        %1467 = vmatmul.mubr.bf16.gmra.mrb[0].mxu0 %v954
        %v1468 = vpop.f32.mrb[0].mxu0
        %v1469 = vadd.f32 0.0, %v1468
        %v1470 = vpop.f32.mrb[0].mxu0
        %v1471 = vadd.f32 0.0, %v1470
        %v1472 = vpop.f32.mrb[0].mxu0
        %v1473 = vadd.f32 0.0, %v1472
        %v1474 = vpop.f32.mrb[0].mxu0
        %v1475 = vadd.f32 0.0, %v1474
        %1476 = vmatprep.mubr.bf16.mxu0 %v957
        %1477 = vmatmul.mubr.bf16.gmra.mrb[0].mxu0 %v956
        %v1478 = vpop.f32.mrb[0].mxu0
        %v1479 = vadd.f32 0.0, %v1478
        %v1480 = vpop.f32.mrb[0].mxu0
        %v1481 = vadd.f32 0.0, %v1480
        %v1482 = vpop.f32.mrb[0].mxu0
        %v1483 = vadd.f32 0.0, %v1482
        %v1484 = vpop.f32.mrb[0].mxu0
        %v1485 = vadd.f32 0.0, %v1484
        %1486 = vmatprep.mubr.bf16.mxu0 %v959
        %1487 = vmatmul.mubr.bf16.gmra.mrb[0].mxu0 %v958
        %v1488 = vpop.f32.mrb[0].mxu0
        %v1489 = vadd.f32 0.0, %v1488
        %v1490 = vpop.f32.mrb[0].mxu0
        %v1491 = vadd.f32 0.0, %v1490
        %v1492 = vpop.f32.mrb[0].mxu0
        %v1493 = vadd.f32 0.0, %v1492
        %v1494 = vpop.f32.mrb[0].mxu0
        %v1495 = vadd.f32 0.0, %v1494
        %1496 = vmatprep.mubr.bf16.mxu0 %v961
        %1497 = vmatmul.mubr.bf16.gmra.mrb[0].mxu0 %v960
        %v1498 = vpop.f32.mrb[0].mxu0
        %v1499 = vadd.f32 0.0, %v1498
        %v1500 = vpop.f32.mrb[0].mxu0
        %v1501 = vadd.f32 0.0, %v1500
        %v1502 = vpop.f32.mrb[0].mxu0
        %v1503 = vadd.f32 0.0, %v1502
        %v1504 = vpop.f32.mrb[0].mxu0
        %v1505 = vadd.f32 0.0, %v1504
        %1506 = vmatprep.mubr.bf16.mxu0 %v963
        %1507 = vmatmul.mubr.bf16.gmra.mrb[0].mxu0 %v962
        %v1508 = vpop.f32.mrb[0].mxu0
        %v1509 = vadd.f32 0.0, %v1508
        %v1510 = vpop.f32.mrb[0].mxu0
        %v1511 = vadd.f32 0.0, %v1510
        %v1512 = vpop.f32.mrb[0].mxu0
        %v1513 = vadd.f32 0.0, %v1512
        %v1514 = vpop.f32.mrb[0].mxu0
        %v1515 = vadd.f32 0.0, %v1514
        %1516 = vmatprep.mubr.bf16.mxu0 %v965
        %1517 = vmatmul.mubr.bf16.gmra.mrb[0].mxu0 %v964
        %v1518 = vpop.f32.mrb[0].mxu0
        %v1519 = vadd.f32 0.0, %v1518
        %v1520 = vpop.f32.mrb[0].mxu0
        %v1521 = vadd.f32 0.0, %v1520
        %v1522 = vpop.f32.mrb[0].mxu0
        %v1523 = vadd.f32 0.0, %v1522
        %v1524 = vpop.f32.mrb[0].mxu0
        %v1525 = vadd.f32 0.0, %v1524
        %1526 = vmatprep.mubr.bf16.mxu0 %v967
        %1527 = vmatmul.mubr.bf16.gmra.mrb[0].mxu0 %v966
        %v1528 = vpop.f32.mrb[0].mxu0
        %v1529 = vadd.f32 0.0, %v1528
        %v1530 = vpop.f32.mrb[0].mxu0
        %v1531 = vadd.f32 0.0, %v1530
        %v1532 = vpop.f32.mrb[0].mxu0
        %v1533 = vadd.f32 0.0, %v1532
        %v1534 = vpop.f32.mrb[0].mxu0
        %v1535 = vadd.f32 0.0, %v1534
        %1536 = vmatprep.mubr.bf16.mxu0 %v969
        %1537 = vmatmul.mubr.bf16.gmra.mrb[0].mxu0 %v968
        %v1538 = vpop.f32.mrb[0].mxu0
        %v1539 = vadd.f32 0.0, %v1538
        %v1540 = vpop.f32.mrb[0].mxu0
        %v1541 = vadd.f32 0.0, %v1540
        %v1542 = vpop.f32.mrb[0].mxu0
        %v1543 = vadd.f32 0.0, %v1542
        %v1544 = vpop.f32.mrb[0].mxu0
        %v1545 = vadd.f32 0.0, %v1544
        %1546 = vmatprep.mubr.bf16.mxu0 %v971
        %1547 = vmatmul.mubr.bf16.gmra.mrb[0].mxu0 %v970
        %v1548 = vpop.f32.mrb[0].mxu0
        %v1549 = vadd.f32 0.0, %v1548
        %v1550 = vpop.f32.mrb[0].mxu0
        %v1551 = vadd.f32 0.0, %v1550
        %v1552 = vpop.f32.mrb[0].mxu0
        %v1553 = vadd.f32 0.0, %v1552
        %v1554 = vpop.f32.mrb[0].mxu0
        %v1555 = vadd.f32 0.0, %v1554
        %1556 = vmatprep.mubr.bf16.mxu0 %v973
        %1557 = vmatmul.mubr.bf16.gmra.mrb[0].mxu0 %v972
        %v1558 = vpop.f32.mrb[0].mxu0
        %v1559 = vadd.f32 0.0, %v1558
        %v1560 = vpop.f32.mrb[0].mxu0
        %v1561 = vadd.f32 0.0, %v1560
        %v1562 = vpop.f32.mrb[0].mxu0
        %v1563 = vadd.f32 0.0, %v1562
        %v1564 = vpop.f32.mrb[0].mxu0
        %v1565 = vadd.f32 0.0, %v1564
        %1566 = vmatprep.mubr.bf16.mxu0 %v975
        %1567 = vmatmul.mubr.bf16.gmra.mrb[0].mxu0 %v974
        %v1568 = vpop.f32.mrb[0].mxu0
        %v1569 = vadd.f32 0.0, %v1568
        %v1570 = vpop.f32.mrb[0].mxu0
        %v1571 = vadd.f32 0.0, %v1570
        %v1572 = vpop.f32.mrb[0].mxu0
        %v1573 = vadd.f32 0.0, %v1572
        %v1574 = vpop.f32.mrb[0].mxu0
        %v1575 = vadd.f32 0.0, %v1574
        %1576 = vmatprep.mubr.bf16.mxu0 %v977
        %1577 = vmatmul.mubr.bf16.gmra.mrb[0].mxu0 %v976
        %v1578 = vpop.f32.mrb[0].mxu0
        %v1579 = vadd.f32 0.0, %v1578
        %v1580 = vpop.f32.mrb[0].mxu0
        %v1581 = vadd.f32 0.0, %v1580
        %v1582 = vpop.f32.mrb[0].mxu0
        %v1583 = vadd.f32 0.0, %v1582
        %v1584 = vpop.f32.mrb[0].mxu0
        %v1585 = vadd.f32 0.0, %v1584
        %1586 = vmatprep.mubr.bf16.mxu0 %v979
        %1587 = vmatmul.mubr.bf16.gmra.mrb[0].mxu0 %v978
        %v1588 = vpop.f32.mrb[0].mxu0
        %v1589 = vadd.f32 0.0, %v1588
        %v1590 = vpop.f32.mrb[0].mxu0
        %v1591 = vadd.f32 0.0, %v1590
        %v1592 = vpop.f32.mrb[0].mxu0
        %v1593 = vadd.f32 0.0, %v1592
        %v1594 = vpop.f32.mrb[0].mxu0
        %v1595 = vadd.f32 0.0, %v1594
        %1596 = vmatprep.mubr.bf16.mxu0 %v981
        %1597 = vmatmul.mubr.bf16.gmra.mrb[0].mxu0 %v980
        %v1598 = vpop.f32.mrb[0].mxu0
        %v1599 = vadd.f32 0.0, %v1598
        %v1600 = vpop.f32.mrb[0].mxu0
        %v1601 = vadd.f32 0.0, %v1600
        %v1602 = vpop.f32.mrb[0].mxu0
        %v1603 = vadd.f32 0.0, %v1602
        %v1604 = vpop.f32.mrb[0].mxu0
        %v1605 = vadd.f32 0.0, %v1604
        %1606 = vmatprep.mubr.bf16.mxu0 %v983
        %1607 = vmatmul.mubr.bf16.gmra.mrb[0].mxu0 %v982
        %v1608 = vpop.f32.mrb[0].mxu0
        %v1609 = vadd.f32 0.0, %v1608
        %v1610 = vpop.f32.mrb[0].mxu0
        %v1611 = vadd.f32 0.0, %v1610
        %v1612 = vpop.f32.mrb[0].mxu0
        %v1613 = vadd.f32 0.0, %v1612
        %v1614 = vpop.f32.mrb[0].mxu0
        %v1615 = vadd.f32 0.0, %v1614
        %1616 = vmatprep.mubr.bf16.mxu0 %v985
        %1617 = vmatmul.mubr.bf16.gmra.mrb[0].mxu0 %v984
        %v1618 = vpop.f32.mrb[0].mxu0
        %v1619 = vadd.f32 0.0, %v1618
        %v1620 = vpop.f32.mrb[0].mxu0
        %v1621 = vadd.f32 0.0, %v1620
        %v1622 = vpop.f32.mrb[0].mxu0
        %v1623 = vadd.f32 0.0, %v1622
        %v1624 = vpop.f32.mrb[0].mxu0
        %v1625 = vadd.f32 0.0, %v1624
        %1626 = vmatprep.mubr.bf16.mxu0 %v987
        %1627 = vmatmul.mubr.bf16.gmra.mrb[0].mxu0 %v986
        %v1628 = vpop.f32.mrb[0].mxu0
        %v1629 = vadd.f32 0.0, %v1628
        %v1630 = vpop.f32.mrb[0].mxu0
        %v1631 = vadd.f32 0.0, %v1630
        %v1632 = vpop.f32.mrb[0].mxu0
        %v1633 = vadd.f32 0.0, %v1632
        %v1634 = vpop.f32.mrb[0].mxu0
        %v1635 = vadd.f32 0.0, %v1634
        %1636 = vmatprep.mubr.bf16.mxu0 %v989
        %1637 = vmatmul.mubr.bf16.gmra.mrb[0].mxu0 %v988
        %v1638 = vpop.f32.mrb[0].mxu0
        %v1639 = vadd.f32 0.0, %v1638
        %v1640 = vpop.f32.mrb[0].mxu0
        %v1641 = vadd.f32 0.0, %v1640
        %v1642 = vpop.f32.mrb[0].mxu0
        %v1643 = vadd.f32 0.0, %v1642
        %v1644 = vpop.f32.mrb[0].mxu0
        %v1645 = vadd.f32 0.0, %v1644
        %1646 = vmatprep.mubr.bf16.mxu0 %v991
        %1647 = vmatmul.mubr.bf16.gmra.mrb[0].mxu0 %v990
        %v1648 = vpop.f32.mrb[0].mxu0
        %v1649 = vadd.f32 0.0, %v1648
        %v1650 = vpop.f32.mrb[0].mxu0
        %v1651 = vadd.f32 0.0, %v1650
        %v1652 = vpop.f32.mrb[0].mxu0
        %v1653 = vadd.f32 0.0, %v1652
        %v1654 = vpop.f32.mrb[0].mxu0
        %v1655 = vadd.f32 0.0, %v1654
        %1656 = vmatprep.mubr.bf16.mxu0 %v993
        %1657 = vmatmul.mubr.bf16.gmra.mrb[0].mxu0 %v992
        %v1658 = vpop.f32.mrb[0].mxu0
        %v1659 = vadd.f32 0.0, %v1658
        %v1660 = vpop.f32.mrb[0].mxu0
        %v1661 = vadd.f32 0.0, %v1660
        %v1662 = vpop.f32.mrb[0].mxu0
        %v1663 = vadd.f32 0.0, %v1662
        %v1664 = vpop.f32.mrb[0].mxu0
        %v1665 = vadd.f32 0.0, %v1664
        %1666 = vmatprep.mubr.bf16.mxu0 %v995
        %1667 = vmatmul.mubr.bf16.gmra.mrb[0].mxu0 %v994
        %v1668 = vpop.f32.mrb[0].mxu0
        %v1669 = vadd.f32 0.0, %v1668
        %v1670 = vpop.f32.mrb[0].mxu0
        %v1671 = vadd.f32 0.0, %v1670
        %v1672 = vpop.f32.mrb[0].mxu0
        %v1673 = vadd.f32 0.0, %v1672
        %v1674 = vpop.f32.mrb[0].mxu0
        %v1675 = vadd.f32 0.0, %v1674
        %1676 = vmatprep.mubr.bf16.mxu0 %v997
        %1677 = vmatmul.mubr.bf16.gmra.mrb[0].mxu0 %v996
        %v1678 = vpop.f32.mrb[0].mxu0
        %v1679 = vadd.f32 0.0, %v1678
        %v1680 = vpop.f32.mrb[0].mxu0
        %v1681 = vadd.f32 0.0, %v1680
        %v1682 = vpop.f32.mrb[0].mxu0
        %v1683 = vadd.f32 0.0, %v1682
        %v1684 = vpop.f32.mrb[0].mxu0
        %v1685 = vadd.f32 0.0, %v1684
        %1686 = vmatprep.mubr.bf16.mxu0 %v999
        %1687 = vmatmul.mubr.bf16.gmra.mrb[0].mxu0 %v998
        %v1688 = vpop.f32.mrb[0].mxu0
        %v1689 = vadd.f32 0.0, %v1688
        %v1690 = vpop.f32.mrb[0].mxu0
        %v1691 = vadd.f32 0.0, %v1690
        %v1692 = vpop.f32.mrb[0].mxu0
        %v1693 = vadd.f32 0.0, %v1692
        %v1694 = vpop.f32.mrb[0].mxu0
        %v1695 = vadd.f32 0.0, %v1694
        %1696 = vmatprep.mubr.bf16.mxu0 %v1001
        %1697 = vmatmul.mubr.bf16.gmra.mrb[0].mxu0 %v1000
        %v1698 = vpop.f32.mrb[0].mxu0
        %v1699 = vadd.f32 0.0, %v1698
        %v1700 = vpop.f32.mrb[0].mxu0
        %v1701 = vadd.f32 0.0, %v1700
        %v1702 = vpop.f32.mrb[0].mxu0
        %v1703 = vadd.f32 0.0, %v1702
        %v1704 = vpop.f32.mrb[0].mxu0
        %v1705 = vadd.f32 0.0, %v1704
        %1706 = vmatprep.mubr.bf16.mxu0 %v1003
        %1707 = vmatmul.mubr.bf16.gmra.mrb[0].mxu0 %v1002
        %v1708 = vpop.f32.mrb[0].mxu0
        %v1709 = vadd.f32 0.0, %v1708
        %v1710 = vpop.f32.mrb[0].mxu0
        %v1711 = vadd.f32 0.0, %v1710
        %v1712 = vpop.f32.mrb[0].mxu0
        %v1713 = vadd.f32 0.0, %v1712
        %v1714 = vpop.f32.mrb[0].mxu0
        %v1715 = vadd.f32 0.0, %v1714
        %1716 = vmatprep.mubr.bf16.mxu0 %v1005
        %1717 = vmatmul.mubr.bf16.gmra.mrb[0].mxu0 %v1004
        %v1718 = vpop.f32.mrb[0].mxu0
        %v1719 = vadd.f32 0.0, %v1718
        %v1720 = vpop.f32.mrb[0].mxu0
        %v1721 = vadd.f32 0.0, %v1720
        %v1722 = vpop.f32.mrb[0].mxu0
        %v1723 = vadd.f32 0.0, %v1722
        %v1724 = vpop.f32.mrb[0].mxu0
        %v1725 = vadd.f32 0.0, %v1724
        %1726 = vmatprep.mubr.bf16.mxu0 %v1007
        %1727 = vmatmul.mubr.bf16.gmra.mrb[0].mxu0 %v1006
        %v1728 = vpop.f32.mrb[0].mxu0
        %v1729 = vadd.f32 0.0, %v1728
        %v1730 = vpop.f32.mrb[0].mxu0
        %v1731 = vadd.f32 0.0, %v1730
        %v1732 = vpop.f32.mrb[0].mxu0
        %v1733 = vadd.f32 0.0, %v1732
        %v1734 = vpop.f32.mrb[0].mxu0
        %v1735 = vadd.f32 0.0, %v1734
        %1736 = vmatprep.mubr.bf16.mxu0 %v1009
        %1737 = vmatmul.mubr.bf16.gmra.mrb[0].mxu0 %v1008
        %v1738 = vpop.f32.mrb[0].mxu0
        %v1739 = vadd.f32 0.0, %v1738
        %v1740 = vpop.f32.mrb[0].mxu0
        %v1741 = vadd.f32 0.0, %v1740
        %v1742 = vpop.f32.mrb[0].mxu0
        %v1743 = vadd.f32 0.0, %v1742
        %v1744 = vpop.f32.mrb[0].mxu0
        %v1745 = vadd.f32 0.0, %v1744
        %1746 = vmatprep.mubr.bf16.mxu0 %v1011
        %1747 = vmatmul.mubr.bf16.gmra.mrb[0].mxu0 %v1010
        %v1748 = vpop.f32.mrb[0].mxu0
        %v1749 = vadd.f32 0.0, %v1748
        %v1750 = vpop.f32.mrb[0].mxu0
        %v1751 = vadd.f32 0.0, %v1750
        %v1752 = vpop.f32.mrb[0].mxu0
        %v1753 = vadd.f32 0.0, %v1752
        %v1754 = vpop.f32.mrb[0].mxu0
        %v1755 = vadd.f32 0.0, %v1754
        %1756 = vmatprep.mubr.bf16.mxu0 %v1013
        %1757 = vmatmul.mubr.bf16.gmra.mrb[0].mxu0 %v1012
        %v1758 = vpop.f32.mrb[0].mxu0
        %v1759 = vadd.f32 0.0, %v1758
        %v1760 = vpop.f32.mrb[0].mxu0
        %v1761 = vadd.f32 0.0, %v1760
        %v1762 = vpop.f32.mrb[0].mxu0
        %v1763 = vadd.f32 0.0, %v1762
        %v1764 = vpop.f32.mrb[0].mxu0
        %v1765 = vadd.f32 0.0, %v1764
        %1766 = vmatprep.mubr.bf16.mxu0 %v1015
        %1767 = vmatmul.mubr.bf16.gmra.mrb[0].mxu0 %v1014
        %v1768 = vpop.f32.mrb[0].mxu0
        %v1769 = vadd.f32 0.0, %v1768
        %v1770 = vpop.f32.mrb[0].mxu0
        %v1771 = vadd.f32 0.0, %v1770
        %v1772 = vpop.f32.mrb[0].mxu0
        %v1773 = vadd.f32 0.0, %v1772
        %v1774 = vpop.f32.mrb[0].mxu0
        %v1775 = vadd.f32 0.0, %v1774
        %1776 = vmatprep.mubr.bf16.mxu0 %v1017
        %1777 = vmatmul.mubr.bf16.gmra.mrb[0].mxu0 %v1016
        %v1778 = vpop.f32.mrb[0].mxu0
        %v1779 = vadd.f32 0.0, %v1778
        %v1780 = vpop.f32.mrb[0].mxu0
        %v1781 = vadd.f32 0.0, %v1780
        %v1782 = vpop.f32.mrb[0].mxu0
        %v1783 = vadd.f32 0.0, %v1782
        %v1784 = vpop.f32.mrb[0].mxu0
        %v1785 = vadd.f32 0.0, %v1784
        %1786 = vmatprep.mubr.bf16.mxu0 %v1019
        %1787 = vmatmul.mubr.bf16.gmra.mrb[0].mxu0 %v1018
        %v1788 = vpop.f32.mrb[0].mxu0
        %v1789 = vadd.f32 0.0, %v1788
        %v1790 = vpop.f32.mrb[0].mxu0
        %v1791 = vadd.f32 0.0, %v1790
        %v1792 = vpop.f32.mrb[0].mxu0
        %v1793 = vadd.f32 0.0, %v1792
        %v1794 = vpop.f32.mrb[0].mxu0
        %v1795 = vadd.f32 0.0, %v1794
        %1796 = vmatprep.mubr.bf16.mxu0 %v1021
        %1797 = vmatmul.mubr.bf16.gmra.mrb[0].mxu0 %v1020
        %v1798 = vpop.f32.mrb[0].mxu0
        %v1799 = vadd.f32 0.0, %v1798
        %v1800 = vpop.f32.mrb[0].mxu0
        %v1801 = vadd.f32 0.0, %v1800
        %v1802 = vpop.f32.mrb[0].mxu0
        %v1803 = vadd.f32 0.0, %v1802
        %v1804 = vpop.f32.mrb[0].mxu0
        %v1805 = vadd.f32 0.0, %v1804
        %1806 = vmatprep.mubr.bf16.mxu0 %v1023
        %1807 = vmatmul.mubr.bf16.gmra.mrb[0].mxu0 %v1022
        %v1808 = vpop.f32.mrb[0].mxu0
        %v1809 = vadd.f32 0.0, %v1808
        %v1810 = vpop.f32.mrb[0].mxu0
        %v1811 = vadd.f32 0.0, %v1810
        %v1812 = vpop.f32.mrb[0].mxu0
        %v1813 = vadd.f32 0.0, %v1812
        %v1814 = vpop.f32.mrb[0].mxu0
        %v1815 = vadd.f32 0.0, %v1814
        %1816 = vmatprep.mubr.bf16.mxu0 %v1025
        %1817 = vmatmul.mubr.bf16.gmra.mrb[0].mxu0 %v1024
        %v1818 = vpop.f32.mrb[0].mxu0
        %v1819 = vadd.f32 0.0, %v1818
        %v1820 = vpop.f32.mrb[0].mxu0
        %v1821 = vadd.f32 0.0, %v1820
        %v1822 = vpop.f32.mrb[0].mxu0
        %v1823 = vadd.f32 0.0, %v1822
        %v1824 = vpop.f32.mrb[0].mxu0
        %v1825 = vadd.f32 0.0, %v1824
        %1826 = vmatprep.mubr.bf16.mxu0 %v1027
        %1827 = vmatmul.mubr.bf16.gmra.mrb[0].mxu0 %v1026
        %v1828 = vpop.f32.mrb[0].mxu0
        %v1829 = vadd.f32 0.0, %v1828
        %v1830 = vpop.f32.mrb[0].mxu0
        %v1831 = vadd.f32 0.0, %v1830
        %v1832 = vpop.f32.mrb[0].mxu0
        %v1833 = vadd.f32 0.0, %v1832
        %v1834 = vpop.f32.mrb[0].mxu0
        %v1835 = vadd.f32 0.0, %v1834
        %1836 = vmatprep.mubr.bf16.mxu0 %v1029
        %1837 = vmatmul.mubr.bf16.gmra.mrb[0].mxu0 %v1028
        %v1838 = vpop.f32.mrb[0].mxu0
        %v1839 = vadd.f32 0.0, %v1838
        %v1840 = vpop.f32.mrb[0].mxu0
        %v1841 = vadd.f32 0.0, %v1840
        %v1842 = vpop.f32.mrb[0].mxu0
        %v1843 = vadd.f32 0.0, %v1842
        %v1844 = vpop.f32.mrb[0].mxu0
        %v1845 = vadd.f32 0.0, %v1844
        %1846 = vmatprep.mubr.bf16.mxu0 %v1031
        %1847 = vmatmul.mubr.bf16.gmra.mrb[0].mxu0 %v1030
        %v1848 = vpop.f32.mrb[0].mxu0
        %v1849 = vadd.f32 0.0, %v1848
        %v1850 = vpop.f32.mrb[0].mxu0
        %v1851 = vadd.f32 0.0, %v1850
        %v1852 = vpop.f32.mrb[0].mxu0
        %v1853 = vadd.f32 0.0, %v1852
        %v1854 = vpop.f32.mrb[0].mxu0
        %v1855 = vadd.f32 0.0, %v1854
        %1856 = vmatprep.mubr.bf16.mxu0 %v1033
        %1857 = vmatmul.mubr.bf16.gmra.mrb[0].mxu0 %v1032
        %v1858 = vpop.f32.mrb[0].mxu0
        %v1859 = vadd.f32 0.0, %v1858
        %v1860 = vpop.f32.mrb[0].mxu0
        %v1861 = vadd.f32 0.0, %v1860
        %v1862 = vpop.f32.mrb[0].mxu0
        %v1863 = vadd.f32 0.0, %v1862
        %v1864 = vpop.f32.mrb[0].mxu0
        %v1865 = vadd.f32 0.0, %v1864
        %1866 = vmatprep.mubr.bf16.mxu0 %v1035
        %1867 = vmatmul.mubr.bf16.gmra.mrb[0].mxu0 %v1034
        %v1868 = vpop.f32.mrb[0].mxu0
        %v1869 = vadd.f32 0.0, %v1868
        %v1870 = vpop.f32.mrb[0].mxu0
        %v1871 = vadd.f32 0.0, %v1870
        %v1872 = vpop.f32.mrb[0].mxu0
        %v1873 = vadd.f32 0.0, %v1872
        %v1874 = vpop.f32.mrb[0].mxu0
        %v1875 = vadd.f32 0.0, %v1874
        %1876 = vmatprep.mubr.bf16.mxu0 %v1037
        %1877 = vmatmul.mubr.bf16.gmra.mrb[0].mxu0 %v1036
        %v1878 = vpop.f32.mrb[0].mxu0
        %v1879 = vadd.f32 0.0, %v1878
        %v1880 = vpop.f32.mrb[0].mxu0
        %v1881 = vadd.f32 0.0, %v1880
        %v1882 = vpop.f32.mrb[0].mxu0
        %v1883 = vadd.f32 0.0, %v1882
        %v1884 = vpop.f32.mrb[0].mxu0
        %v1885 = vadd.f32 0.0, %v1884
        %1886 = vmatprep.mubr.bf16.mxu0 %v1039
        %1887 = vmatmul.mubr.bf16.gmra.mrb[0].mxu0 %v1038
        %v1888 = vpop.f32.mrb[0].mxu0
        %v1889 = vadd.f32 0.0, %v1888
        %v1890 = vpop.f32.mrb[0].mxu0
        %v1891 = vadd.f32 0.0, %v1890
        %v1892 = vpop.f32.mrb[0].mxu0
        %v1893 = vadd.f32 0.0, %v1892
        %v1894 = vpop.f32.mrb[0].mxu0
        %v1895 = vadd.f32 0.0, %v1894
        %1896 = vmatprep.mubr.bf16.mxu0 %v1041
        %1897 = vmatmul.mubr.bf16.gmra.mrb[0].mxu0 %v1040
        %v1898 = vpop.f32.mrb[0].mxu0
        %v1899 = vadd.f32 0.0, %v1898
        %v1900 = vpop.f32.mrb[0].mxu0
        %v1901 = vadd.f32 0.0, %v1900
        %v1902 = vpop.f32.mrb[0].mxu0
        %v1903 = vadd.f32 0.0, %v1902
        %v1904 = vpop.f32.mrb[0].mxu0
        %v1905 = vadd.f32 0.0, %v1904
        %1906 = vmatprep.mubr.bf16.mxu0 %v1043
        %1907 = vmatmul.mubr.bf16.gmra.mrb[0].mxu0 %v1042
        %v1908 = vpop.f32.mrb[0].mxu0
        %v1909 = vadd.f32 0.0, %v1908
        %v1910 = vpop.f32.mrb[0].mxu0
        %v1911 = vadd.f32 0.0, %v1910
        %v1912 = vpop.f32.mrb[0].mxu0
        %v1913 = vadd.f32 0.0, %v1912
        %v1914 = vpop.f32.mrb[0].mxu0
        %v1915 = vadd.f32 0.0, %v1914
        %1916 = vmatprep.mubr.bf16.mxu0 %v1045
        %1917 = vmatmul.mubr.bf16.gmra.mrb[0].mxu0 %v1044
        %v1918 = vpop.f32.mrb[0].mxu0
        %v1919 = vadd.f32 0.0, %v1918
        %v1920 = vpop.f32.mrb[0].mxu0
        %v1921 = vadd.f32 0.0, %v1920
        %v1922 = vpop.f32.mrb[0].mxu0
        %v1923 = vadd.f32 0.0, %v1922
        %v1924 = vpop.f32.mrb[0].mxu0
        %v1925 = vadd.f32 0.0, %v1924
        %1926 = vmatprep.mubr.bf16.mxu0 %v1047
        %1927 = vmatmul.mubr.bf16.gmra.mrb[0].mxu0 %v1046
        %v1928 = vpop.f32.mrb[0].mxu0
        %v1929 = vadd.f32 0.0, %v1928
        %v1930 = vpop.f32.mrb[0].mxu0
        %v1931 = vadd.f32 0.0, %v1930
        %v1932 = vpop.f32.mrb[0].mxu0
        %v1933 = vadd.f32 0.0, %v1932
        %v1934 = vpop.f32.mrb[0].mxu0
        %v1935 = vadd.f32 0.0, %v1934
        %1936 = vmatprep.mubr.bf16.mxu0 %v1049
        %1937 = vmatmul.mubr.bf16.gmra.mrb[0].mxu0 %v1048
        %v1938 = vpop.f32.mrb[0].mxu0
        %v1939 = vadd.f32 0.0, %v1938
        %v1940 = vpop.f32.mrb[0].mxu0
        %v1941 = vadd.f32 0.0, %v1940
        %v1942 = vpop.f32.mrb[0].mxu0
        %v1943 = vadd.f32 0.0, %v1942
        %v1944 = vpop.f32.mrb[0].mxu0
        %v1945 = vadd.f32 0.0, %v1944
        %1946 = vmatprep.mubr.bf16.mxu0 %v1051
        %1947 = vmatmul.mubr.bf16.gmra.mrb[0].mxu0 %v1050
        %v1948 = vpop.f32.mrb[0].mxu0
        %v1949 = vadd.f32 0.0, %v1948
        %v1950 = vpop.f32.mrb[0].mxu0
        %v1951 = vadd.f32 0.0, %v1950
        %v1952 = vpop.f32.mrb[0].mxu0
        %v1953 = vadd.f32 0.0, %v1952
        %v1954 = vpop.f32.mrb[0].mxu0
        %v1955 = vadd.f32 0.0, %v1954
        %1956 = vmatprep.mubr.bf16.mxu0 %v1053
        %1957 = vmatmul.mubr.bf16.gmra.mrb[0].mxu0 %v1052
        %v1958 = vpop.f32.mrb[0].mxu0
        %v1959 = vadd.f32 0.0, %v1958
        %v1960 = vpop.f32.mrb[0].mxu0
        %v1961 = vadd.f32 0.0, %v1960
        %v1962 = vpop.f32.mrb[0].mxu0
        %v1963 = vadd.f32 0.0, %v1962
        %v1964 = vpop.f32.mrb[0].mxu0
        %v1965 = vadd.f32 0.0, %v1964
        %1966 = vmatprep.mubr.bf16.mxu0 %v1055
        %1967 = vmatmul.mubr.bf16.gmra.mrb[0].mxu0 %v1054
        %v1968 = vpop.f32.mrb[0].mxu0
        %v1969 = vadd.f32 0.0, %v1968
        %v1970 = vpop.f32.mrb[0].mxu0
        %v1971 = vadd.f32 0.0, %v1970
        %v1972 = vpop.f32.mrb[0].mxu0
        %v1973 = vadd.f32 0.0, %v1972
        %v1974 = vpop.f32.mrb[0].mxu0
        %v1975 = vadd.f32 0.0, %v1974
        %1976 = vmatprep.mubr.bf16.mxu0 %v1057
        %1977 = vmatmul.mubr.bf16.gmra.mrb[0].mxu0 %v1056
        %v1978 = vpop.f32.mrb[0].mxu0
        %v1979 = vadd.f32 0.0, %v1978
        %v1980 = vpop.f32.mrb[0].mxu0
        %v1981 = vadd.f32 0.0, %v1980
        %v1982 = vpop.f32.mrb[0].mxu0
        %v1983 = vadd.f32 0.0, %v1982
        %v1984 = vpop.f32.mrb[0].mxu0
        %v1985 = vadd.f32 0.0, %v1984
        %1986 = vmatprep.mubr.bf16.mxu0 %v1059
        %1987 = vmatmul.mubr.bf16.gmra.mrb[0].mxu0 %v1058
        %v1988 = vpop.f32.mrb[0].mxu0
        %v1989 = vadd.f32 0.0, %v1988
        %v1990 = vpop.f32.mrb[0].mxu0
        %v1991 = vadd.f32 0.0, %v1990
        %v1992 = vpop.f32.mrb[0].mxu0
        %v1993 = vadd.f32 0.0, %v1992
        %v1994 = vpop.f32.mrb[0].mxu0
        %v1995 = vadd.f32 0.0, %v1994
        %1996 = vmatprep.mubr.bf16.mxu0 %v1061
        %1997 = vmatmul.mubr.bf16.gmra.mrb[0].mxu0 %v1060
        %v1998 = vpop.f32.mrb[0].mxu0
        %v1999 = vadd.f32 0.0, %v1998
        %v2000 = vpop.f32.mrb[0].mxu0
        %v2001 = vadd.f32 0.0, %v2000
        %v2002 = vpop.f32.mrb[0].mxu0
        %v2003 = vadd.f32 0.0, %v2002
        %v2004 = vpop.f32.mrb[0].mxu0
        %v2005 = vadd.f32 0.0, %v2004
        %2006 = vmatprep.mubr.bf16.mxu0 %v1063
        %2007 = vmatmul.mubr.bf16.gmra.mrb[0].mxu0 %v1062
        %v2008 = vpop.f32.mrb[0].mxu0
        %v2009 = vadd.f32 0.0, %v2008
        %v2010 = vpop.f32.mrb[0].mxu0
        %v2011 = vadd.f32 0.0, %v2010
        %v2012 = vpop.f32.mrb[0].mxu0
        %v2013 = vadd.f32 0.0, %v2012
        %v2014 = vpop.f32.mrb[0].mxu0
        %v2015 = vadd.f32 0.0, %v2014
        %2016 = vmatprep.mubr.bf16.mxu0 %v1065
        %2017 = vmatmul.mubr.bf16.gmra.mrb[0].mxu0 %v1064
        %v2018 = vpop.f32.mrb[0].mxu0
        %v2019 = vadd.f32 0.0, %v2018
        %v2020 = vpop.f32.mrb[0].mxu0
        %v2021 = vadd.f32 0.0, %v2020
        %v2022 = vpop.f32.mrb[0].mxu0
        %v2023 = vadd.f32 0.0, %v2022
        %v2024 = vpop.f32.mrb[0].mxu0
        %v2025 = vadd.f32 0.0, %v2024
        %2026 = vdwg.mxu0
        %v2027 = vpack.c.bf16 %v1393, %v1389
        %v2028 = vpack.c.bf16 %v1395, %v1391
        %v2029 = vpack.c.bf16 %v1403, %v1399
        %v2030 = vpack.c.bf16 %v1405, %v1401
        %v2031 = vpack.c.bf16 %v1413, %v1409
        %v2032 = vpack.c.bf16 %v1415, %v1411
        %v2033 = vpack.c.bf16 %v1423, %v1419
        %v2034 = vpack.c.bf16 %v1425, %v1421
        %v2035 = vpack.c.bf16 %v1433, %v1429
        %v2036 = vpack.c.bf16 %v1435, %v1431
        %v2037 = vpack.c.bf16 %v1443, %v1439
        %v2038 = vpack.c.bf16 %v1445, %v1441
        %v2039 = vpack.c.bf16 %v1453, %v1449
        %v2040 = vpack.c.bf16 %v1455, %v1451
        %v2041 = vpack.c.bf16 %v1463, %v1459
        %v2042 = vpack.c.bf16 %v1465, %v1461
        %v2043 = vpack.c.bf16 %v1473, %v1469
        %v2044 = vpack.c.bf16 %v1475, %v1471
        %v2045 = vpack.c.bf16 %v1483, %v1479
        %v2046 = vpack.c.bf16 %v1485, %v1481
        %v2047 = vpack.c.bf16 %v1493, %v1489
        %v2048 = vpack.c.bf16 %v1495, %v1491
        %v2049 = vpack.c.bf16 %v1503, %v1499
        %v2050 = vpack.c.bf16 %v1505, %v1501
        %v2051 = vpack.c.bf16 %v1513, %v1509
        %v2052 = vpack.c.bf16 %v1515, %v1511
        %v2053 = vpack.c.bf16 %v1523, %v1519
        %v2054 = vpack.c.bf16 %v1525, %v1521
        %v2055 = vpack.c.bf16 %v1533, %v1529
        %v2056 = vpack.c.bf16 %v1535, %v1531
        %v2057 = vpack.c.bf16 %v1543, %v1539
        %v2058 = vpack.c.bf16 %v1545, %v1541
        %v2059 = vpack.c.bf16 %v1553, %v1549
        %v2060 = vpack.c.bf16 %v1555, %v1551
        %v2061 = vpack.c.bf16 %v1563, %v1559
        %v2062 = vpack.c.bf16 %v1565, %v1561
        %v2063 = vpack.c.bf16 %v1573, %v1569
        %v2064 = vpack.c.bf16 %v1575, %v1571
        %v2065 = vpack.c.bf16 %v1583, %v1579
        %v2066 = vpack.c.bf16 %v1585, %v1581
        %v2067 = vpack.c.bf16 %v1593, %v1589
        %v2068 = vpack.c.bf16 %v1595, %v1591
        %v2069 = vpack.c.bf16 %v1603, %v1599
        %v2070 = vpack.c.bf16 %v1605, %v1601
        %v2071 = vpack.c.bf16 %v1613, %v1609
        %v2072 = vpack.c.bf16 %v1615, %v1611
        %v2073 = vpack.c.bf16 %v1623, %v1619
        %v2074 = vpack.c.bf16 %v1625, %v1621
        %v2075 = vpack.c.bf16 %v1633, %v1629
        %v2076 = vpack.c.bf16 %v1635, %v1631
        %v2077 = vpack.c.bf16 %v1643, %v1639
        %v2078 = vpack.c.bf16 %v1645, %v1641
        %v2079 = vpack.c.bf16 %v1653, %v1649
        %v2080 = vpack.c.bf16 %v1655, %v1651
        %v2081 = vpack.c.bf16 %v1663, %v1659
        %v2082 = vpack.c.bf16 %v1665, %v1661
        %v2083 = vpack.c.bf16 %v1673, %v1669
        %v2084 = vpack.c.bf16 %v1675, %v1671
        %v2085 = vpack.c.bf16 %v1683, %v1679
        %v2086 = vpack.c.bf16 %v1685, %v1681
        %v2087 = vpack.c.bf16 %v1693, %v1689
        %v2088 = vpack.c.bf16 %v1695, %v1691
        %v2089 = vpack.c.bf16 %v1703, %v1699
        %v2090 = vpack.c.bf16 %v1705, %v1701
        %v2091 = vpack.c.bf16 %v1713, %v1709
        %v2092 = vpack.c.bf16 %v1715, %v1711
        %v2093 = vpack.c.bf16 %v1723, %v1719
        %v2094 = vpack.c.bf16 %v1725, %v1721
        %v2095 = vpack.c.bf16 %v1733, %v1729
        %v2096 = vpack.c.bf16 %v1735, %v1731
        %v2097 = vpack.c.bf16 %v1743, %v1739
        %v2098 = vpack.c.bf16 %v1745, %v1741
        %v2099 = vpack.c.bf16 %v1753, %v1749
        %v2100 = vpack.c.bf16 %v1755, %v1751
        %v2101 = vpack.c.bf16 %v1763, %v1759
        %v2102 = vpack.c.bf16 %v1765, %v1761
        %v2103 = vpack.c.bf16 %v1773, %v1769
        %v2104 = vpack.c.bf16 %v1775, %v1771
        %v2105 = vpack.c.bf16 %v1783, %v1779
        %v2106 = vpack.c.bf16 %v1785, %v1781
        %v2107 = vpack.c.bf16 %v1793, %v1789
        %v2108 = vpack.c.bf16 %v1795, %v1791
        %v2109 = vpack.c.bf16 %v1803, %v1799
        %v2110 = vpack.c.bf16 %v1805, %v1801
        %v2111 = vpack.c.bf16 %v1813, %v1809
        %v2112 = vpack.c.bf16 %v1815, %v1811
        %v2113 = vpack.c.bf16 %v1823, %v1819
        %v2114 = vpack.c.bf16 %v1825, %v1821
        %v2115 = vpack.c.bf16 %v1833, %v1829
        %v2116 = vpack.c.bf16 %v1835, %v1831
        %v2117 = vpack.c.bf16 %v1843, %v1839
        %v2118 = vpack.c.bf16 %v1845, %v1841
        %v2119 = vpack.c.bf16 %v1853, %v1849
        %v2120 = vpack.c.bf16 %v1855, %v1851
        %v2121 = vpack.c.bf16 %v1863, %v1859
        %v2122 = vpack.c.bf16 %v1865, %v1861
        %v2123 = vpack.c.bf16 %v1873, %v1869
        %v2124 = vpack.c.bf16 %v1875, %v1871
        %v2125 = vpack.c.bf16 %v1883, %v1879
        %v2126 = vpack.c.bf16 %v1885, %v1881
        %v2127 = vpack.c.bf16 %v1893, %v1889
        %v2128 = vpack.c.bf16 %v1895, %v1891
        %v2129 = vpack.c.bf16 %v1903, %v1899
        %v2130 = vpack.c.bf16 %v1905, %v1901
        %v2131 = vpack.c.bf16 %v1913, %v1909
        %v2132 = vpack.c.bf16 %v1915, %v1911
        %v2133 = vpack.c.bf16 %v1923, %v1919
        %v2134 = vpack.c.bf16 %v1925, %v1921
        %v2135 = vpack.c.bf16 %v1933, %v1929
        %v2136 = vpack.c.bf16 %v1935, %v1931
        %v2137 = vpack.c.bf16 %v1943, %v1939
        %v2138 = vpack.c.bf16 %v1945, %v1941
        %v2139 = vpack.c.bf16 %v1953, %v1949
        %v2140 = vpack.c.bf16 %v1955, %v1951
        %v2141 = vpack.c.bf16 %v1963, %v1959
        %v2142 = vpack.c.bf16 %v1965, %v1961
        %v2143 = vpack.c.bf16 %v1973, %v1969
        %v2144 = vpack.c.bf16 %v1975, %v1971
        %v2145 = vpack.c.bf16 %v1983, %v1979
        %v2146 = vpack.c.bf16 %v1985, %v1981
        %v2147 = vpack.c.bf16 %v1993, %v1989
        %v2148 = vpack.c.bf16 %v1995, %v1991
        %v2149 = vpack.c.bf16 %v2003, %v1999
        %v2150 = vpack.c.bf16 %v2005, %v2001
        %v2151 = vpack.c.bf16 %v2013, %v2009
        %v2152 = vpack.c.bf16 %v2015, %v2011
        %v2153 = vpack.c.bf16 %v2023, %v2019
        %v2154 = vpack.c.bf16 %v2025, %v2021
        %v2155 = vld [vmem:[%s2] sm:$0xf]
        %v2156 = vld [vmem:[%s2 + $0x4] sm:$0xf]
        %v2157 = vld [vmem:[%s2 + $0x8] sm:$0xf]
        %v2158 = vld [vmem:[%s2 + $0xc] sm:$0xf]
        %v2159 = vld [vmem:[%s2 + $0x10] sm:$0xf]
        %v2160 = vld [vmem:[%s2 + $0x14] sm:$0xf]
        %v2161 = vld [vmem:[%s2 + $0x18] sm:$0xf]
        %v2162 = vld [vmem:[%s2 + $0x1c] sm:$0xf]
        %v2163 = vld [vmem:[%s2 + $0x20] sm:$0xf]
        %v2164 = vld [vmem:[%s2 + $0x24] sm:$0xf]
        %v2165 = vld [vmem:[%s2 + $0x28] sm:$0xf]
        %v2166 = vld [vmem:[%s2 + $0x2c] sm:$0xf]
        %v2167 = vld [vmem:[%s2 + $0x30] sm:$0xf]
        %v2168 = vld [vmem:[%s2 + $0x34] sm:$0xf]
        %v2169 = vld [vmem:[%s2 + $0x38] sm:$0xf]
        %v2170 = vld [vmem:[%s2 + $0x3c] sm:$0xf]
        %v2171 = vld [vmem:[%s2 + $0x40] sm:$0xf]
        %v2172 = vld [vmem:[%s2 + $0x44] sm:$0xf]
        %v2173 = vld [vmem:[%s2 + $0x48] sm:$0xf]
        %v2174 = vld [vmem:[%s2 + $0x4c] sm:$0xf]
        %v2175 = vld [vmem:[%s2 + $0x50] sm:$0xf]
        %v2176 = vld [vmem:[%s2 + $0x54] sm:$0xf]
        %v2177 = vld [vmem:[%s2 + $0x58] sm:$0xf]
        %v2178 = vld [vmem:[%s2 + $0x5c] sm:$0xf]
        %v2179 = vld [vmem:[%s2 + $0x60] sm:$0xf]
        %v2180 = vld [vmem:[%s2 + $0x64] sm:$0xf]
        %v2181 = vld [vmem:[%s2 + $0x68] sm:$0xf]
        %v2182 = vld [vmem:[%s2 + $0x6c] sm:$0xf]
        %v2183 = vld [vmem:[%s2 + $0x70] sm:$0xf]
        %v2184 = vld [vmem:[%s2 + $0x74] sm:$0xf]
        %v2185 = vld [vmem:[%s2 + $0x78] sm:$0xf]
        %v2186 = vld [vmem:[%s2 + $0x7c] sm:$0xf]
        %v2187 = vld [vmem:[%s2 + $0x80] sm:$0xf]
        %v2188 = vld [vmem:[%s2 + $0x84] sm:$0xf]
        %v2189 = vld [vmem:[%s2 + $0x88] sm:$0xf]
        %v2190 = vld [vmem:[%s2 + $0x8c] sm:$0xf]
        %v2191 = vld [vmem:[%s2 + $0x90] sm:$0xf]
        %v2192 = vld [vmem:[%s2 + $0x94] sm:$0xf]
        %v2193 = vld [vmem:[%s2 + $0x98] sm:$0xf]
        %v2194 = vld [vmem:[%s2 + $0x9c] sm:$0xf]
        %v2195 = vld [vmem:[%s2 + $0xa0] sm:$0xf]
        %v2196 = vld [vmem:[%s2 + $0xa4] sm:$0xf]
        %v2197 = vld [vmem:[%s2 + $0xa8] sm:$0xf]
        %v2198 = vld [vmem:[%s2 + $0xac] sm:$0xf]
        %v2199 = vld [vmem:[%s2 + $0xb0] sm:$0xf]
        %v2200 = vld [vmem:[%s2 + $0xb4] sm:$0xf]
        %v2201 = vld [vmem:[%s2 + $0xb8] sm:$0xf]
        %v2202 = vld [vmem:[%s2 + $0xbc] sm:$0xf]
        %v2203 = vld [vmem:[%s2 + $0xc0] sm:$0xf]
        %v2204 = vld [vmem:[%s2 + $0xc4] sm:$0xf]
        %v2205 = vld [vmem:[%s2 + $0xc8] sm:$0xf]
        %v2206 = vld [vmem:[%s2 + $0xcc] sm:$0xf]
        %v2207 = vld [vmem:[%s2 + $0xd0] sm:$0xf]
        %v2208 = vld [vmem:[%s2 + $0xd4] sm:$0xf]
        %v2209 = vld [vmem:[%s2 + $0xd8] sm:$0xf]
        %v2210 = vld [vmem:[%s2 + $0xdc] sm:$0xf]
        %v2211 = vld [vmem:[%s2 + $0xe0] sm:$0xf]
        %v2212 = vld [vmem:[%s2 + $0xe4] sm:$0xf]
        %v2213 = vld [vmem:[%s2 + $0xe8] sm:$0xf]
        %v2214 = vld [vmem:[%s2 + $0xec] sm:$0xf]
        %v2215 = vld [vmem:[%s2 + $0xf0] sm:$0xf]
        %v2216 = vld [vmem:[%s2 + $0xf4] sm:$0xf]
        %v2217 = vld [vmem:[%s2 + $0xf8] sm:$0xf]
        %v2218 = vld [vmem:[%s2 + $0xfc] sm:$0xf]
        %v2219 = vld [vmem:[%s2 + $0x100] sm:$0xf]
        %v2220 = vld [vmem:[%s2 + $0x104] sm:$0xf]
        %v2221 = vld [vmem:[%s2 + $0x108] sm:$0xf]
        %v2222 = vld [vmem:[%s2 + $0x10c] sm:$0xf]
        %v2223 = vld [vmem:[%s2 + $0x110] sm:$0xf]
        %v2224 = vld [vmem:[%s2 + $0x114] sm:$0xf]
        %v2225 = vld [vmem:[%s2 + $0x118] sm:$0xf]
        %v2226 = vld [vmem:[%s2 + $0x11c] sm:$0xf]
        %v2227 = vld [vmem:[%s2 + $0x120] sm:$0xf]
        %v2228 = vld [vmem:[%s2 + $0x124] sm:$0xf]
        %v2229 = vld [vmem:[%s2 + $0x128] sm:$0xf]
        %v2230 = vld [vmem:[%s2 + $0x12c] sm:$0xf]
        %v2231 = vld [vmem:[%s2 + $0x130] sm:$0xf]
        %v2232 = vld [vmem:[%s2 + $0x134] sm:$0xf]
        %v2233 = vld [vmem:[%s2 + $0x138] sm:$0xf]
        %v2234 = vld [vmem:[%s2 + $0x13c] sm:$0xf]
        %v2235 = vld [vmem:[%s2 + $0x140] sm:$0xf]
        %v2236 = vld [vmem:[%s2 + $0x144] sm:$0xf]
        %v2237 = vld [vmem:[%s2 + $0x148] sm:$0xf]
        %v2238 = vld [vmem:[%s2 + $0x14c] sm:$0xf]
        %v2239 = vld [vmem:[%s2 + $0x150] sm:$0xf]
        %v2240 = vld [vmem:[%s2 + $0x154] sm:$0xf]
        %v2241 = vld [vmem:[%s2 + $0x158] sm:$0xf]
        %v2242 = vld [vmem:[%s2 + $0x15c] sm:$0xf]
        %v2243 = vld [vmem:[%s2 + $0x160] sm:$0xf]
        %v2244 = vld [vmem:[%s2 + $0x164] sm:$0xf]
        %v2245 = vld [vmem:[%s2 + $0x168] sm:$0xf]
        %v2246 = vld [vmem:[%s2 + $0x16c] sm:$0xf]
        %v2247 = vld [vmem:[%s2 + $0x170] sm:$0xf]
        %v2248 = vld [vmem:[%s2 + $0x174] sm:$0xf]
        %v2249 = vld [vmem:[%s2 + $0x178] sm:$0xf]
        %v2250 = vld [vmem:[%s2 + $0x17c] sm:$0xf]
        %v2251 = vld [vmem:[%s2 + $0x180] sm:$0xf]
        %v2252 = vld [vmem:[%s2 + $0x184] sm:$0xf]
        %v2253 = vld [vmem:[%s2 + $0x188] sm:$0xf]
        %v2254 = vld [vmem:[%s2 + $0x18c] sm:$0xf]
        %v2255 = vld [vmem:[%s2 + $0x190] sm:$0xf]
        %v2256 = vld [vmem:[%s2 + $0x194] sm:$0xf]
        %v2257 = vld [vmem:[%s2 + $0x198] sm:$0xf]
        %v2258 = vld [vmem:[%s2 + $0x19c] sm:$0xf]
        %v2259 = vld [vmem:[%s2 + $0x1a0] sm:$0xf]
        %v2260 = vld [vmem:[%s2 + $0x1a4] sm:$0xf]
        %v2261 = vld [vmem:[%s2 + $0x1a8] sm:$0xf]
        %v2262 = vld [vmem:[%s2 + $0x1ac] sm:$0xf]
        %v2263 = vld [vmem:[%s2 + $0x1b0] sm:$0xf]
        %v2264 = vld [vmem:[%s2 + $0x1b4] sm:$0xf]
        %v2265 = vld [vmem:[%s2 + $0x1b8] sm:$0xf]
        %v2266 = vld [vmem:[%s2 + $0x1bc] sm:$0xf]
        %v2267 = vld [vmem:[%s2 + $0x1c0] sm:$0xf]
        %v2268 = vld [vmem:[%s2 + $0x1c4] sm:$0xf]
        %v2269 = vld [vmem:[%s2 + $0x1c8] sm:$0xf]
        %v2270 = vld [vmem:[%s2 + $0x1cc] sm:$0xf]
        %v2271 = vld [vmem:[%s2 + $0x1d0] sm:$0xf]
        %v2272 = vld [vmem:[%s2 + $0x1d4] sm:$0xf]
        %v2273 = vld [vmem:[%s2 + $0x1d8] sm:$0xf]
        %v2274 = vld [vmem:[%s2 + $0x1dc] sm:$0xf]
        %v2275 = vld [vmem:[%s2 + $0x1e0] sm:$0xf]
        %v2276 = vld [vmem:[%s2 + $0x1e4] sm:$0xf]
        %v2277 = vld [vmem:[%s2 + $0x1e8] sm:$0xf]
        %v2278 = vld [vmem:[%s2 + $0x1ec] sm:$0xf]
        %v2279 = vld [vmem:[%s2 + $0x1f0] sm:$0xf]
        %v2280 = vld [vmem:[%s2 + $0x1f4] sm:$0xf]
        %v2281 = vld [vmem:[%s2 + $0x1f8] sm:$0xf]
        %v2282 = vld [vmem:[%s2 + $0x1fc] sm:$0xf]
        %2283 = vst [vmem:[#allocation2] sm:$0xff] %v2027
        %2284 = vst [vmem:[#allocation2 + $0x40] sm:$0xff] %v2029
        %2285 = vst [vmem:[#allocation2 + $0x80] sm:$0xff] %v2031
        %2286 = vst [vmem:[#allocation2 + $0xc0] sm:$0xff] %v2033
        %2287 = vst [vmem:[#allocation2 + $0x100] sm:$0xff] %v2035
        %2288 = vst [vmem:[#allocation2 + $0x140] sm:$0xff] %v2037
        %2289 = vst [vmem:[#allocation2 + $0x180] sm:$0xff] %v2039
        %2290 = vst [vmem:[#allocation2 + $0x1c0] sm:$0xff] %v2041
        %2291 = vst [vmem:[#allocation2 + $0x8] sm:$0xff] %v2043
        %2292 = vst [vmem:[#allocation2 + $0x48] sm:$0xff] %v2045
        %2293 = vst [vmem:[#allocation2 + $0x88] sm:$0xff] %v2047
        %2294 = vst [vmem:[#allocation2 + $0xc8] sm:$0xff] %v2049
        %2295 = vst [vmem:[#allocation2 + $0x108] sm:$0xff] %v2051
        %2296 = vst [vmem:[#allocation2 + $0x148] sm:$0xff] %v2053
        %2297 = vst [vmem:[#allocation2 + $0x188] sm:$0xff] %v2055
        %2298 = vst [vmem:[#allocation2 + $0x1c8] sm:$0xff] %v2057
        %2299 = vst [vmem:[#allocation2 + $0x10] sm:$0xff] %v2059
        %2300 = vst [vmem:[#allocation2 + $0x50] sm:$0xff] %v2061
        %2301 = vst [vmem:[#allocation2 + $0x90] sm:$0xff] %v2063
        %2302 = vst [vmem:[#allocation2 + $0xd0] sm:$0xff] %v2065
        %2303 = vst [vmem:[#allocation2 + $0x110] sm:$0xff] %v2067
        %2304 = vst [vmem:[#allocation2 + $0x150] sm:$0xff] %v2069
        %2305 = vst [vmem:[#allocation2 + $0x190] sm:$0xff] %v2071
        %2306 = vst [vmem:[#allocation2 + $0x1d0] sm:$0xff] %v2073
        %2307 = vst [vmem:[#allocation2 + $0x18] sm:$0xff] %v2075
        %2308 = vst [vmem:[#allocation2 + $0x58] sm:$0xff] %v2077
        %2309 = vst [vmem:[#allocation2 + $0x98] sm:$0xff] %v2079
        %2310 = vst [vmem:[#allocation2 + $0xd8] sm:$0xff] %v2081
        %2311 = vst [vmem:[#allocation2 + $0x118] sm:$0xff] %v2083
        %2312 = vst [vmem:[#allocation2 + $0x158] sm:$0xff] %v2085
        %2313 = vst [vmem:[#allocation2 + $0x198] sm:$0xff] %v2087
        %2314 = vst [vmem:[#allocation2 + $0x1d8] sm:$0xff] %v2089
        %2315 = vst [vmem:[#allocation2 + $0x20] sm:$0xff] %v2091
        %2316 = vst [vmem:[#allocation2 + $0x60] sm:$0xff] %v2093
        %2317 = vst [vmem:[#allocation2 + $0xa0] sm:$0xff] %v2095
        %2318 = vst [vmem:[#allocation2 + $0xe0] sm:$0xff] %v2097
        %2319 = vst [vmem:[#allocation2 + $0x120] sm:$0xff] %v2099
        %2320 = vst [vmem:[#allocation2 + $0x160] sm:$0xff] %v2101
        %2321 = vst [vmem:[#allocation2 + $0x1a0] sm:$0xff] %v2103
        %2322 = vst [vmem:[#allocation2 + $0x1e0] sm:$0xff] %v2105
        %2323 = vst [vmem:[#allocation2 + $0x28] sm:$0xff] %v2107
        %2324 = vst [vmem:[#allocation2 + $0x68] sm:$0xff] %v2109
        %2325 = vst [vmem:[#allocation2 + $0xa8] sm:$0xff] %v2111
        %2326 = vst [vmem:[#allocation2 + $0xe8] sm:$0xff] %v2113
        %2327 = vst [vmem:[#allocation2 + $0x128] sm:$0xff] %v2115
        %2328 = vst [vmem:[#allocation2 + $0x168] sm:$0xff] %v2117
        %2329 = vst [vmem:[#allocation2 + $0x1a8] sm:$0xff] %v2119
        %2330 = vst [vmem:[#allocation2 + $0x1e8] sm:$0xff] %v2121
        %2331 = vst [vmem:[#allocation2 + $0x30] sm:$0xff] %v2123
        %2332 = vst [vmem:[#allocation2 + $0x70] sm:$0xff] %v2125
        %2333 = vst [vmem:[#allocation2 + $0xb0] sm:$0xff] %v2127
        %2334 = vst [vmem:[#allocation2 + $0xf0] sm:$0xff] %v2129
        %2335 = vst [vmem:[#allocation2 + $0x130] sm:$0xff] %v2131
        %2336 = vst [vmem:[#allocation2 + $0x170] sm:$0xff] %v2133
        %2337 = vst [vmem:[#allocation2 + $0x1b0] sm:$0xff] %v2135
        %2338 = vst [vmem:[#allocation2 + $0x1f0] sm:$0xff] %v2137
        %2339 = vst [vmem:[#allocation2 + $0x38] sm:$0xff] %v2139
        %2340 = vst [vmem:[#allocation2 + $0x78] sm:$0xff] %v2141
        %2341 = vst [vmem:[#allocation2 + $0xb8] sm:$0xff] %v2143
        %2342 = vst [vmem:[#allocation2 + $0xf8] sm:$0xff] %v2145
        %2343 = vst [vmem:[#allocation2 + $0x138] sm:$0xff] %v2147
        %2344 = vst [vmem:[#allocation2 + $0x178] sm:$0xff] %v2149
        %2345 = vst [vmem:[#allocation2 + $0x1b8] sm:$0xff] %v2151
        %2346 = vst [vmem:[#allocation2 + $0x1f8] sm:$0xff] %v2153
        %v2347 = vld [vmem:[#allocation2] sm:$0xff]
        %v2348 = vld [vmem:[#allocation2 + $0x8] sm:$0xff]
        %v2349 = vld [vmem:[#allocation2 + $0x10] sm:$0xff]
        %v2350 = vld [vmem:[#allocation2 + $0x18] sm:$0xff]
        %v2351 = vld [vmem:[#allocation2 + $0x20] sm:$0xff]
        %v2352 = vld [vmem:[#allocation2 + $0x28] sm:$0xff]
        %v2353 = vld [vmem:[#allocation2 + $0x30] sm:$0xff]
        %v2354 = vld [vmem:[#allocation2 + $0x38] sm:$0xff]
        %v2355 = vld [vmem:[#allocation2 + $0x40] sm:$0xff]
        %v2356 = vld [vmem:[#allocation2 + $0x48] sm:$0xff]
        %v2357 = vld [vmem:[#allocation2 + $0x50] sm:$0xff]
        %v2358 = vld [vmem:[#allocation2 + $0x58] sm:$0xff]
        %v2359 = vld [vmem:[#allocation2 + $0x60] sm:$0xff]
        %v2360 = vld [vmem:[#allocation2 + $0x68] sm:$0xff]
        %v2361 = vld [vmem:[#allocation2 + $0x70] sm:$0xff]
        %v2362 = vld [vmem:[#allocation2 + $0x78] sm:$0xff]
        %v2363 = vld [vmem:[#allocation2 + $0x80] sm:$0xff]
        %v2364 = vld [vmem:[#allocation2 + $0x88] sm:$0xff]
        %v2365 = vld [vmem:[#allocation2 + $0x90] sm:$0xff]
        %v2366 = vld [vmem:[#allocation2 + $0x98] sm:$0xff]
        %v2367 = vld [vmem:[#allocation2 + $0xa0] sm:$0xff]
        %v2368 = vld [vmem:[#allocation2 + $0xa8] sm:$0xff]
        %v2369 = vld [vmem:[#allocation2 + $0xb0] sm:$0xff]
        %v2370 = vld [vmem:[#allocation2 + $0xb8] sm:$0xff]
        %v2371 = vld [vmem:[#allocation2 + $0xc0] sm:$0xff]
        %v2372 = vld [vmem:[#allocation2 + $0xc8] sm:$0xff]
        %v2373 = vld [vmem:[#allocation2 + $0xd0] sm:$0xff]
        %v2374 = vld [vmem:[#allocation2 + $0xd8] sm:$0xff]
        %v2375 = vld [vmem:[#allocation2 + $0xe0] sm:$0xff]
        %v2376 = vld [vmem:[#allocation2 + $0xe8] sm:$0xff]
        %v2377 = vld [vmem:[#allocation2 + $0xf0] sm:$0xff]
        %v2378 = vld [vmem:[#allocation2 + $0xf8] sm:$0xff]
        %v2379 = vld [vmem:[#allocation2 + $0x100] sm:$0xff]
        %v2380 = vld [vmem:[#allocation2 + $0x108] sm:$0xff]
        %v2381 = vld [vmem:[#allocation2 + $0x110] sm:$0xff]
        %v2382 = vld [vmem:[#allocation2 + $0x118] sm:$0xff]
        %v2383 = vld [vmem:[#allocation2 + $0x120] sm:$0xff]
        %v2384 = vld [vmem:[#allocation2 + $0x128] sm:$0xff]
        %v2385 = vld [vmem:[#allocation2 + $0x130] sm:$0xff]
        %v2386 = vld [vmem:[#allocation2 + $0x138] sm:$0xff]
        %v2387 = vld [vmem:[#allocation2 + $0x140] sm:$0xff]
        %v2388 = vld [vmem:[#allocation2 + $0x148] sm:$0xff]
        %v2389 = vld [vmem:[#allocation2 + $0x150] sm:$0xff]
        %v2390 = vld [vmem:[#allocation2 + $0x158] sm:$0xff]
        %v2391 = vld [vmem:[#allocation2 + $0x160] sm:$0xff]
        %v2392 = vld [vmem:[#allocation2 + $0x168] sm:$0xff]
        %v2393 = vld [vmem:[#allocation2 + $0x170] sm:$0xff]
        %v2394 = vld [vmem:[#allocation2 + $0x178] sm:$0xff]
        %v2395 = vld [vmem:[#allocation2 + $0x180] sm:$0xff]
        %v2396 = vld [vmem:[#allocation2 + $0x188] sm:$0xff]
        %v2397 = vld [vmem:[#allocation2 + $0x190] sm:$0xff]
        %v2398 = vld [vmem:[#allocation2 + $0x198] sm:$0xff]
        %v2399 = vld [vmem:[#allocation2 + $0x1a0] sm:$0xff]
        %v2400 = vld [vmem:[#allocation2 + $0x1a8] sm:$0xff]
        %v2401 = vld [vmem:[#allocation2 + $0x1b0] sm:$0xff]
        %v2402 = vld [vmem:[#allocation2 + $0x1b8] sm:$0xff]
        %v2403 = vld [vmem:[#allocation2 + $0x1c0] sm:$0xff]
        %v2404 = vld [vmem:[#allocation2 + $0x1c8] sm:$0xff]
        %v2405 = vld [vmem:[#allocation2 + $0x1d0] sm:$0xff]
        %v2406 = vld [vmem:[#allocation2 + $0x1d8] sm:$0xff]
        %v2407 = vld [vmem:[#allocation2 + $0x1e0] sm:$0xff]
        %v2408 = vld [vmem:[#allocation2 + $0x1e8] sm:$0xff]
        %v2409 = vld [vmem:[#allocation2 + $0x1f0] sm:$0xff]
        %v2410 = vld [vmem:[#allocation2 + $0x1f8] sm:$0xff]
        %v2539 = vunpack.c.l.b16 %v2155
        %v2540 = vunpack.c.l.b16 %v2156
        %v2541 = vunpack.c.l.b16 %v2157
        %v2542 = vunpack.c.l.b16 %v2158
        %v2543 = vunpack.c.l.b16 %v2159
        %v2544 = vunpack.c.l.b16 %v2160
        %v2545 = vunpack.c.l.b16 %v2161
        %v2546 = vunpack.c.l.b16 %v2162
        %v2547 = vunpack.c.l.b16 %v2163
        %v2548 = vunpack.c.l.b16 %v2164
        %v2549 = vunpack.c.l.b16 %v2165
        %v2550 = vunpack.c.l.b16 %v2166
        %v2551 = vunpack.c.l.b16 %v2167
        %v2552 = vunpack.c.l.b16 %v2168
        %v2553 = vunpack.c.l.b16 %v2169
        %v2554 = vunpack.c.l.b16 %v2170
        %v2555 = vunpack.c.l.b16 %v2171
        %v2556 = vunpack.c.l.b16 %v2172
        %v2557 = vunpack.c.l.b16 %v2173
        %v2558 = vunpack.c.l.b16 %v2174
        %v2559 = vunpack.c.l.b16 %v2175
        %v2560 = vunpack.c.l.b16 %v2176
        %v2561 = vunpack.c.l.b16 %v2177
        %v2562 = vunpack.c.l.b16 %v2178
        %v2563 = vunpack.c.l.b16 %v2179
        %v2564 = vunpack.c.l.b16 %v2180
        %v2565 = vunpack.c.l.b16 %v2181
        %v2566 = vunpack.c.l.b16 %v2182
        %v2567 = vunpack.c.l.b16 %v2183
        %v2568 = vunpack.c.l.b16 %v2184
        %v2569 = vunpack.c.l.b16 %v2185
        %v2570 = vunpack.c.l.b16 %v2186
        %v2571 = vunpack.c.l.b16 %v2187
        %v2572 = vunpack.c.l.b16 %v2188
        %v2573 = vunpack.c.l.b16 %v2189
        %v2574 = vunpack.c.l.b16 %v2190
        %v2575 = vunpack.c.l.b16 %v2191
        %v2576 = vunpack.c.l.b16 %v2192
        %v2577 = vunpack.c.l.b16 %v2193
        %v2578 = vunpack.c.l.b16 %v2194
        %v2579 = vunpack.c.l.b16 %v2195
        %v2580 = vunpack.c.l.b16 %v2196
        %v2581 = vunpack.c.l.b16 %v2197
        %v2582 = vunpack.c.l.b16 %v2198
        %v2583 = vunpack.c.l.b16 %v2199
        %v2584 = vunpack.c.l.b16 %v2200
        %v2585 = vunpack.c.l.b16 %v2201
        %v2586 = vunpack.c.l.b16 %v2202
        %v2587 = vunpack.c.l.b16 %v2203
        %v2588 = vunpack.c.l.b16 %v2204
        %v2589 = vunpack.c.l.b16 %v2205
        %v2590 = vunpack.c.l.b16 %v2206
        %v2591 = vunpack.c.l.b16 %v2207
        %v2592 = vunpack.c.l.b16 %v2208
        %v2593 = vunpack.c.l.b16 %v2209
        %v2594 = vunpack.c.l.b16 %v2210
        %v2595 = vunpack.c.l.b16 %v2211
        %v2596 = vunpack.c.l.b16 %v2212
        %v2597 = vunpack.c.l.b16 %v2213
        %v2598 = vunpack.c.l.b16 %v2214
        %v2599 = vunpack.c.l.b16 %v2215
        %v2600 = vunpack.c.l.b16 %v2216
        %v2601 = vunpack.c.l.b16 %v2217
        %v2602 = vunpack.c.l.b16 %v2218
        %v2603 = vunpack.c.l.b16 %v2219
        %v2604 = vunpack.c.l.b16 %v2220
        %v2605 = vunpack.c.l.b16 %v2221
        %v2606 = vunpack.c.l.b16 %v2222
        %v2607 = vunpack.c.l.b16 %v2223
        %v2608 = vunpack.c.l.b16 %v2224
        %v2609 = vunpack.c.l.b16 %v2225
        %v2610 = vunpack.c.l.b16 %v2226
        %v2611 = vunpack.c.l.b16 %v2227
        %v2612 = vunpack.c.l.b16 %v2228
        %v2613 = vunpack.c.l.b16 %v2229
        %v2614 = vunpack.c.l.b16 %v2230
        %v2615 = vunpack.c.l.b16 %v2231
        %v2616 = vunpack.c.l.b16 %v2232
        %v2617 = vunpack.c.l.b16 %v2233
        %v2618 = vunpack.c.l.b16 %v2234
        %v2619 = vunpack.c.l.b16 %v2235
        %v2620 = vunpack.c.l.b16 %v2236
        %v2621 = vunpack.c.l.b16 %v2237
        %v2622 = vunpack.c.l.b16 %v2238
        %v2623 = vunpack.c.l.b16 %v2239
        %v2624 = vunpack.c.l.b16 %v2240
        %v2625 = vunpack.c.l.b16 %v2241
        %v2626 = vunpack.c.l.b16 %v2242
        %v2627 = vunpack.c.l.b16 %v2243
        %v2628 = vunpack.c.l.b16 %v2244
        %v2629 = vunpack.c.l.b16 %v2245
        %v2630 = vunpack.c.l.b16 %v2246
        %v2631 = vunpack.c.l.b16 %v2247
        %v2632 = vunpack.c.l.b16 %v2248
        %v2633 = vunpack.c.l.b16 %v2249
        %v2634 = vunpack.c.l.b16 %v2250
        %v2635 = vunpack.c.l.b16 %v2251
        %v2636 = vunpack.c.l.b16 %v2252
        %v2637 = vunpack.c.l.b16 %v2253
        %v2638 = vunpack.c.l.b16 %v2254
        %v2639 = vunpack.c.l.b16 %v2255
        %v2640 = vunpack.c.l.b16 %v2256
        %v2641 = vunpack.c.l.b16 %v2257
        %v2642 = vunpack.c.l.b16 %v2258
        %v2643 = vunpack.c.l.b16 %v2259
        %v2644 = vunpack.c.l.b16 %v2260
        %v2645 = vunpack.c.l.b16 %v2261
        %v2646 = vunpack.c.l.b16 %v2262
        %v2647 = vunpack.c.l.b16 %v2263
        %v2648 = vunpack.c.l.b16 %v2264
        %v2649 = vunpack.c.l.b16 %v2265
        %v2650 = vunpack.c.l.b16 %v2266
        %v2651 = vunpack.c.l.b16 %v2267
        %v2652 = vunpack.c.l.b16 %v2268
        %v2653 = vunpack.c.l.b16 %v2269
        %v2654 = vunpack.c.l.b16 %v2270
        %v2655 = vunpack.c.l.b16 %v2271
        %v2656 = vunpack.c.l.b16 %v2272
        %v2657 = vunpack.c.l.b16 %v2273
        %v2658 = vunpack.c.l.b16 %v2274
        %v2659 = vunpack.c.l.b16 %v2275
        %v2660 = vunpack.c.l.b16 %v2276
        %v2661 = vunpack.c.l.b16 %v2277
        %v2662 = vunpack.c.l.b16 %v2278
        %v2663 = vunpack.c.l.b16 %v2279
        %v2664 = vunpack.c.l.b16 %v2280
        %v2665 = vunpack.c.l.b16 %v2281
        %v2666 = vunpack.c.l.b16 %v2282
        %v2667 = vpack.c.b16 %v2540, %v2539
        %v2668 = vpack.c.b16 %v2542, %v2541
        %v2669 = vpack.c.b16 %v2544, %v2543
        %v2670 = vpack.c.b16 %v2546, %v2545
        %v2671 = vpack.c.b16 %v2548, %v2547
        %v2672 = vpack.c.b16 %v2550, %v2549
        %v2673 = vpack.c.b16 %v2552, %v2551
        %v2674 = vpack.c.b16 %v2554, %v2553
        %v2675 = vpack.c.b16 %v2556, %v2555
        %v2676 = vpack.c.b16 %v2558, %v2557
        %v2677 = vpack.c.b16 %v2560, %v2559
        %v2678 = vpack.c.b16 %v2562, %v2561
        %v2679 = vpack.c.b16 %v2564, %v2563
        %v2680 = vpack.c.b16 %v2566, %v2565
        %v2681 = vpack.c.b16 %v2568, %v2567
        %v2682 = vpack.c.b16 %v2570, %v2569
        %v2683 = vpack.c.b16 %v2572, %v2571
        %v2684 = vpack.c.b16 %v2574, %v2573
        %v2685 = vpack.c.b16 %v2576, %v2575
        %v2686 = vpack.c.b16 %v2578, %v2577
        %v2687 = vpack.c.b16 %v2580, %v2579
        %v2688 = vpack.c.b16 %v2582, %v2581
        %v2689 = vpack.c.b16 %v2584, %v2583
        %v2690 = vpack.c.b16 %v2586, %v2585
        %v2691 = vpack.c.b16 %v2588, %v2587
        %v2692 = vpack.c.b16 %v2590, %v2589
        %v2693 = vpack.c.b16 %v2592, %v2591
        %v2694 = vpack.c.b16 %v2594, %v2593
        %v2695 = vpack.c.b16 %v2596, %v2595
        %v2696 = vpack.c.b16 %v2598, %v2597
        %v2697 = vpack.c.b16 %v2600, %v2599
        %v2698 = vpack.c.b16 %v2602, %v2601
        %v2699 = vpack.c.b16 %v2604, %v2603
        %v2700 = vpack.c.b16 %v2606, %v2605
        %v2701 = vpack.c.b16 %v2608, %v2607
        %v2702 = vpack.c.b16 %v2610, %v2609
        %v2703 = vpack.c.b16 %v2612, %v2611
        %v2704 = vpack.c.b16 %v2614, %v2613
        %v2705 = vpack.c.b16 %v2616, %v2615
        %v2706 = vpack.c.b16 %v2618, %v2617
        %v2707 = vpack.c.b16 %v2620, %v2619
        %v2708 = vpack.c.b16 %v2622, %v2621
        %v2709 = vpack.c.b16 %v2624, %v2623
        %v2710 = vpack.c.b16 %v2626, %v2625
        %v2711 = vpack.c.b16 %v2628, %v2627
        %v2712 = vpack.c.b16 %v2630, %v2629
        %v2713 = vpack.c.b16 %v2632, %v2631
        %v2714 = vpack.c.b16 %v2634, %v2633
        %v2715 = vpack.c.b16 %v2636, %v2635
        %v2716 = vpack.c.b16 %v2638, %v2637
        %v2717 = vpack.c.b16 %v2640, %v2639
        %v2718 = vpack.c.b16 %v2642, %v2641
        %v2719 = vpack.c.b16 %v2644, %v2643
        %v2720 = vpack.c.b16 %v2646, %v2645
        %v2721 = vpack.c.b16 %v2648, %v2647
        %v2722 = vpack.c.b16 %v2650, %v2649
        %v2723 = vpack.c.b16 %v2652, %v2651
        %v2724 = vpack.c.b16 %v2654, %v2653
        %v2725 = vpack.c.b16 %v2656, %v2655
        %v2726 = vpack.c.b16 %v2658, %v2657
        %v2727 = vpack.c.b16 %v2660, %v2659
        %v2728 = vpack.c.b16 %v2662, %v2661
        %v2729 = vpack.c.b16 %v2664, %v2663
        %v2730 = vpack.c.b16 %v2666, %v2665
        %2795 = vmatprep.subr.bf16.mxu0 0
        %2796 = vmatpush1.bf16.msra.mxu0 %v2667
        %2797 = vmatprep.subr.bf16.mxu0 0
        %2798 = vmatpush1.bf16.msra.mxu0 %v2668
        %2799 = vmatprep.subr.bf16.mxu0 0
        %2800 = vmatpush1.bf16.msra.mxu0 %v2669
        %2801 = vmatprep.subr.bf16.mxu0 0
        %2802 = vmatpush1.bf16.msra.mxu0 %v2670
        %2803 = vmatprep.subr.bf16.mxu0 0
        %2804 = vmatpush1.bf16.msra.mxu0 %v2671
        %2805 = vmatprep.subr.bf16.mxu0 0
        %2806 = vmatpush1.bf16.msra.mxu0 %v2672
        %2807 = vmatprep.subr.bf16.mxu0 0
        %2808 = vmatpush1.bf16.msra.mxu0 %v2673
        %2809 = vmatprep.subr.bf16.mxu0 0
        %2810 = vmatpush1.bf16.msra.mxu0 %v2674
        %2811 = vmatprep.subr.bf16.mxu0 0
        %2812 = vmatpush1.bf16.msra.mxu0 %v2675
        %2813 = vmatprep.subr.bf16.mxu0 0
        %2814 = vmatpush1.bf16.msra.mxu0 %v2676
        %2815 = vmatprep.subr.bf16.mxu0 0
        %2816 = vmatpush1.bf16.msra.mxu0 %v2677
        %2817 = vmatprep.subr.bf16.mxu0 0
        %2818 = vmatpush1.bf16.msra.mxu0 %v2678
        %2819 = vmatprep.subr.bf16.mxu0 0
        %2820 = vmatpush1.bf16.msra.mxu0 %v2679
        %2821 = vmatprep.subr.bf16.mxu0 0
        %2822 = vmatpush1.bf16.msra.mxu0 %v2680
        %2823 = vmatprep.subr.bf16.mxu0 0
        %2824 = vmatpush1.bf16.msra.mxu0 %v2681
        %2825 = vmatprep.subr.bf16.mxu0 0
        %2826 = vmatpush1.bf16.msra.mxu0 %v2682
        %2827 = vmatprep.mubr.bf16.mxu0 %v2348
        %2828 = vmatmul.mubr.bf16.gmra.mrb[0].mxu0 %v2347
        %v2829 = vpop.f32.mrb[0].mxu0
        %v2830 = vadd.f32 0.0, %v2829
        %v2831 = vpop.f32.mrb[0].mxu0
        %v2832 = vpop.f32.mrb[0].mxu0
        %v2833 = vadd.f32 0.0, %v2832
        %v2834 = vpop.f32.mrb[0].mxu0
        %2835 = vmatprep.mubr.bf16.mxu0 %v2356
        %2836 = vmatmul.mubr.bf16.gmra.mrb[0].mxu0 %v2355
        %v2837 = vpop.f32.mrb[0].mxu0
        %v2838 = vadd.f32 0.0, %v2837
        %v2839 = vpop.f32.mrb[0].mxu0
        %v2840 = vpop.f32.mrb[0].mxu0
        %v2841 = vadd.f32 0.0, %v2840
        %v2842 = vpop.f32.mrb[0].mxu0
        %2843 = vmatprep.mubr.bf16.mxu0 %v2364
        %2844 = vmatmul.mubr.bf16.gmra.mrb[0].mxu0 %v2363
        %v2845 = vpop.f32.mrb[0].mxu0
        %v2846 = vadd.f32 0.0, %v2845
        %v2847 = vpop.f32.mrb[0].mxu0
        %v2848 = vpop.f32.mrb[0].mxu0
        %v2849 = vadd.f32 0.0, %v2848
        %v2850 = vpop.f32.mrb[0].mxu0
        %2851 = vmatprep.mubr.bf16.mxu0 %v2372
        %2852 = vmatmul.mubr.bf16.gmra.mrb[0].mxu0 %v2371
        %v2853 = vpop.f32.mrb[0].mxu0
        %v2854 = vadd.f32 0.0, %v2853
        %v2855 = vpop.f32.mrb[0].mxu0
        %v2856 = vpop.f32.mrb[0].mxu0
        %v2857 = vadd.f32 0.0, %v2856
        %v2858 = vpop.f32.mrb[0].mxu0
        %2859 = vmatprep.mubr.bf16.mxu0 %v2380
        %2860 = vmatmul.mubr.bf16.gmra.mrb[0].mxu0 %v2379
        %v2861 = vpop.f32.mrb[0].mxu0
        %v2862 = vadd.f32 0.0, %v2861
        %v2863 = vpop.f32.mrb[0].mxu0
        %v2864 = vpop.f32.mrb[0].mxu0
        %v2865 = vadd.f32 0.0, %v2864
        %v2866 = vpop.f32.mrb[0].mxu0
        %2867 = vmatprep.mubr.bf16.mxu0 %v2388
        %2868 = vmatmul.mubr.bf16.gmra.mrb[0].mxu0 %v2387
        %v2869 = vpop.f32.mrb[0].mxu0
        %v2870 = vadd.f32 0.0, %v2869
        %v2871 = vpop.f32.mrb[0].mxu0
        %v2872 = vpop.f32.mrb[0].mxu0
        %v2873 = vadd.f32 0.0, %v2872
        %v2874 = vpop.f32.mrb[0].mxu0
        %2875 = vmatprep.mubr.bf16.mxu0 %v2396
        %2876 = vmatmul.mubr.bf16.gmra.mrb[0].mxu0 %v2395
        %v2877 = vpop.f32.mrb[0].mxu0
        %v2878 = vadd.f32 0.0, %v2877
        %v2879 = vpop.f32.mrb[0].mxu0
        %v2880 = vpop.f32.mrb[0].mxu0
        %v2881 = vadd.f32 0.0, %v2880
        %v2882 = vpop.f32.mrb[0].mxu0
        %2883 = vmatprep.mubr.bf16.mxu0 %v2404
        %2884 = vmatmul.mubr.bf16.gmra.mrb[0].mxu0 %v2403
        %v2885 = vpop.f32.mrb[0].mxu0
        %v2886 = vadd.f32 0.0, %v2885
        %v2887 = vpop.f32.mrb[0].mxu0
        %v2888 = vpop.f32.mrb[0].mxu0
        %v2889 = vadd.f32 0.0, %v2888
        %v2890 = vpop.f32.mrb[0].mxu0
        %2891 = vdwg.mxu0
        %2892 = vmatprep.subr.bf16.mxu0 0
        %2893 = vmatpush1.bf16.msra.mxu0 %v2683
        %2894 = vmatprep.subr.bf16.mxu0 0
        %2895 = vmatpush1.bf16.msra.mxu0 %v2684
        %2896 = vmatprep.subr.bf16.mxu0 0
        %2897 = vmatpush1.bf16.msra.mxu0 %v2685
        %2898 = vmatprep.subr.bf16.mxu0 0
        %2899 = vmatpush1.bf16.msra.mxu0 %v2686
        %2900 = vmatprep.subr.bf16.mxu0 0
        %2901 = vmatpush1.bf16.msra.mxu0 %v2687
        %2902 = vmatprep.subr.bf16.mxu0 0
        %2903 = vmatpush1.bf16.msra.mxu0 %v2688
        %2904 = vmatprep.subr.bf16.mxu0 0
        %2905 = vmatpush1.bf16.msra.mxu0 %v2689
        %2906 = vmatprep.subr.bf16.mxu0 0
        %2907 = vmatpush1.bf16.msra.mxu0 %v2690
        %2908 = vmatprep.subr.bf16.mxu0 0
        %2909 = vmatpush1.bf16.msra.mxu0 %v2691
        %2910 = vmatprep.subr.bf16.mxu0 0
        %2911 = vmatpush1.bf16.msra.mxu0 %v2692
        %2912 = vmatprep.subr.bf16.mxu0 0
        %2913 = vmatpush1.bf16.msra.mxu0 %v2693
        %2914 = vmatprep.subr.bf16.mxu0 0
        %2915 = vmatpush1.bf16.msra.mxu0 %v2694
        %2916 = vmatprep.subr.bf16.mxu0 0
        %2917 = vmatpush1.bf16.msra.mxu0 %v2695
        %2918 = vmatprep.subr.bf16.mxu0 0
        %2919 = vmatpush1.bf16.msra.mxu0 %v2696
        %2920 = vmatprep.subr.bf16.mxu0 0
        %2921 = vmatpush1.bf16.msra.mxu0 %v2697
        %2922 = vmatprep.subr.bf16.mxu0 0
        %2923 = vmatpush1.bf16.msra.mxu0 %v2698
        %2924 = vmatprep.mubr.bf16.mxu0 %v2350
        %2925 = vmatmul.mubr.bf16.gmra.mrb[0].mxu0 %v2349
        %v2926 = vpop.f32.mrb[0].mxu0
        %v2927 = vadd.f32 %v2830, %v2926
        %v2928 = vpop.f32.mrb[0].mxu0
        %v2929 = vpop.f32.mrb[0].mxu0
        %v2930 = vadd.f32 %v2833, %v2929
        %v2931 = vpop.f32.mrb[0].mxu0
        %2932 = vmatprep.mubr.bf16.mxu0 %v2358
        %2933 = vmatmul.mubr.bf16.gmra.mrb[0].mxu0 %v2357
        %v2934 = vpop.f32.mrb[0].mxu0
        %v2935 = vadd.f32 %v2838, %v2934
        %v2936 = vpop.f32.mrb[0].mxu0
        %v2937 = vpop.f32.mrb[0].mxu0
        %v2938 = vadd.f32 %v2841, %v2937
        %v2939 = vpop.f32.mrb[0].mxu0
        %2940 = vmatprep.mubr.bf16.mxu0 %v2366
        %2941 = vmatmul.mubr.bf16.gmra.mrb[0].mxu0 %v2365
        %v2942 = vpop.f32.mrb[0].mxu0
        %v2943 = vadd.f32 %v2846, %v2942
        %v2944 = vpop.f32.mrb[0].mxu0
        %v2945 = vpop.f32.mrb[0].mxu0
        %v2946 = vadd.f32 %v2849, %v2945
        %v2947 = vpop.f32.mrb[0].mxu0
        %2948 = vmatprep.mubr.bf16.mxu0 %v2374
        %2949 = vmatmul.mubr.bf16.gmra.mrb[0].mxu0 %v2373
        %v2950 = vpop.f32.mrb[0].mxu0
        %v2951 = vadd.f32 %v2854, %v2950
        %v2952 = vpop.f32.mrb[0].mxu0
        %v2953 = vpop.f32.mrb[0].mxu0
        %v2954 = vadd.f32 %v2857, %v2953
        %v2955 = vpop.f32.mrb[0].mxu0
        %2956 = vmatprep.mubr.bf16.mxu0 %v2382
        %2957 = vmatmul.mubr.bf16.gmra.mrb[0].mxu0 %v2381
        %v2958 = vpop.f32.mrb[0].mxu0
        %v2959 = vadd.f32 %v2862, %v2958
        %v2960 = vpop.f32.mrb[0].mxu0
        %v2961 = vpop.f32.mrb[0].mxu0
        %v2962 = vadd.f32 %v2865, %v2961
        %v2963 = vpop.f32.mrb[0].mxu0
        %2964 = vmatprep.mubr.bf16.mxu0 %v2390
        %2965 = vmatmul.mubr.bf16.gmra.mrb[0].mxu0 %v2389
        %v2966 = vpop.f32.mrb[0].mxu0
        %v2967 = vadd.f32 %v2870, %v2966
        %v2968 = vpop.f32.mrb[0].mxu0
        %v2969 = vpop.f32.mrb[0].mxu0
        %v2970 = vadd.f32 %v2873, %v2969
        %v2971 = vpop.f32.mrb[0].mxu0
        %2972 = vmatprep.mubr.bf16.mxu0 %v2398
        %2973 = vmatmul.mubr.bf16.gmra.mrb[0].mxu0 %v2397
        %v2974 = vpop.f32.mrb[0].mxu0
        %v2975 = vadd.f32 %v2878, %v2974
        %v2976 = vpop.f32.mrb[0].mxu0
        %v2977 = vpop.f32.mrb[0].mxu0
        %v2978 = vadd.f32 %v2881, %v2977
        %v2979 = vpop.f32.mrb[0].mxu0
        %2980 = vmatprep.mubr.bf16.mxu0 %v2406
        %2981 = vmatmul.mubr.bf16.gmra.mrb[0].mxu0 %v2405
        %v2982 = vpop.f32.mrb[0].mxu0
        %v2983 = vadd.f32 %v2886, %v2982
        %v2984 = vpop.f32.mrb[0].mxu0
        %v2985 = vpop.f32.mrb[0].mxu0
        %v2986 = vadd.f32 %v2889, %v2985
        %v2987 = vpop.f32.mrb[0].mxu0
        %2988 = vdwg.mxu0
        %2989 = vmatprep.subr.bf16.mxu0 0
        %2990 = vmatpush1.bf16.msra.mxu0 %v2699
        %2991 = vmatprep.subr.bf16.mxu0 0
        %2992 = vmatpush1.bf16.msra.mxu0 %v2700
        %2993 = vmatprep.subr.bf16.mxu0 0
        %2994 = vmatpush1.bf16.msra.mxu0 %v2701
        %2995 = vmatprep.subr.bf16.mxu0 0
        %2996 = vmatpush1.bf16.msra.mxu0 %v2702
        %2997 = vmatprep.subr.bf16.mxu0 0
        %2998 = vmatpush1.bf16.msra.mxu0 %v2703
        %2999 = vmatprep.subr.bf16.mxu0 0
        %3000 = vmatpush1.bf16.msra.mxu0 %v2704
        %3001 = vmatprep.subr.bf16.mxu0 0
        %3002 = vmatpush1.bf16.msra.mxu0 %v2705
        %3003 = vmatprep.subr.bf16.mxu0 0
        %3004 = vmatpush1.bf16.msra.mxu0 %v2706
        %3005 = vmatprep.subr.bf16.mxu0 0
        %3006 = vmatpush1.bf16.msra.mxu0 %v2707
        %3007 = vmatprep.subr.bf16.mxu0 0
        %3008 = vmatpush1.bf16.msra.mxu0 %v2708
        %3009 = vmatprep.subr.bf16.mxu0 0
        %3010 = vmatpush1.bf16.msra.mxu0 %v2709
        %3011 = vmatprep.subr.bf16.mxu0 0
        %3012 = vmatpush1.bf16.msra.mxu0 %v2710
        %3013 = vmatprep.subr.bf16.mxu0 0
        %3014 = vmatpush1.bf16.msra.mxu0 %v2711
        %3015 = vmatprep.subr.bf16.mxu0 0
        %3016 = vmatpush1.bf16.msra.mxu0 %v2712
        %3017 = vmatprep.subr.bf16.mxu0 0
        %3018 = vmatpush1.bf16.msra.mxu0 %v2713
        %3019 = vmatprep.subr.bf16.mxu0 0
        %3020 = vmatpush1.bf16.msra.mxu0 %v2714
        %3021 = vmatprep.mubr.bf16.mxu0 %v2352
        %3022 = vmatmul.mubr.bf16.gmra.mrb[0].mxu0 %v2351
        %v3023 = vpop.f32.mrb[0].mxu0
        %v3024 = vadd.f32 %v2927, %v3023
        %v3025 = vpop.f32.mrb[0].mxu0
        %v3026 = vpop.f32.mrb[0].mxu0
        %v3027 = vadd.f32 %v2930, %v3026
        %v3028 = vpop.f32.mrb[0].mxu0
        %3029 = vmatprep.mubr.bf16.mxu0 %v2360
        %3030 = vmatmul.mubr.bf16.gmra.mrb[0].mxu0 %v2359
        %v3031 = vpop.f32.mrb[0].mxu0
        %v3032 = vadd.f32 %v2935, %v3031
        %v3033 = vpop.f32.mrb[0].mxu0
        %v3034 = vpop.f32.mrb[0].mxu0
        %v3035 = vadd.f32 %v2938, %v3034
        %v3036 = vpop.f32.mrb[0].mxu0
        %3037 = vmatprep.mubr.bf16.mxu0 %v2368
        %3038 = vmatmul.mubr.bf16.gmra.mrb[0].mxu0 %v2367
        %v3039 = vpop.f32.mrb[0].mxu0
        %v3040 = vadd.f32 %v2943, %v3039
        %v3041 = vpop.f32.mrb[0].mxu0
        %v3042 = vpop.f32.mrb[0].mxu0
        %v3043 = vadd.f32 %v2946, %v3042
        %v3044 = vpop.f32.mrb[0].mxu0
        %3045 = vmatprep.mubr.bf16.mxu0 %v2376
        %3046 = vmatmul.mubr.bf16.gmra.mrb[0].mxu0 %v2375
        %v3047 = vpop.f32.mrb[0].mxu0
        %v3048 = vadd.f32 %v2951, %v3047
        %v3049 = vpop.f32.mrb[0].mxu0
        %v3050 = vpop.f32.mrb[0].mxu0
        %v3051 = vadd.f32 %v2954, %v3050
        %v3052 = vpop.f32.mrb[0].mxu0
        %3053 = vmatprep.mubr.bf16.mxu0 %v2384
        %3054 = vmatmul.mubr.bf16.gmra.mrb[0].mxu0 %v2383
        %v3055 = vpop.f32.mrb[0].mxu0
        %v3056 = vadd.f32 %v2959, %v3055
        %v3057 = vpop.f32.mrb[0].mxu0
        %v3058 = vpop.f32.mrb[0].mxu0
        %v3059 = vadd.f32 %v2962, %v3058
        %v3060 = vpop.f32.mrb[0].mxu0
        %3061 = vmatprep.mubr.bf16.mxu0 %v2392
        %3062 = vmatmul.mubr.bf16.gmra.mrb[0].mxu0 %v2391
        %v3063 = vpop.f32.mrb[0].mxu0
        %v3064 = vadd.f32 %v2967, %v3063
        %v3065 = vpop.f32.mrb[0].mxu0
        %v3066 = vpop.f32.mrb[0].mxu0
        %v3067 = vadd.f32 %v2970, %v3066
        %v3068 = vpop.f32.mrb[0].mxu0
        %3069 = vmatprep.mubr.bf16.mxu0 %v2400
        %3070 = vmatmul.mubr.bf16.gmra.mrb[0].mxu0 %v2399
        %v3071 = vpop.f32.mrb[0].mxu0
        %v3072 = vadd.f32 %v2975, %v3071
        %v3073 = vpop.f32.mrb[0].mxu0
        %v3074 = vpop.f32.mrb[0].mxu0
        %v3075 = vadd.f32 %v2978, %v3074
        %v3076 = vpop.f32.mrb[0].mxu0
        %3077 = vmatprep.mubr.bf16.mxu0 %v2408
        %3078 = vmatmul.mubr.bf16.gmra.mrb[0].mxu0 %v2407
        %v3079 = vpop.f32.mrb[0].mxu0
        %v3080 = vadd.f32 %v2983, %v3079
        %v3081 = vpop.f32.mrb[0].mxu0
        %v3082 = vpop.f32.mrb[0].mxu0
        %v3083 = vadd.f32 %v2986, %v3082
        %v3084 = vpop.f32.mrb[0].mxu0
        %3085 = vdwg.mxu0
        %3086 = vmatprep.subr.bf16.mxu0 0
        %3087 = vmatpush1.bf16.msra.mxu0 %v2715
        %3088 = vmatprep.subr.bf16.mxu0 0
        %3089 = vmatpush1.bf16.msra.mxu0 %v2716
        %3090 = vmatprep.subr.bf16.mxu0 0
        %3091 = vmatpush1.bf16.msra.mxu0 %v2717
        %3092 = vmatprep.subr.bf16.mxu0 0
        %3093 = vmatpush1.bf16.msra.mxu0 %v2718
        %3094 = vmatprep.subr.bf16.mxu0 0
        %3095 = vmatpush1.bf16.msra.mxu0 %v2719
        %3096 = vmatprep.subr.bf16.mxu0 0
        %3097 = vmatpush1.bf16.msra.mxu0 %v2720
        %3098 = vmatprep.subr.bf16.mxu0 0
        %3099 = vmatpush1.bf16.msra.mxu0 %v2721
        %3100 = vmatprep.subr.bf16.mxu0 0
        %3101 = vmatpush1.bf16.msra.mxu0 %v2722
        %3102 = vmatprep.subr.bf16.mxu0 0
        %3103 = vmatpush1.bf16.msra.mxu0 %v2723
        %3104 = vmatprep.subr.bf16.mxu0 0
        %3105 = vmatpush1.bf16.msra.mxu0 %v2724
        %3106 = vmatprep.subr.bf16.mxu0 0
        %3107 = vmatpush1.bf16.msra.mxu0 %v2725
        %3108 = vmatprep.subr.bf16.mxu0 0
        %3109 = vmatpush1.bf16.msra.mxu0 %v2726
        %3110 = vmatprep.subr.bf16.mxu0 0
        %3111 = vmatpush1.bf16.msra.mxu0 %v2727
        %3112 = vmatprep.subr.bf16.mxu0 0
        %3113 = vmatpush1.bf16.msra.mxu0 %v2728
        %3114 = vmatprep.subr.bf16.mxu0 0
        %3115 = vmatpush1.bf16.msra.mxu0 %v2729
        %3116 = vmatprep.subr.bf16.mxu0 0
        %3117 = vmatpush1.bf16.msra.mxu0 %v2730
        %3118 = vmatprep.mubr.bf16.mxu0 %v2354
        %3119 = vmatmul.mubr.bf16.gmra.mrb[0].mxu0 %v2353
        %v3120 = vpop.f32.mrb[0].mxu0
        %v3121 = vadd.f32 %v3024, %v3120
        %v3122 = vpop.f32.mrb[0].mxu0
        %v3123 = vpop.f32.mrb[0].mxu0
        %v3124 = vadd.f32 %v3027, %v3123
        %v3125 = vpop.f32.mrb[0].mxu0
        %3126 = vmatprep.mubr.bf16.mxu0 %v2362
        %3127 = vmatmul.mubr.bf16.gmra.mrb[0].mxu0 %v2361
        %v3128 = vpop.f32.mrb[0].mxu0
        %v3129 = vadd.f32 %v3032, %v3128
        %v3130 = vpop.f32.mrb[0].mxu0
        %v3131 = vpop.f32.mrb[0].mxu0
        %v3132 = vadd.f32 %v3035, %v3131
        %v3133 = vpop.f32.mrb[0].mxu0
        %3134 = vmatprep.mubr.bf16.mxu0 %v2370
        %3135 = vmatmul.mubr.bf16.gmra.mrb[0].mxu0 %v2369
        %v3136 = vpop.f32.mrb[0].mxu0
        %v3137 = vadd.f32 %v3040, %v3136
        %v3138 = vpop.f32.mrb[0].mxu0
        %v3139 = vpop.f32.mrb[0].mxu0
        %v3140 = vadd.f32 %v3043, %v3139
        %v3141 = vpop.f32.mrb[0].mxu0
        %3142 = vmatprep.mubr.bf16.mxu0 %v2378
        %3143 = vmatmul.mubr.bf16.gmra.mrb[0].mxu0 %v2377
        %v3144 = vpop.f32.mrb[0].mxu0
        %v3145 = vadd.f32 %v3048, %v3144
        %v3146 = vpop.f32.mrb[0].mxu0
        %v3147 = vpop.f32.mrb[0].mxu0
        %v3148 = vadd.f32 %v3051, %v3147
        %v3149 = vpop.f32.mrb[0].mxu0
        %3150 = vmatprep.mubr.bf16.mxu0 %v2386
        %3151 = vmatmul.mubr.bf16.gmra.mrb[0].mxu0 %v2385
        %v3152 = vpop.f32.mrb[0].mxu0
        %v3153 = vadd.f32 %v3056, %v3152
        %v3154 = vpop.f32.mrb[0].mxu0
        %v3155 = vpop.f32.mrb[0].mxu0
        %v3156 = vadd.f32 %v3059, %v3155
        %v3157 = vpop.f32.mrb[0].mxu0
        %3158 = vmatprep.mubr.bf16.mxu0 %v2394
        %3159 = vmatmul.mubr.bf16.gmra.mrb[0].mxu0 %v2393
        %v3160 = vpop.f32.mrb[0].mxu0
        %v3161 = vadd.f32 %v3064, %v3160
        %v3162 = vpop.f32.mrb[0].mxu0
        %v3163 = vpop.f32.mrb[0].mxu0
        %v3164 = vadd.f32 %v3067, %v3163
        %v3165 = vpop.f32.mrb[0].mxu0
        %3166 = vmatprep.mubr.bf16.mxu0 %v2402
        %3167 = vmatmul.mubr.bf16.gmra.mrb[0].mxu0 %v2401
        %v3168 = vpop.f32.mrb[0].mxu0
        %v3169 = vadd.f32 %v3072, %v3168
        %v3170 = vpop.f32.mrb[0].mxu0
        %v3171 = vpop.f32.mrb[0].mxu0
        %v3172 = vadd.f32 %v3075, %v3171
        %v3173 = vpop.f32.mrb[0].mxu0
        %3174 = vmatprep.mubr.bf16.mxu0 %v2410
        %3175 = vmatmul.mubr.bf16.gmra.mrb[0].mxu0 %v2409
        %v3176 = vpop.f32.mrb[0].mxu0
        %v3177 = vadd.f32 %v3080, %v3176
        %v3178 = vpop.f32.mrb[0].mxu0
        %v3179 = vpop.f32.mrb[0].mxu0
        %v3180 = vadd.f32 %v3083, %v3179
        %v3181 = vpop.f32.mrb[0].mxu0
        %3182 = vdwg.mxu0
        %v3183 = vld [vmem:[%s364] sm:$0xff]
        %v3184 = vld [vmem:[%s364 + $0x8] sm:$0xff]
        %v3185 = vld [vmem:[%s364 + $0x10] sm:$0xff]
        %v3186 = vld [vmem:[%s364 + $0x18] sm:$0xff]
        %v3187 = vld [vmem:[%s364 + $0x20] sm:$0xff]
        %v3188 = vld [vmem:[%s364 + $0x28] sm:$0xff]
        %v3189 = vld [vmem:[%s364 + $0x30] sm:$0xff]
        %v3190 = vld [vmem:[%s364 + $0x38] sm:$0xff]
        %v3191 = vld [vmem:[%s364 + $0x40] sm:$0xff]
        %v3192 = vld [vmem:[%s364 + $0x48] sm:$0xff]
        %v3193 = vld [vmem:[%s364 + $0x50] sm:$0xff]
        %v3194 = vld [vmem:[%s364 + $0x58] sm:$0xff]
        %v3195 = vld [vmem:[%s364 + $0x60] sm:$0xff]
        %v3196 = vld [vmem:[%s364 + $0x68] sm:$0xff]
        %v3197 = vld [vmem:[%s364 + $0x70] sm:$0xff]
        %v3198 = vld [vmem:[%s364 + $0x78] sm:$0xff]
        %v3199 = vadd.f32 %v3183, %v3121
        %v3200 = vadd.f32 %v3184, %v3124
        %v3201 = vadd.f32 %v3185, %v3129
        %v3202 = vadd.f32 %v3186, %v3132
        %v3203 = vadd.f32 %v3187, %v3137
        %v3204 = vadd.f32 %v3188, %v3140
        %v3205 = vadd.f32 %v3189, %v3145
        %v3206 = vadd.f32 %v3190, %v3148
        %v3207 = vadd.f32 %v3191, %v3153
        %v3208 = vadd.f32 %v3192, %v3156
        %v3209 = vadd.f32 %v3193, %v3161
        %v3210 = vadd.f32 %v3194, %v3164
        %v3211 = vadd.f32 %v3195, %v3169
        %v3212 = vadd.f32 %v3196, %v3172
        %v3213 = vadd.f32 %v3197, %v3177
        %v3214 = vadd.f32 %v3198, %v3180
        %3215 = vst [vmem:[%s390] sm:$0xff] %v3199
        %3216 = vst [vmem:[%s390 + $0x8] sm:$0xff] %v3200
        %3217 = vst [vmem:[%s390 + $0x10] sm:$0xff] %v3201
        %3218 = vst [vmem:[%s390 + $0x18] sm:$0xff] %v3202
        %3219 = vst [vmem:[%s390 + $0x20] sm:$0xff] %v3203
        %3220 = vst [vmem:[%s390 + $0x28] sm:$0xff] %v3204
        %3221 = vst [vmem:[%s390 + $0x30] sm:$0xff] %v3205
        %3222 = vst [vmem:[%s390 + $0x38] sm:$0xff] %v3206
        %3223 = vst [vmem:[%s390 + $0x40] sm:$0xff] %v3207
        %3224 = vst [vmem:[%s390 + $0x48] sm:$0xff] %v3208
        %3225 = vst [vmem:[%s390 + $0x50] sm:$0xff] %v3209
        %3226 = vst [vmem:[%s390 + $0x58] sm:$0xff] %v3210
        %3227 = vst [vmem:[%s390 + $0x60] sm:$0xff] %v3211
        %3228 = vst [vmem:[%s390 + $0x68] sm:$0xff] %v3212
        %3229 = vst [vmem:[%s390 + $0x70] sm:$0xff] %v3213
        %3230 = vst [vmem:[%s390 + $0x78] sm:$0xff] %v3214
        %3231 = vst [vmem:[#allocation2] sm:$0xff] %v2028
        %3232 = vst [vmem:[#allocation2 + $0x40] sm:$0xff] %v2030
        %3233 = vst [vmem:[#allocation2 + $0x80] sm:$0xff] %v2032
        %3234 = vst [vmem:[#allocation2 + $0xc0] sm:$0xff] %v2034
        %3235 = vst [vmem:[#allocation2 + $0x100] sm:$0xff] %v2036
        %3236 = vst [vmem:[#allocation2 + $0x140] sm:$0xff] %v2038
        %3237 = vst [vmem:[#allocation2 + $0x180] sm:$0xff] %v2040
        %3238 = vst [vmem:[#allocation2 + $0x1c0] sm:$0xff] %v2042
        %3239 = vst [vmem:[#allocation2 + $0x8] sm:$0xff] %v2044
        %3240 = vst [vmem:[#allocation2 + $0x48] sm:$0xff] %v2046
        %3241 = vst [vmem:[#allocation2 + $0x88] sm:$0xff] %v2048
        %3242 = vst [vmem:[#allocation2 + $0xc8] sm:$0xff] %v2050
        %3243 = vst [vmem:[#allocation2 + $0x108] sm:$0xff] %v2052
        %3244 = vst [vmem:[#allocation2 + $0x148] sm:$0xff] %v2054
        %3245 = vst [vmem:[#allocation2 + $0x188] sm:$0xff] %v2056
        %3246 = vst [vmem:[#allocation2 + $0x1c8] sm:$0xff] %v2058
        %3247 = vst [vmem:[#allocation2 + $0x10] sm:$0xff] %v2060
        %3248 = vst [vmem:[#allocation2 + $0x50] sm:$0xff] %v2062
        %3249 = vst [vmem:[#allocation2 + $0x90] sm:$0xff] %v2064
        %3250 = vst [vmem:[#allocation2 + $0xd0] sm:$0xff] %v2066
        %3251 = vst [vmem:[#allocation2 + $0x110] sm:$0xff] %v2068
        %3252 = vst [vmem:[#allocation2 + $0x150] sm:$0xff] %v2070
        %3253 = vst [vmem:[#allocation2 + $0x190] sm:$0xff] %v2072
        %3254 = vst [vmem:[#allocation2 + $0x1d0] sm:$0xff] %v2074
        %3255 = vst [vmem:[#allocation2 + $0x18] sm:$0xff] %v2076
        %3256 = vst [vmem:[#allocation2 + $0x58] sm:$0xff] %v2078
        %3257 = vst [vmem:[#allocation2 + $0x98] sm:$0xff] %v2080
        %3258 = vst [vmem:[#allocation2 + $0xd8] sm:$0xff] %v2082
        %3259 = vst [vmem:[#allocation2 + $0x118] sm:$0xff] %v2084
        %3260 = vst [vmem:[#allocation2 + $0x158] sm:$0xff] %v2086
        %3261 = vst [vmem:[#allocation2 + $0x198] sm:$0xff] %v2088
        %3262 = vst [vmem:[#allocation2 + $0x1d8] sm:$0xff] %v2090
        %3263 = vst [vmem:[#allocation2 + $0x20] sm:$0xff] %v2092
        %3264 = vst [vmem:[#allocation2 + $0x60] sm:$0xff] %v2094
        %3265 = vst [vmem:[#allocation2 + $0xa0] sm:$0xff] %v2096
        %3266 = vst [vmem:[#allocation2 + $0xe0] sm:$0xff] %v2098
        %3267 = vst [vmem:[#allocation2 + $0x120] sm:$0xff] %v2100
        %3268 = vst [vmem:[#allocation2 + $0x160] sm:$0xff] %v2102
        %3269 = vst [vmem:[#allocation2 + $0x1a0] sm:$0xff] %v2104
        %3270 = vst [vmem:[#allocation2 + $0x1e0] sm:$0xff] %v2106
        %3271 = vst [vmem:[#allocation2 + $0x28] sm:$0xff] %v2108
        %3272 = vst [vmem:[#allocation2 + $0x68] sm:$0xff] %v2110
        %3273 = vst [vmem:[#allocation2 + $0xa8] sm:$0xff] %v2112
        %3274 = vst [vmem:[#allocation2 + $0xe8] sm:$0xff] %v2114
        %3275 = vst [vmem:[#allocation2 + $0x128] sm:$0xff] %v2116
        %3276 = vst [vmem:[#allocation2 + $0x168] sm:$0xff] %v2118
        %3277 = vst [vmem:[#allocation2 + $0x1a8] sm:$0xff] %v2120
        %3278 = vst [vmem:[#allocation2 + $0x1e8] sm:$0xff] %v2122
        %3279 = vst [vmem:[#allocation2 + $0x30] sm:$0xff] %v2124
        %3280 = vst [vmem:[#allocation2 + $0x70] sm:$0xff] %v2126
        %3281 = vst [vmem:[#allocation2 + $0xb0] sm:$0xff] %v2128
        %3282 = vst [vmem:[#allocation2 + $0xf0] sm:$0xff] %v2130
        %3283 = vst [vmem:[#allocation2 + $0x130] sm:$0xff] %v2132
        %3284 = vst [vmem:[#allocation2 + $0x170] sm:$0xff] %v2134
        %3285 = vst [vmem:[#allocation2 + $0x1b0] sm:$0xff] %v2136
        %3286 = vst [vmem:[#allocation2 + $0x1f0] sm:$0xff] %v2138
        %3287 = vst [vmem:[#allocation2 + $0x38] sm:$0xff] %v2140
        %3288 = vst [vmem:[#allocation2 + $0x78] sm:$0xff] %v2142
        %3289 = vst [vmem:[#allocation2 + $0xb8] sm:$0xff] %v2144
        %3290 = vst [vmem:[#allocation2 + $0xf8] sm:$0xff] %v2146
        %3291 = vst [vmem:[#allocation2 + $0x138] sm:$0xff] %v2148
        %3292 = vst [vmem:[#allocation2 + $0x178] sm:$0xff] %v2150
        %3293 = vst [vmem:[#allocation2 + $0x1b8] sm:$0xff] %v2152
        %3294 = vst [vmem:[#allocation2 + $0x1f8] sm:$0xff] %v2154
        %v3295 = vld [vmem:[#allocation2] sm:$0xff]
        %v3296 = vld [vmem:[#allocation2 + $0x8] sm:$0xff]
        %v3297 = vld [vmem:[#allocation2 + $0x10] sm:$0xff]
        %v3298 = vld [vmem:[#allocation2 + $0x18] sm:$0xff]
        %v3299 = vld [vmem:[#allocation2 + $0x20] sm:$0xff]
        %v3300 = vld [vmem:[#allocation2 + $0x28] sm:$0xff]
        %v3301 = vld [vmem:[#allocation2 + $0x30] sm:$0xff]
        %v3302 = vld [vmem:[#allocation2 + $0x38] sm:$0xff]
        %v3303 = vld [vmem:[#allocation2 + $0x40] sm:$0xff]
        %v3304 = vld [vmem:[#allocation2 + $0x48] sm:$0xff]
        %v3305 = vld [vmem:[#allocation2 + $0x50] sm:$0xff]
        %v3306 = vld [vmem:[#allocation2 + $0x58] sm:$0xff]
        %v3307 = vld [vmem:[#allocation2 + $0x60] sm:$0xff]
        %v3308 = vld [vmem:[#allocation2 + $0x68] sm:$0xff]
        %v3309 = vld [vmem:[#allocation2 + $0x70] sm:$0xff]
        %v3310 = vld [vmem:[#allocation2 + $0x78] sm:$0xff]
        %v3311 = vld [vmem:[#allocation2 + $0x80] sm:$0xff]
        %v3312 = vld [vmem:[#allocation2 + $0x88] sm:$0xff]
        %v3313 = vld [vmem:[#allocation2 + $0x90] sm:$0xff]
        %v3314 = vld [vmem:[#allocation2 + $0x98] sm:$0xff]
        %v3315 = vld [vmem:[#allocation2 + $0xa0] sm:$0xff]
        %v3316 = vld [vmem:[#allocation2 + $0xa8] sm:$0xff]
        %v3317 = vld [vmem:[#allocation2 + $0xb0] sm:$0xff]
        %v3318 = vld [vmem:[#allocation2 + $0xb8] sm:$0xff]
        %v3319 = vld [vmem:[#allocation2 + $0xc0] sm:$0xff]
        %v3320 = vld [vmem:[#allocation2 + $0xc8] sm:$0xff]
        %v3321 = vld [vmem:[#allocation2 + $0xd0] sm:$0xff]
        %v3322 = vld [vmem:[#allocation2 + $0xd8] sm:$0xff]
        %v3323 = vld [vmem:[#allocation2 + $0xe0] sm:$0xff]
        %v3324 = vld [vmem:[#allocation2 + $0xe8] sm:$0xff]
        %v3325 = vld [vmem:[#allocation2 + $0xf0] sm:$0xff]
        %v3326 = vld [vmem:[#allocation2 + $0xf8] sm:$0xff]
        %v3327 = vld [vmem:[#allocation2 + $0x100] sm:$0xff]
        %v3328 = vld [vmem:[#allocation2 + $0x108] sm:$0xff]
        %v3329 = vld [vmem:[#allocation2 + $0x110] sm:$0xff]
        %v3330 = vld [vmem:[#allocation2 + $0x118] sm:$0xff]
        %v3331 = vld [vmem:[#allocation2 + $0x120] sm:$0xff]
        %v3332 = vld [vmem:[#allocation2 + $0x128] sm:$0xff]
        %v3333 = vld [vmem:[#allocation2 + $0x130] sm:$0xff]
        %v3334 = vld [vmem:[#allocation2 + $0x138] sm:$0xff]
        %v3335 = vld [vmem:[#allocation2 + $0x140] sm:$0xff]
        %v3336 = vld [vmem:[#allocation2 + $0x148] sm:$0xff]
        %v3337 = vld [vmem:[#allocation2 + $0x150] sm:$0xff]
        %v3338 = vld [vmem:[#allocation2 + $0x158] sm:$0xff]
        %v3339 = vld [vmem:[#allocation2 + $0x160] sm:$0xff]
        %v3340 = vld [vmem:[#allocation2 + $0x168] sm:$0xff]
        %v3341 = vld [vmem:[#allocation2 + $0x170] sm:$0xff]
        %v3342 = vld [vmem:[#allocation2 + $0x178] sm:$0xff]
        %v3343 = vld [vmem:[#allocation2 + $0x180] sm:$0xff]
        %v3344 = vld [vmem:[#allocation2 + $0x188] sm:$0xff]
        %v3345 = vld [vmem:[#allocation2 + $0x190] sm:$0xff]
        %v3346 = vld [vmem:[#allocation2 + $0x198] sm:$0xff]
        %v3347 = vld [vmem:[#allocation2 + $0x1a0] sm:$0xff]
        %v3348 = vld [vmem:[#allocation2 + $0x1a8] sm:$0xff]
        %v3349 = vld [vmem:[#allocation2 + $0x1b0] sm:$0xff]
        %v3350 = vld [vmem:[#allocation2 + $0x1b8] sm:$0xff]
        %v3351 = vld [vmem:[#allocation2 + $0x1c0] sm:$0xff]
        %v3352 = vld [vmem:[#allocation2 + $0x1c8] sm:$0xff]
        %v3353 = vld [vmem:[#allocation2 + $0x1d0] sm:$0xff]
        %v3354 = vld [vmem:[#allocation2 + $0x1d8] sm:$0xff]
        %v3355 = vld [vmem:[#allocation2 + $0x1e0] sm:$0xff]
        %v3356 = vld [vmem:[#allocation2 + $0x1e8] sm:$0xff]
        %v3357 = vld [vmem:[#allocation2 + $0x1f0] sm:$0xff]
        %v3358 = vld [vmem:[#allocation2 + $0x1f8] sm:$0xff]
        %3359 = vmatprep.subr.bf16.mxu0 0
        %3360 = vmatpush1.bf16.msra.mxu0 %v2667
        %3361 = vmatprep.subr.bf16.mxu0 0
        %3362 = vmatpush1.bf16.msra.mxu0 %v2668
        %3363 = vmatprep.subr.bf16.mxu0 0
        %3364 = vmatpush1.bf16.msra.mxu0 %v2669
        %3365 = vmatprep.subr.bf16.mxu0 0
        %3366 = vmatpush1.bf16.msra.mxu0 %v2670
        %3367 = vmatprep.subr.bf16.mxu0 0
        %3368 = vmatpush1.bf16.msra.mxu0 %v2671
        %3369 = vmatprep.subr.bf16.mxu0 0
        %3370 = vmatpush1.bf16.msra.mxu0 %v2672
        %3371 = vmatprep.subr.bf16.mxu0 0
        %3372 = vmatpush1.bf16.msra.mxu0 %v2673
        %3373 = vmatprep.subr.bf16.mxu0 0
        %3374 = vmatpush1.bf16.msra.mxu0 %v2674
        %3375 = vmatprep.subr.bf16.mxu0 0
        %3376 = vmatpush1.bf16.msra.mxu0 %v2675
        %3377 = vmatprep.subr.bf16.mxu0 0
        %3378 = vmatpush1.bf16.msra.mxu0 %v2676
        %3379 = vmatprep.subr.bf16.mxu0 0
        %3380 = vmatpush1.bf16.msra.mxu0 %v2677
        %3381 = vmatprep.subr.bf16.mxu0 0
        %3382 = vmatpush1.bf16.msra.mxu0 %v2678
        %3383 = vmatprep.subr.bf16.mxu0 0
        %3384 = vmatpush1.bf16.msra.mxu0 %v2679
        %3385 = vmatprep.subr.bf16.mxu0 0
        %3386 = vmatpush1.bf16.msra.mxu0 %v2680
        %3387 = vmatprep.subr.bf16.mxu0 0
        %3388 = vmatpush1.bf16.msra.mxu0 %v2681
        %3389 = vmatprep.subr.bf16.mxu0 0
        %3390 = vmatpush1.bf16.msra.mxu0 %v2682
        %3391 = vmatprep.mubr.bf16.mxu0 %v3296
        %3392 = vmatmul.mubr.bf16.gmra.mrb[0].mxu0 %v3295
        %v3393 = vpop.f32.mrb[0].mxu0
        %v3394 = vadd.f32 0.0, %v3393
        %v3395 = vpop.f32.mrb[0].mxu0
        %v3396 = vpop.f32.mrb[0].mxu0
        %v3397 = vadd.f32 0.0, %v3396
        %v3398 = vpop.f32.mrb[0].mxu0
        %3399 = vmatprep.mubr.bf16.mxu0 %v3304
        %3400 = vmatmul.mubr.bf16.gmra.mrb[0].mxu0 %v3303
        %v3401 = vpop.f32.mrb[0].mxu0
        %v3402 = vadd.f32 0.0, %v3401
        %v3403 = vpop.f32.mrb[0].mxu0
        %v3404 = vpop.f32.mrb[0].mxu0
        %v3405 = vadd.f32 0.0, %v3404
        %v3406 = vpop.f32.mrb[0].mxu0
        %3407 = vmatprep.mubr.bf16.mxu0 %v3312
        %3408 = vmatmul.mubr.bf16.gmra.mrb[0].mxu0 %v3311
        %v3409 = vpop.f32.mrb[0].mxu0
        %v3410 = vadd.f32 0.0, %v3409
        %v3411 = vpop.f32.mrb[0].mxu0
        %v3412 = vpop.f32.mrb[0].mxu0
        %v3413 = vadd.f32 0.0, %v3412
        %v3414 = vpop.f32.mrb[0].mxu0
        %3415 = vmatprep.mubr.bf16.mxu0 %v3320
        %3416 = vmatmul.mubr.bf16.gmra.mrb[0].mxu0 %v3319
        %v3417 = vpop.f32.mrb[0].mxu0
        %v3418 = vadd.f32 0.0, %v3417
        %v3419 = vpop.f32.mrb[0].mxu0
        %v3420 = vpop.f32.mrb[0].mxu0
        %v3421 = vadd.f32 0.0, %v3420
        %v3422 = vpop.f32.mrb[0].mxu0
        %3423 = vmatprep.mubr.bf16.mxu0 %v3328
        %3424 = vmatmul.mubr.bf16.gmra.mrb[0].mxu0 %v3327
        %v3425 = vpop.f32.mrb[0].mxu0
        %v3426 = vadd.f32 0.0, %v3425
        %v3427 = vpop.f32.mrb[0].mxu0
        %v3428 = vpop.f32.mrb[0].mxu0
        %v3429 = vadd.f32 0.0, %v3428
        %v3430 = vpop.f32.mrb[0].mxu0
        %3431 = vmatprep.mubr.bf16.mxu0 %v3336
        %3432 = vmatmul.mubr.bf16.gmra.mrb[0].mxu0 %v3335
        %v3433 = vpop.f32.mrb[0].mxu0
        %v3434 = vadd.f32 0.0, %v3433
        %v3435 = vpop.f32.mrb[0].mxu0
        %v3436 = vpop.f32.mrb[0].mxu0
        %v3437 = vadd.f32 0.0, %v3436
        %v3438 = vpop.f32.mrb[0].mxu0
        %3439 = vmatprep.mubr.bf16.mxu0 %v3344
        %3440 = vmatmul.mubr.bf16.gmra.mrb[0].mxu0 %v3343
        %v3441 = vpop.f32.mrb[0].mxu0
        %v3442 = vadd.f32 0.0, %v3441
        %v3443 = vpop.f32.mrb[0].mxu0
        %v3444 = vpop.f32.mrb[0].mxu0
        %v3445 = vadd.f32 0.0, %v3444
        %v3446 = vpop.f32.mrb[0].mxu0
        %3447 = vmatprep.mubr.bf16.mxu0 %v3352
        %3448 = vmatmul.mubr.bf16.gmra.mrb[0].mxu0 %v3351
        %v3449 = vpop.f32.mrb[0].mxu0
        %v3450 = vadd.f32 0.0, %v3449
        %v3451 = vpop.f32.mrb[0].mxu0
        %v3452 = vpop.f32.mrb[0].mxu0
        %v3453 = vadd.f32 0.0, %v3452
        %v3454 = vpop.f32.mrb[0].mxu0
        %3455 = vdwg.mxu0
        %3456 = vmatprep.subr.bf16.mxu0 0
        %3457 = vmatpush1.bf16.msra.mxu0 %v2683
        %3458 = vmatprep.subr.bf16.mxu0 0
        %3459 = vmatpush1.bf16.msra.mxu0 %v2684
        %3460 = vmatprep.subr.bf16.mxu0 0
        %3461 = vmatpush1.bf16.msra.mxu0 %v2685
        %3462 = vmatprep.subr.bf16.mxu0 0
        %3463 = vmatpush1.bf16.msra.mxu0 %v2686
        %3464 = vmatprep.subr.bf16.mxu0 0
        %3465 = vmatpush1.bf16.msra.mxu0 %v2687
        %3466 = vmatprep.subr.bf16.mxu0 0
        %3467 = vmatpush1.bf16.msra.mxu0 %v2688
        %3468 = vmatprep.subr.bf16.mxu0 0
        %3469 = vmatpush1.bf16.msra.mxu0 %v2689
        %3470 = vmatprep.subr.bf16.mxu0 0
        %3471 = vmatpush1.bf16.msra.mxu0 %v2690
        %3472 = vmatprep.subr.bf16.mxu0 0
        %3473 = vmatpush1.bf16.msra.mxu0 %v2691
        %3474 = vmatprep.subr.bf16.mxu0 0
        %3475 = vmatpush1.bf16.msra.mxu0 %v2692
        %3476 = vmatprep.subr.bf16.mxu0 0
        %3477 = vmatpush1.bf16.msra.mxu0 %v2693
        %3478 = vmatprep.subr.bf16.mxu0 0
        %3479 = vmatpush1.bf16.msra.mxu0 %v2694
        %3480 = vmatprep.subr.bf16.mxu0 0
        %3481 = vmatpush1.bf16.msra.mxu0 %v2695
        %3482 = vmatprep.subr.bf16.mxu0 0
        %3483 = vmatpush1.bf16.msra.mxu0 %v2696
        %3484 = vmatprep.subr.bf16.mxu0 0
        %3485 = vmatpush1.bf16.msra.mxu0 %v2697
        %3486 = vmatprep.subr.bf16.mxu0 0
        %3487 = vmatpush1.bf16.msra.mxu0 %v2698
        %3488 = vmatprep.mubr.bf16.mxu0 %v3298
        %3489 = vmatmul.mubr.bf16.gmra.mrb[0].mxu0 %v3297
        %v3490 = vpop.f32.mrb[0].mxu0
        %v3491 = vadd.f32 %v3394, %v3490
        %v3492 = vpop.f32.mrb[0].mxu0
        %v3493 = vpop.f32.mrb[0].mxu0
        %v3494 = vadd.f32 %v3397, %v3493
        %v3495 = vpop.f32.mrb[0].mxu0
        %3496 = vmatprep.mubr.bf16.mxu0 %v3306
        %3497 = vmatmul.mubr.bf16.gmra.mrb[0].mxu0 %v3305
        %v3498 = vpop.f32.mrb[0].mxu0
        %v3499 = vadd.f32 %v3402, %v3498
        %v3500 = vpop.f32.mrb[0].mxu0
        %v3501 = vpop.f32.mrb[0].mxu0
        %v3502 = vadd.f32 %v3405, %v3501
        %v3503 = vpop.f32.mrb[0].mxu0
        %3504 = vmatprep.mubr.bf16.mxu0 %v3314
        %3505 = vmatmul.mubr.bf16.gmra.mrb[0].mxu0 %v3313
        %v3506 = vpop.f32.mrb[0].mxu0
        %v3507 = vadd.f32 %v3410, %v3506
        %v3508 = vpop.f32.mrb[0].mxu0
        %v3509 = vpop.f32.mrb[0].mxu0
        %v3510 = vadd.f32 %v3413, %v3509
        %v3511 = vpop.f32.mrb[0].mxu0
        %3512 = vmatprep.mubr.bf16.mxu0 %v3322
        %3513 = vmatmul.mubr.bf16.gmra.mrb[0].mxu0 %v3321
        %v3514 = vpop.f32.mrb[0].mxu0
        %v3515 = vadd.f32 %v3418, %v3514
        %v3516 = vpop.f32.mrb[0].mxu0
        %v3517 = vpop.f32.mrb[0].mxu0
        %v3518 = vadd.f32 %v3421, %v3517
        %v3519 = vpop.f32.mrb[0].mxu0
        %3520 = vmatprep.mubr.bf16.mxu0 %v3330
        %3521 = vmatmul.mubr.bf16.gmra.mrb[0].mxu0 %v3329
        %v3522 = vpop.f32.mrb[0].mxu0
        %v3523 = vadd.f32 %v3426, %v3522
        %v3524 = vpop.f32.mrb[0].mxu0
        %v3525 = vpop.f32.mrb[0].mxu0
        %v3526 = vadd.f32 %v3429, %v3525
        %v3527 = vpop.f32.mrb[0].mxu0
        %3528 = vmatprep.mubr.bf16.mxu0 %v3338
        %3529 = vmatmul.mubr.bf16.gmra.mrb[0].mxu0 %v3337
        %v3530 = vpop.f32.mrb[0].mxu0
        %v3531 = vadd.f32 %v3434, %v3530
        %v3532 = vpop.f32.mrb[0].mxu0
        %v3533 = vpop.f32.mrb[0].mxu0
        %v3534 = vadd.f32 %v3437, %v3533
        %v3535 = vpop.f32.mrb[0].mxu0
        %3536 = vmatprep.mubr.bf16.mxu0 %v3346
        %3537 = vmatmul.mubr.bf16.gmra.mrb[0].mxu0 %v3345
        %v3538 = vpop.f32.mrb[0].mxu0
        %v3539 = vadd.f32 %v3442, %v3538
        %v3540 = vpop.f32.mrb[0].mxu0
        %v3541 = vpop.f32.mrb[0].mxu0
        %v3542 = vadd.f32 %v3445, %v3541
        %v3543 = vpop.f32.mrb[0].mxu0
        %3544 = vmatprep.mubr.bf16.mxu0 %v3354
        %3545 = vmatmul.mubr.bf16.gmra.mrb[0].mxu0 %v3353
        %v3546 = vpop.f32.mrb[0].mxu0
        %v3547 = vadd.f32 %v3450, %v3546
        %v3548 = vpop.f32.mrb[0].mxu0
        %v3549 = vpop.f32.mrb[0].mxu0
        %v3550 = vadd.f32 %v3453, %v3549
        %v3551 = vpop.f32.mrb[0].mxu0
        %3552 = vdwg.mxu0
        %3553 = vmatprep.subr.bf16.mxu0 0
        %3554 = vmatpush1.bf16.msra.mxu0 %v2699
        %3555 = vmatprep.subr.bf16.mxu0 0
        %3556 = vmatpush1.bf16.msra.mxu0 %v2700
        %3557 = vmatprep.subr.bf16.mxu0 0
        %3558 = vmatpush1.bf16.msra.mxu0 %v2701
        %3559 = vmatprep.subr.bf16.mxu0 0
        %3560 = vmatpush1.bf16.msra.mxu0 %v2702
        %3561 = vmatprep.subr.bf16.mxu0 0
        %3562 = vmatpush1.bf16.msra.mxu0 %v2703
        %3563 = vmatprep.subr.bf16.mxu0 0
        %3564 = vmatpush1.bf16.msra.mxu0 %v2704
        %3565 = vmatprep.subr.bf16.mxu0 0
        %3566 = vmatpush1.bf16.msra.mxu0 %v2705
        %3567 = vmatprep.subr.bf16.mxu0 0
        %3568 = vmatpush1.bf16.msra.mxu0 %v2706
        %3569 = vmatprep.subr.bf16.mxu0 0
        %3570 = vmatpush1.bf16.msra.mxu0 %v2707
        %3571 = vmatprep.subr.bf16.mxu0 0
        %3572 = vmatpush1.bf16.msra.mxu0 %v2708
        %3573 = vmatprep.subr.bf16.mxu0 0
        %3574 = vmatpush1.bf16.msra.mxu0 %v2709
        %3575 = vmatprep.subr.bf16.mxu0 0
        %3576 = vmatpush1.bf16.msra.mxu0 %v2710
        %3577 = vmatprep.subr.bf16.mxu0 0
        %3578 = vmatpush1.bf16.msra.mxu0 %v2711
        %3579 = vmatprep.subr.bf16.mxu0 0
        %3580 = vmatpush1.bf16.msra.mxu0 %v2712
        %3581 = vmatprep.subr.bf16.mxu0 0
        %3582 = vmatpush1.bf16.msra.mxu0 %v2713
        %3583 = vmatprep.subr.bf16.mxu0 0
        %3584 = vmatpush1.bf16.msra.mxu0 %v2714
        %3585 = vmatprep.mubr.bf16.mxu0 %v3300
        %3586 = vmatmul.mubr.bf16.gmra.mrb[0].mxu0 %v3299
        %v3587 = vpop.f32.mrb[0].mxu0
        %v3588 = vadd.f32 %v3491, %v3587
        %v3589 = vpop.f32.mrb[0].mxu0
        %v3590 = vpop.f32.mrb[0].mxu0
        %v3591 = vadd.f32 %v3494, %v3590
        %v3592 = vpop.f32.mrb[0].mxu0
        %3593 = vmatprep.mubr.bf16.mxu0 %v3308
        %3594 = vmatmul.mubr.bf16.gmra.mrb[0].mxu0 %v3307
        %v3595 = vpop.f32.mrb[0].mxu0
        %v3596 = vadd.f32 %v3499, %v3595
        %v3597 = vpop.f32.mrb[0].mxu0
        %v3598 = vpop.f32.mrb[0].mxu0
        %v3599 = vadd.f32 %v3502, %v3598
        %v3600 = vpop.f32.mrb[0].mxu0
        %3601 = vmatprep.mubr.bf16.mxu0 %v3316
        %3602 = vmatmul.mubr.bf16.gmra.mrb[0].mxu0 %v3315
        %v3603 = vpop.f32.mrb[0].mxu0
        %v3604 = vadd.f32 %v3507, %v3603
        %v3605 = vpop.f32.mrb[0].mxu0
        %v3606 = vpop.f32.mrb[0].mxu0
        %v3607 = vadd.f32 %v3510, %v3606
        %v3608 = vpop.f32.mrb[0].mxu0
        %3609 = vmatprep.mubr.bf16.mxu0 %v3324
        %3610 = vmatmul.mubr.bf16.gmra.mrb[0].mxu0 %v3323
        %v3611 = vpop.f32.mrb[0].mxu0
        %v3612 = vadd.f32 %v3515, %v3611
        %v3613 = vpop.f32.mrb[0].mxu0
        %v3614 = vpop.f32.mrb[0].mxu0
        %v3615 = vadd.f32 %v3518, %v3614
        %v3616 = vpop.f32.mrb[0].mxu0
        %3617 = vmatprep.mubr.bf16.mxu0 %v3332
        %3618 = vmatmul.mubr.bf16.gmra.mrb[0].mxu0 %v3331
        %v3619 = vpop.f32.mrb[0].mxu0
        %v3620 = vadd.f32 %v3523, %v3619
        %v3621 = vpop.f32.mrb[0].mxu0
        %v3622 = vpop.f32.mrb[0].mxu0
        %v3623 = vadd.f32 %v3526, %v3622
        %v3624 = vpop.f32.mrb[0].mxu0
        %3625 = vmatprep.mubr.bf16.mxu0 %v3340
        %3626 = vmatmul.mubr.bf16.gmra.mrb[0].mxu0 %v3339
        %v3627 = vpop.f32.mrb[0].mxu0
        %v3628 = vadd.f32 %v3531, %v3627
        %v3629 = vpop.f32.mrb[0].mxu0
        %v3630 = vpop.f32.mrb[0].mxu0
        %v3631 = vadd.f32 %v3534, %v3630
        %v3632 = vpop.f32.mrb[0].mxu0
        %3633 = vmatprep.mubr.bf16.mxu0 %v3348
        %3634 = vmatmul.mubr.bf16.gmra.mrb[0].mxu0 %v3347
        %v3635 = vpop.f32.mrb[0].mxu0
        %v3636 = vadd.f32 %v3539, %v3635
        %v3637 = vpop.f32.mrb[0].mxu0
        %v3638 = vpop.f32.mrb[0].mxu0
        %v3639 = vadd.f32 %v3542, %v3638
        %v3640 = vpop.f32.mrb[0].mxu0
        %3641 = vmatprep.mubr.bf16.mxu0 %v3356
        %3642 = vmatmul.mubr.bf16.gmra.mrb[0].mxu0 %v3355
        %v3643 = vpop.f32.mrb[0].mxu0
        %v3644 = vadd.f32 %v3547, %v3643
        %v3645 = vpop.f32.mrb[0].mxu0
        %v3646 = vpop.f32.mrb[0].mxu0
        %v3647 = vadd.f32 %v3550, %v3646
        %v3648 = vpop.f32.mrb[0].mxu0
        %3649 = vdwg.mxu0
        %3650 = vmatprep.subr.bf16.mxu0 0
        %3651 = vmatpush1.bf16.msra.mxu0 %v2715
        %3652 = vmatprep.subr.bf16.mxu0 0
        %3653 = vmatpush1.bf16.msra.mxu0 %v2716
        %3654 = vmatprep.subr.bf16.mxu0 0
        %3655 = vmatpush1.bf16.msra.mxu0 %v2717
        %3656 = vmatprep.subr.bf16.mxu0 0
        %3657 = vmatpush1.bf16.msra.mxu0 %v2718
        %3658 = vmatprep.subr.bf16.mxu0 0
        %3659 = vmatpush1.bf16.msra.mxu0 %v2719
        %3660 = vmatprep.subr.bf16.mxu0 0
        %3661 = vmatpush1.bf16.msra.mxu0 %v2720
        %3662 = vmatprep.subr.bf16.mxu0 0
        %3663 = vmatpush1.bf16.msra.mxu0 %v2721
        %3664 = vmatprep.subr.bf16.mxu0 0
        %3665 = vmatpush1.bf16.msra.mxu0 %v2722
        %3666 = vmatprep.subr.bf16.mxu0 0
        %3667 = vmatpush1.bf16.msra.mxu0 %v2723
        %3668 = vmatprep.subr.bf16.mxu0 0
        %3669 = vmatpush1.bf16.msra.mxu0 %v2724
        %3670 = vmatprep.subr.bf16.mxu0 0
        %3671 = vmatpush1.bf16.msra.mxu0 %v2725
        %3672 = vmatprep.subr.bf16.mxu0 0
        %3673 = vmatpush1.bf16.msra.mxu0 %v2726
        %3674 = vmatprep.subr.bf16.mxu0 0
        %3675 = vmatpush1.bf16.msra.mxu0 %v2727
        %3676 = vmatprep.subr.bf16.mxu0 0
        %3677 = vmatpush1.bf16.msra.mxu0 %v2728
        %3678 = vmatprep.subr.bf16.mxu0 0
        %3679 = vmatpush1.bf16.msra.mxu0 %v2729
        %3680 = vmatprep.subr.bf16.mxu0 0
        %3681 = vmatpush1.bf16.msra.mxu0 %v2730
        %3682 = vmatprep.mubr.bf16.mxu0 %v3302
        %3683 = vmatmul.mubr.bf16.gmra.mrb[0].mxu0 %v3301
        %v3684 = vpop.f32.mrb[0].mxu0
        %v3685 = vadd.f32 %v3588, %v3684
        %v3686 = vpop.f32.mrb[0].mxu0
        %v3687 = vpop.f32.mrb[0].mxu0
        %v3688 = vadd.f32 %v3591, %v3687
        %v3689 = vpop.f32.mrb[0].mxu0
        %3690 = vmatprep.mubr.bf16.mxu0 %v3310
        %3691 = vmatmul.mubr.bf16.gmra.mrb[0].mxu0 %v3309
        %v3692 = vpop.f32.mrb[0].mxu0
        %v3693 = vadd.f32 %v3596, %v3692
        %v3694 = vpop.f32.mrb[0].mxu0
        %v3695 = vpop.f32.mrb[0].mxu0
        %v3696 = vadd.f32 %v3599, %v3695
        %v3697 = vpop.f32.mrb[0].mxu0
        %3698 = vmatprep.mubr.bf16.mxu0 %v3318
        %3699 = vmatmul.mubr.bf16.gmra.mrb[0].mxu0 %v3317
        %v3700 = vpop.f32.mrb[0].mxu0
        %v3701 = vadd.f32 %v3604, %v3700
        %v3702 = vpop.f32.mrb[0].mxu0
        %v3703 = vpop.f32.mrb[0].mxu0
        %v3704 = vadd.f32 %v3607, %v3703
        %v3705 = vpop.f32.mrb[0].mxu0
        %3706 = vmatprep.mubr.bf16.mxu0 %v3326
        %3707 = vmatmul.mubr.bf16.gmra.mrb[0].mxu0 %v3325
        %v3708 = vpop.f32.mrb[0].mxu0
        %v3709 = vadd.f32 %v3612, %v3708
        %v3710 = vpop.f32.mrb[0].mxu0
        %v3711 = vpop.f32.mrb[0].mxu0
        %v3712 = vadd.f32 %v3615, %v3711
        %v3713 = vpop.f32.mrb[0].mxu0
        %3714 = vmatprep.mubr.bf16.mxu0 %v3334
        %3715 = vmatmul.mubr.bf16.gmra.mrb[0].mxu0 %v3333
        %v3716 = vpop.f32.mrb[0].mxu0
        %v3717 = vadd.f32 %v3620, %v3716
        %v3718 = vpop.f32.mrb[0].mxu0
        %v3719 = vpop.f32.mrb[0].mxu0
        %v3720 = vadd.f32 %v3623, %v3719
        %v3721 = vpop.f32.mrb[0].mxu0
        %3722 = vmatprep.mubr.bf16.mxu0 %v3342
        %3723 = vmatmul.mubr.bf16.gmra.mrb[0].mxu0 %v3341
        %v3724 = vpop.f32.mrb[0].mxu0
        %v3725 = vadd.f32 %v3628, %v3724
        %v3726 = vpop.f32.mrb[0].mxu0
        %v3727 = vpop.f32.mrb[0].mxu0
        %v3728 = vadd.f32 %v3631, %v3727
        %v3729 = vpop.f32.mrb[0].mxu0
        %3730 = vmatprep.mubr.bf16.mxu0 %v3350
        %3731 = vmatmul.mubr.bf16.gmra.mrb[0].mxu0 %v3349
        %v3732 = vpop.f32.mrb[0].mxu0
        %v3733 = vadd.f32 %v3636, %v3732
        %v3734 = vpop.f32.mrb[0].mxu0
        %v3735 = vpop.f32.mrb[0].mxu0
        %v3736 = vadd.f32 %v3639, %v3735
        %v3737 = vpop.f32.mrb[0].mxu0
        %3738 = vmatprep.mubr.bf16.mxu0 %v3358
        %3739 = vmatmul.mubr.bf16.gmra.mrb[0].mxu0 %v3357
        %v3740 = vpop.f32.mrb[0].mxu0
        %v3741 = vadd.f32 %v3644, %v3740
        %v3742 = vpop.f32.mrb[0].mxu0
        %v3743 = vpop.f32.mrb[0].mxu0
        %v3744 = vadd.f32 %v3647, %v3743
        %v3745 = vpop.f32.mrb[0].mxu0
        %3746 = vdwg.mxu0
        %s3747 = scalar_lea.vmem %s364, 128 [#allocation5]
        %v3748 = vld [vmem:[%s3747] sm:$0xff]
        %v3749 = vld [vmem:[%s3747 + $0x8] sm:$0xff]
        %v3750 = vld [vmem:[%s3747 + $0x10] sm:$0xff]
        %v3751 = vld [vmem:[%s3747 + $0x18] sm:$0xff]
        %v3752 = vld [vmem:[%s3747 + $0x20] sm:$0xff]
        %v3753 = vld [vmem:[%s3747 + $0x28] sm:$0xff]
        %v3754 = vld [vmem:[%s3747 + $0x30] sm:$0xff]
        %v3755 = vld [vmem:[%s3747 + $0x38] sm:$0xff]
        %v3756 = vld [vmem:[%s3747 + $0x40] sm:$0xff]
        %v3757 = vld [vmem:[%s3747 + $0x48] sm:$0xff]
        %v3758 = vld [vmem:[%s3747 + $0x50] sm:$0xff]
        %v3759 = vld [vmem:[%s3747 + $0x58] sm:$0xff]
        %v3760 = vld [vmem:[%s3747 + $0x60] sm:$0xff]
        %v3761 = vld [vmem:[%s3747 + $0x68] sm:$0xff]
        %v3762 = vld [vmem:[%s3747 + $0x70] sm:$0xff]
        %v3763 = vld [vmem:[%s3747 + $0x78] sm:$0xff]
        %v3764 = vadd.f32 %v3748, %v3685
        %v3765 = vadd.f32 %v3749, %v3688
        %v3766 = vadd.f32 %v3750, %v3693
        %v3767 = vadd.f32 %v3751, %v3696
        %v3768 = vadd.f32 %v3752, %v3701
        %v3769 = vadd.f32 %v3753, %v3704
        %v3770 = vadd.f32 %v3754, %v3709
        %v3771 = vadd.f32 %v3755, %v3712
        %v3772 = vadd.f32 %v3756, %v3717
        %v3773 = vadd.f32 %v3757, %v3720
        %v3774 = vadd.f32 %v3758, %v3725
        %v3775 = vadd.f32 %v3759, %v3728
        %v3776 = vadd.f32 %v3760, %v3733
        %v3777 = vadd.f32 %v3761, %v3736
        %v3778 = vadd.f32 %v3762, %v3741
        %v3779 = vadd.f32 %v3763, %v3744
        %s3780 = scalar_lea.vmem %s390, 128 [#allocation6]
        %3781 = vst [vmem:[%s3780] sm:$0xff] %v3764
        %3782 = vst [vmem:[%s3780 + $0x8] sm:$0xff] %v3765
        %3783 = vst [vmem:[%s3780 + $0x10] sm:$0xff] %v3766
        %3784 = vst [vmem:[%s3780 + $0x18] sm:$0xff] %v3767
        %3785 = vst [vmem:[%s3780 + $0x20] sm:$0xff] %v3768
        %3786 = vst [vmem:[%s3780 + $0x28] sm:$0xff] %v3769
        %3787 = vst [vmem:[%s3780 + $0x30] sm:$0xff] %v3770
        %3788 = vst [vmem:[%s3780 + $0x38] sm:$0xff] %v3771
        %3789 = vst [vmem:[%s3780 + $0x40] sm:$0xff] %v3772
        %3790 = vst [vmem:[%s3780 + $0x48] sm:$0xff] %v3773
        %3791 = vst [vmem:[%s3780 + $0x50] sm:$0xff] %v3774
        %3792 = vst [vmem:[%s3780 + $0x58] sm:$0xff] %v3775
        %3793 = vst [vmem:[%s3780 + $0x60] sm:$0xff] %v3776
        %3794 = vst [vmem:[%s3780 + $0x68] sm:$0xff] %v3777
        %3795 = vst [vmem:[%s3780 + $0x70] sm:$0xff] %v3778
        %3796 = vst [vmem:[%s3780 + $0x78] sm:$0xff] %v3779
        %s3797 = sand.u32 %s120, 1
        %s3798 = sand.u32 %s120, 1
        %s3799 = smul.addr %s3798, 256
        %s3800 = scalar_lea.vmem [#allocation6], %s3799
        // Predicated region
        $region79: #{stu_block_forward.2} parent=69 // pred_check
          %p3801 = pneg %p130
        $region80: #{stu_block_forward.2} parent=69 // pred_check_branch
          %3803 = sbr.rel (%p3801) target = $region82
        $region81: #{stu_block_forward.2} parent=69 // pred_region
          %s3804 = smul.u32 16, %s18
          %s3805 = smul.addr %s3804, 8
          %s3806 = scalar_lea.vmem %s4, %s3805
          // Predicated region
          $region83: #{stu_block_forward.2} parent=81 // pred_check
            _
          $region84: #{stu_block_forward.2} parent=81 // pred_check_branch
            %3808 = sbr.rel (0) target = $region86
          $region85: #{stu_block_forward.2} parent=81 // pred_region
            // Predicated region
            $region87: #{stu_block_forward.2} parent=85 // pred_check
              _
            $region88: #{stu_block_forward.2} parent=85 // pred_check_branch
              %3810 = sbr.rel (0) target = $region90
            $region89: #{stu_block_forward.2} parent=85 // pred_region
              // Predicated region
              $region102: #{stu_block_forward.2} parent=89 // pred_check
                _
              $region103: #{stu_block_forward.2} parent=89 // pred_check_branch
                %3887 = sbr.rel (0) target = $region105
              $region104: #{stu_block_forward.2} parent=89 // pred_region
                loop: start=0, step=1, limit=1
                $region106: #{stu_block_forward.2} parent=104 // loop_pre_header
                  _
                $region107: #{stu_block_forward.2} parent=104 // loop_header
                  %s3889 = sphi 0, %s3893
                  %p3890 = scmp.ge.s32.totalorder %s3889, 1
                  %s3894 = sphi %s3800, %s3800
                  %s3895 = sphi %s3806, %s3806
                $region108: #{stu_block_forward.2} parent=104 // loop_header_branch
                  %3892 = sbr.rel (%p3890) target = $region112
                $region109: #{stu_block_forward.2} parent=104 // loop_body
                  %v3896 = vld [vmem:[%s3894] sm:$0xff]
                  %3897 = vst [vmem:[%s3895] sm:$0xff] %v3896
                  %v3898 = vld [vmem:[%s3894 + $0x8] sm:$0xff]
                  %3899 = vst [vmem:[%s3895 + $0x8] sm:$0xff] %v3898
                  %v3900 = vld [vmem:[%s3894 + $0x10] sm:$0xff]
                  %3901 = vst [vmem:[%s3895 + $0x10] sm:$0xff] %v3900
                  %v3902 = vld [vmem:[%s3894 + $0x18] sm:$0xff]
                  %3903 = vst [vmem:[%s3895 + $0x18] sm:$0xff] %v3902
                  %v3904 = vld [vmem:[%s3894 + $0x20] sm:$0xff]
                  %3905 = vst [vmem:[%s3895 + $0x20] sm:$0xff] %v3904
                  %v3906 = vld [vmem:[%s3894 + $0x28] sm:$0xff]
                  %3907 = vst [vmem:[%s3895 + $0x28] sm:$0xff] %v3906
                  %v3908 = vld [vmem:[%s3894 + $0x30] sm:$0xff]
                  %3909 = vst [vmem:[%s3895 + $0x30] sm:$0xff] %v3908
                  %v3910 = vld [vmem:[%s3894 + $0x38] sm:$0xff]
                  %3911 = vst [vmem:[%s3895 + $0x38] sm:$0xff] %v3910
                  %v3912 = vld [vmem:[%s3894 + $0x40] sm:$0xff]
                  %3913 = vst [vmem:[%s3895 + $0x40] sm:$0xff] %v3912
                  %v3914 = vld [vmem:[%s3894 + $0x48] sm:$0xff]
                  %3915 = vst [vmem:[%s3895 + $0x48] sm:$0xff] %v3914
                  %v3916 = vld [vmem:[%s3894 + $0x50] sm:$0xff]
                  %3917 = vst [vmem:[%s3895 + $0x50] sm:$0xff] %v3916
                  %v3918 = vld [vmem:[%s3894 + $0x58] sm:$0xff]
                  %3919 = vst [vmem:[%s3895 + $0x58] sm:$0xff] %v3918
                  %v3920 = vld [vmem:[%s3894 + $0x60] sm:$0xff]
                  %3921 = vst [vmem:[%s3895 + $0x60] sm:$0xff] %v3920
                  %v3922 = vld [vmem:[%s3894 + $0x68] sm:$0xff]
                  %3923 = vst [vmem:[%s3895 + $0x68] sm:$0xff] %v3922
                  %v3924 = vld [vmem:[%s3894 + $0x70] sm:$0xff]
                  %3925 = vst [vmem:[%s3895 + $0x70] sm:$0xff] %v3924
                  %v3926 = vld [vmem:[%s3894 + $0x78] sm:$0xff]
                  %3927 = vst [vmem:[%s3895 + $0x78] sm:$0xff] %v3926
                  %v3928 = vld [vmem:[%s3894 + $0x80] sm:$0xff]
                  %3929 = vst [vmem:[%s3895 + $0x100] sm:$0xff] %v3928
                  %v3930 = vld [vmem:[%s3894 + $0x88] sm:$0xff]
                  %3931 = vst [vmem:[%s3895 + $0x108] sm:$0xff] %v3930
                  %v3932 = vld [vmem:[%s3894 + $0x90] sm:$0xff]
                  %3933 = vst [vmem:[%s3895 + $0x110] sm:$0xff] %v3932
                  %v3934 = vld [vmem:[%s3894 + $0x98] sm:$0xff]
                  %3935 = vst [vmem:[%s3895 + $0x118] sm:$0xff] %v3934
                  %v3936 = vld [vmem:[%s3894 + $0xa0] sm:$0xff]
                  %3937 = vst [vmem:[%s3895 + $0x120] sm:$0xff] %v3936
                  %v3938 = vld [vmem:[%s3894 + $0xa8] sm:$0xff]
                  %3939 = vst [vmem:[%s3895 + $0x128] sm:$0xff] %v3938
                  %v3940 = vld [vmem:[%s3894 + $0xb0] sm:$0xff]
                  %3941 = vst [vmem:[%s3895 + $0x130] sm:$0xff] %v3940
                  %v3942 = vld [vmem:[%s3894 + $0xb8] sm:$0xff]
                  %3943 = vst [vmem:[%s3895 + $0x138] sm:$0xff] %v3942
                  %v3944 = vld [vmem:[%s3894 + $0xc0] sm:$0xff]
                  %3945 = vst [vmem:[%s3895 + $0x140] sm:$0xff] %v3944
                  %v3946 = vld [vmem:[%s3894 + $0xc8] sm:$0xff]
                  %3947 = vst [vmem:[%s3895 + $0x148] sm:$0xff] %v3946
                  %v3948 = vld [vmem:[%s3894 + $0xd0] sm:$0xff]
                  %3949 = vst [vmem:[%s3895 + $0x150] sm:$0xff] %v3948
                  %v3950 = vld [vmem:[%s3894 + $0xd8] sm:$0xff]
                  %3951 = vst [vmem:[%s3895 + $0x158] sm:$0xff] %v3950
                  %v3952 = vld [vmem:[%s3894 + $0xe0] sm:$0xff]
                  %3953 = vst [vmem:[%s3895 + $0x160] sm:$0xff] %v3952
                  %v3954 = vld [vmem:[%s3894 + $0xe8] sm:$0xff]
                  %3955 = vst [vmem:[%s3895 + $0x168] sm:$0xff] %v3954
                  %v3956 = vld [vmem:[%s3894 + $0xf0] sm:$0xff]
                  %3957 = vst [vmem:[%s3895 + $0x170] sm:$0xff] %v3956
                  %v3958 = vld [vmem:[%s3894 + $0xf8] sm:$0xff]
                  %3959 = vst [vmem:[%s3895 + $0x178] sm:$0xff] %v3958
                $region110: #{stu_block_forward.2} parent=104 // loop_footer
                  %s3893 = sadd.s32 1, %s3889
                $region111: #{stu_block_forward.2} parent=104 // loop_footer_branch
                  %3888 = sbr.rel target = $region107
                $region112: #{stu_block_forward.2} parent=104 // loop_exit
                  _
              $region105: #{stu_block_forward.2} parent=89 // pred_fallthru
                _
              // Predicated region
              $region113: #{stu_block_forward.2} parent=89 // pred_check
                _
              $region114: #{stu_block_forward.2} parent=89 // pred_check_branch
                %3961 = sbr.rel target = $region116
              $region115: #{stu_block_forward.2} parent=89 // pred_region
                _
              $region116: #{stu_block_forward.2} parent=89 // pred_fallthru
                _
            $region90: #{stu_block_forward.2} parent=85 // pred_fallthru
              _
            // Predicated region
            $region91: #{stu_block_forward.2} parent=85 // pred_check
              _
            $region92: #{stu_block_forward.2} parent=85 // pred_check_branch
              %3812 = sbr.rel target = $region94
            $region93: #{stu_block_forward.2} parent=85 // pred_region
              loop: start=0, step=1, limit=1
              $region95: #{stu_block_forward.2} parent=93 // loop_pre_header
                _
              $region96: #{stu_block_forward.2} parent=93 // loop_header
                %s3815 = sphi 0, %s3819
                %p3816 = scmp.ge.s32.totalorder %s3815, 1
                %s3820 = sphi %s3800, %s3800
                %s3821 = sphi %s3806, %s3806
              $region97: #{stu_block_forward.2} parent=93 // loop_header_branch
                %3818 = sbr.rel (%p3816) target = $region101
              $region98: #{stu_block_forward.2} parent=93 // loop_body
                %v3822 = vld [vmem:[%s3820] sm:$0xff]
                %3823 = vst [vmem:[%s3821] sm:$0xff] %v3822
                %v3824 = vld [vmem:[%s3820 + $0x8] sm:$0xff]
                %3825 = vst [vmem:[%s3821 + $0x8] sm:$0xff] %v3824
                %v3826 = vld [vmem:[%s3820 + $0x10] sm:$0xff]
                %3827 = vst [vmem:[%s3821 + $0x10] sm:$0xff] %v3826
                %v3828 = vld [vmem:[%s3820 + $0x18] sm:$0xff]
                %3829 = vst [vmem:[%s3821 + $0x18] sm:$0xff] %v3828
                %v3830 = vld [vmem:[%s3820 + $0x20] sm:$0xff]
                %3831 = vst [vmem:[%s3821 + $0x20] sm:$0xff] %v3830
                %v3832 = vld [vmem:[%s3820 + $0x28] sm:$0xff]
                %3833 = vst [vmem:[%s3821 + $0x28] sm:$0xff] %v3832
                %v3834 = vld [vmem:[%s3820 + $0x30] sm:$0xff]
                %3835 = vst [vmem:[%s3821 + $0x30] sm:$0xff] %v3834
                %v3836 = vld [vmem:[%s3820 + $0x38] sm:$0xff]
                %3837 = vst [vmem:[%s3821 + $0x38] sm:$0xff] %v3836
                %v3838 = vld [vmem:[%s3820 + $0x40] sm:$0xff]
                %3839 = vst [vmem:[%s3821 + $0x40] sm:$0xff] %v3838
                %v3840 = vld [vmem:[%s3820 + $0x48] sm:$0xff]
                %3841 = vst [vmem:[%s3821 + $0x48] sm:$0xff] %v3840
                %v3842 = vld [vmem:[%s3820 + $0x50] sm:$0xff]
                %3843 = vst [vmem:[%s3821 + $0x50] sm:$0xff] %v3842
                %v3844 = vld [vmem:[%s3820 + $0x58] sm:$0xff]
                %3845 = vst [vmem:[%s3821 + $0x58] sm:$0xff] %v3844
                %v3846 = vld [vmem:[%s3820 + $0x60] sm:$0xff]
                %3847 = vst [vmem:[%s3821 + $0x60] sm:$0xff] %v3846
                %v3848 = vld [vmem:[%s3820 + $0x68] sm:$0xff]
                %3849 = vst [vmem:[%s3821 + $0x68] sm:$0xff] %v3848
                %v3850 = vld [vmem:[%s3820 + $0x70] sm:$0xff]
                %3851 = vst [vmem:[%s3821 + $0x70] sm:$0xff] %v3850
                %v3852 = vld [vmem:[%s3820 + $0x78] sm:$0xff]
                %3853 = vst [vmem:[%s3821 + $0x78] sm:$0xff] %v3852
                %v3854 = vld [vmem:[%s3820 + $0x80] sm:$0xff]
                %3855 = vst [vmem:[%s3821 + $0x100] sm:$0xff] %v3854
                %v3856 = vld [vmem:[%s3820 + $0x88] sm:$0xff]
                %3857 = vst [vmem:[%s3821 + $0x108] sm:$0xff] %v3856
                %v3858 = vld [vmem:[%s3820 + $0x90] sm:$0xff]
                %3859 = vst [vmem:[%s3821 + $0x110] sm:$0xff] %v3858
                %v3860 = vld [vmem:[%s3820 + $0x98] sm:$0xff]
                %3861 = vst [vmem:[%s3821 + $0x118] sm:$0xff] %v3860
                %v3862 = vld [vmem:[%s3820 + $0xa0] sm:$0xff]
                %3863 = vst [vmem:[%s3821 + $0x120] sm:$0xff] %v3862
                %v3864 = vld [vmem:[%s3820 + $0xa8] sm:$0xff]
                %3865 = vst [vmem:[%s3821 + $0x128] sm:$0xff] %v3864
                %v3866 = vld [vmem:[%s3820 + $0xb0] sm:$0xff]
                %3867 = vst [vmem:[%s3821 + $0x130] sm:$0xff] %v3866
                %v3868 = vld [vmem:[%s3820 + $0xb8] sm:$0xff]
                %3869 = vst [vmem:[%s3821 + $0x138] sm:$0xff] %v3868
                %v3870 = vld [vmem:[%s3820 + $0xc0] sm:$0xff]
                %3871 = vst [vmem:[%s3821 + $0x140] sm:$0xff] %v3870
                %v3872 = vld [vmem:[%s3820 + $0xc8] sm:$0xff]
                %3873 = vst [vmem:[%s3821 + $0x148] sm:$0xff] %v3872
                %v3874 = vld [vmem:[%s3820 + $0xd0] sm:$0xff]
                %3875 = vst [vmem:[%s3821 + $0x150] sm:$0xff] %v3874
                %v3876 = vld [vmem:[%s3820 + $0xd8] sm:$0xff]
                %3877 = vst [vmem:[%s3821 + $0x158] sm:$0xff] %v3876
                %v3878 = vld [vmem:[%s3820 + $0xe0] sm:$0xff]
                %3879 = vst [vmem:[%s3821 + $0x160] sm:$0xff] %v3878
                %v3880 = vld [vmem:[%s3820 + $0xe8] sm:$0xff]
                %3881 = vst [vmem:[%s3821 + $0x168] sm:$0xff] %v3880
                %v3882 = vld [vmem:[%s3820 + $0xf0] sm:$0xff]
                %3883 = vst [vmem:[%s3821 + $0x170] sm:$0xff] %v3882
                %v3884 = vld [vmem:[%s3820 + $0xf8] sm:$0xff]
                %3885 = vst [vmem:[%s3821 + $0x178] sm:$0xff] %v3884
              $region99: #{stu_block_forward.2} parent=93 // loop_footer
                %s3819 = sadd.s32 1, %s3815
              $region100: #{stu_block_forward.2} parent=93 // loop_footer_branch
                %3814 = sbr.rel target = $region96
              $region101: #{stu_block_forward.2} parent=93 // loop_exit
                _
            $region94: #{stu_block_forward.2} parent=85 // pred_fallthru
              _
          $region86: #{stu_block_forward.2} parent=81 // pred_fallthru
            _
          %3962 = vnop
        $region82: #{stu_block_forward.2} parent=69 // pred_fallthru
          _
      $region70: #{stu_block_forward.2} parent=5 // pred_fallthru
        _
      %p3963 = scmp.le.s32.totalorder 2, %s13
      // Predicated region
      $region117: #{stu_block_forward.2} parent=5 // pred_check
        %p3964 = pneg %p3963
      $region118: #{stu_block_forward.2} parent=5 // pred_check_branch
        %3966 = sbr.rel (%p3964) target = $region120
      $region119: #{stu_block_forward.2} parent=5 // pred_region
        %s3967 = ssub.s32 %s13, 2
        // Predicated region
        $region121: #{stu_block_forward.2} parent=119 // pred_check
          %p3968 = pneg %p136
        $region122: #{stu_block_forward.2} parent=119 // pred_check_branch
          %3970 = sbr.rel (%p3968) target = $region124
        $region123: #{stu_block_forward.2} parent=119 // pred_region
          %s3971 = sand.u32 %s121, 1
          %s3972 = sand.u32 %s121, 1
          %s3973 = smul.addr %s3972, 256
          %s3974 = scalar_lea.vmem [#allocation6], %s3973
        $region124: #{stu_block_forward.2} parent=119 // pred_fallthru
          _
      $region120: #{stu_block_forward.2} parent=5 // pred_fallthru
        _
    $region6: #{stu_block_forward.2} parent=1 // loop_footer
      %s17 = sadd.s32 1, %s13
    $region7: #{stu_block_forward.2} parent=1 // loop_footer_branch
      %12 = sbr.rel target = $region3
    $region8: #{stu_block_forward.2} parent=1 // loop_exit
      _
    %3975 = vsyncpa [#allocation4], 1
    %s3976 = scalar_lea.sflag [#allocation4], 1
    %3977 = vsyncpa %s3976, 1

</llo_original>
